<compile_context>
chip_gen: v7x
topology: tpu7x:2x2x1
jax: 0.10.0
libtpu: 0.0.40
codegen_flags: <defaults>
</compile_context>

<pallas_src>
import functools

import jax
import jax.numpy as jnp
from jax import lax
from jax.experimental import pallas as pl
from jax.experimental.pallas import tpu as pltpu

import numpy as np


def _resblock_kernel(xm_ref, xh_ref, mask_ref, w1_ref, w2_ref, o_ref,
                     xs_ref, hp_ref, *, TR, Wp, res_w):
    """One (batch, row-tile) grid step.

    xm_ref : (1, TR*Wp, C)      f32  — main rows of the padded input window.
    xh_ref : (1, 4*Wp, C)       f32  — 4 halo rows below the main rows.
    mask   : ((TR+2)*Wp, 1)     f32  — 1.0 for valid columns (x < W), else 0.0.
    w1/w2  : (3, 3C, C)         bf16 — per-ky fused conv weights ((kx,ci) major).
    o_ref  : (1, TR*Wp, C)      f32  — output rows, padded-width layout.
    xs_ref : ((TR+4)*Wp, C)     f32  — stitched contiguous input window.
    hp_ref : ((TR+2)*Wp, C)     f32  — zero-haloed ReLU(conv1) for conv2.
    """
    C = xm_ref.shape[-1]
    Lm = TR * Wp                  # main-block rows
    L1 = (TR + 2) * Wp            # conv1 output rows (extended by 1 row each side)
    L2 = TR * Wp                  # conv2 / output rows

    # --- stitch main + halo into one contiguous window (both stores aligned) ---
    xs_ref[pl.ds(0, Lm), :] = xm_ref[0]
    xs_ref[pl.ds(Lm, 4 * Wp), :] = xh_ref[0]

    def conv3x3(load_slab, w_ref, L):
        """3 fused dots: per ky, LHS = [slab(kx=0) | slab(kx=1) | slab(kx=2)]."""
        acc = None
        for ky in range(3):
            s0 = load_slab(ky * Wp, L)                       # aligned (L, C) f32
            lhs = jnp.concatenate(
                [s0,
                 pltpu.roll(s0, L - 1, axis=0),              # == slab at +1 (wrap -> masked cols)
                 pltpu.roll(s0, L - 2, axis=0)],             # == slab at +2
                axis=-1)                                     # (L, 3C)
            part = jnp.dot(lhs.astype(jnp.bfloat16), w_ref[ky],
                           preferred_element_type=jnp.float32)
            acc = part if acc is None else acc + part        # MRB-friendly chain
        return acc                                           # (L, C) f32

    # --- conv1 over the extended row range, ReLU, zero the garbage columns ---
    acc1 = conv3x3(lambda off, L: xs_ref[pl.ds(off, L), :], w1_ref, L1)
    h = jnp.maximum(acc1, 0.0) * mask_ref[...]               # (L1, C) f32

    # Output-coords -> padded-coords is a +1 shift; the wrapped element and all
    # halo columns are exact zeros thanks to the column mask, so one aligned
    # full store builds conv2's zero-haloed input.
    hp_ref[...] = pltpu.roll(h, 1, axis=0)

    # conv1 "rows" outside the image (row -1 for the first tile, row H for the
    # last tile) must be zero for conv2's SAME padding.
    r = pl.program_id(1)

    @pl.when(r == 0)
    def _():
        hp_ref[pl.ds(0, Wp), :] = jnp.zeros((Wp, C), jnp.float32)

    @pl.when(r == pl.num_programs(1) - 1)
    def _():
        hp_ref[pl.ds((TR + 1) * Wp, Wp), :] = jnp.zeros((Wp, C), jnp.float32)

    # --- conv2 ---
    acc2 = conv3x3(lambda off, L: hp_ref[pl.ds(off, L), :], w2_ref, L2)

    # --- scale + residual add (residual read from the f32 window: exact) ---
    res = pltpu.roll(xs_ref[pl.ds(2 * Wp, L2), :], L2 - 1, axis=0)
    o_ref[0] = res + jnp.float32(res_w) * acc2


def _pick_row_tile(H, target):
    # Row tile must divide H and be a multiple of 4 (4-row halo blockability).
    tr = max(4, min(int(target), H))
    tr -= tr % 4
    while tr > 4 and H % tr:
        tr -= 4
    if tr < 4 or H % tr or tr % 4:
        raise ValueError("H must be a multiple of 4")  # TODO(synk): mask bottom tile
    return tr


def residual_block_pallas(x_nchw, w1_oihw, w2_oihw, res_w=0.1, row_tile=64):
    """x_nchw: (N, C, H, W); weights: (C, C, 3, 3) PyTorch OIHW layout.

    row_tile=64 keeps the per-step footprint well under v7x's 64 MiB VMEM at
    EDSR-scale (256x256, C=64); v6e/v5e can use larger/smaller tiles.
    """
    N, C, H, W = x_nchw.shape
    assert w1_oihw.shape == (C, C, 3, 3) and w2_oihw.shape == (C, C, 3, 3)

    TR = _pick_row_tile(H, row_tile)
    n_rt = H // TR
    Wp = ((W + 2 + 7) // 8) * 8          # padded width, multiple of 8 (aligned taps)
    Hpp = H + 4                          # 2 zero rows top + 2 bottom (2-row halo)
    L1 = (TR + 2) * Wp

    # Weights: OIHW -> HWIO -> per-ky fused (3, 3C, C), (kx, ci)-major, bf16 MXU.
    def fuse_w(w):
        return jnp.transpose(w, (2, 3, 1, 0)).reshape(3, 3 * C, C).astype(jnp.bfloat16)

    w1f, w2f = fuse_w(w1_oihw), fuse_w(w2_oihw)

    # Input: NCHW -> NHWC, single zero-pad pass (2 rows top/bottom, 1 col left,
    # Wp-1-W cols right), flattened (row, col) -> one leading axis. Stays f32 so
    # the in-kernel residual add is exact.
    x_nhwc = jnp.transpose(x_nchw, (0, 2, 3, 1)).astype(jnp.float32)
    xp = jnp.pad(x_nhwc, ((0, 0), (2, 2), (1, Wp - 1 - W), (0, 0)))
    xp = xp.reshape(N, Hpp * Wp, C)

    # Hoisted column-validity mask (same for every row tile / batch element).
    col = np.arange(L1) % Wp
    mask = jnp.asarray((col < W).astype(np.float32)).reshape(L1, 1)

    kernel = functools.partial(_resblock_kernel, TR=TR, Wp=Wp, res_w=float(res_w))

    out = pl.pallas_call(
        kernel,
        out_shape=jax.ShapeDtypeStruct((N, H * Wp, C), jnp.float32),
        grid_spec=pltpu.PrefetchScalarGridSpec(
            num_scalar_prefetch=0,
            grid=(N, n_rt),
            in_specs=[
                # main rows of the window for tile r: padded rows [r*TR, r*TR+TR)
                pl.BlockSpec((1, TR * Wp, C), lambda b, r: (b, r, 0)),
                # 4 halo rows below: padded rows [(r+1)*TR, (r+1)*TR+4)
                pl.BlockSpec((1, 4 * Wp, C), lambda b, r: (b, (r + 1) * (TR // 4), 0)),
                pl.BlockSpec((L1, 1), lambda b, r: (0, 0)),
                pl.BlockSpec((3, 3 * C, C), lambda b, r: (0, 0, 0)),
                pl.BlockSpec((3, 3 * C, C), lambda b, r: (0, 0, 0)),
            ],
            out_specs=pl.BlockSpec((1, TR * Wp, C), lambda b, r: (b, r, 0)),
            scratch_shapes=[
                pltpu.VMEM(((TR + 4) * Wp, C), jnp.float32),   # stitched input window
                pltpu.VMEM(((TR + 2) * Wp, C), jnp.float32),   # zero-haloed ReLU(conv1)
            ],
        ),
        compiler_params=pltpu.CompilerParams(
            dimension_semantics=("parallel", "parallel"),
            vmem_limit_bytes=64 * 1024 * 1024,
        ),
    )(xp, xp, mask, w1f, w2f)

    # Padded-width layout -> (N, C, H, W): drop garbage columns, back to NCHW.
    out_nhwc = out.reshape(N, H, Wp, C)[:, :, :W, :]
    return jnp.transpose(out_nhwc, (0, 3, 1, 2)).astype(x_nchw.dtype)


def residual_block_ref(x_nchw, w1_oihw, w2_oihw, res_w=0.1):
    dn = ("NCHW", "OIHW", "NCHW")
    y = lax.conv_general_dilated(x_nchw, w1_oihw, (1, 1), "SAME",
                                 dimension_numbers=dn,
                                 precision=lax.Precision.HIGHEST)
    y = jnp.maximum(y, 0.0)
    y = lax.conv_general_dilated(y, w2_oihw, (1, 1), "SAME",
                                 dimension_numbers=dn,
                                 precision=lax.Precision.HIGHEST)
    return x_nchw + res_w * y


if __name__ == "__main__":
    # Shapes consistent with the module defaults (n=64 channels, f=3, w=0.1).
    N, C, H, W = 2, 64, 16, 16
    f = 3
    res_w = 0.1

    key = jax.random.PRNGKey(0)
    kx_, k1, k2 = jax.random.split(key, 3)

    x = jax.random.normal(kx_, (N, C, H, W), dtype=jnp.float32)
    bound = 1.0 / np.sqrt(C * f * f)
    w1 = jax.random.uniform(k1, (C, C, f, f), jnp.float32, -bound, bound)
    w2 = jax.random.uniform(k2, (C, C, f, f), jnp.float32, -bound, bound)

    # row_tile=8 -> two row tiles, exercising the haloed row-tile grid axis.
    out = jax.block_until_ready(residual_block_pallas(x, w1, w2, res_w, row_tile=8))
    ref = jax.block_until_ready(residual_block_ref(x, w1, w2, res_w))

    # f32 residual path + bf16 MXU operands (f32 accumulation): tight tolerance.
    np.testing.assert_allclose(np.asarray(out), np.asarray(ref),
                               rtol=5e-3, atol=5e-3)

    print("KERNEL_OK")
</pallas_src>

<mosaic_0001>
module attributes {stable_mosaic.version = 11 : i64} {
  func.func @_resblock_kernel(%arg0: i32, %arg1: i32, %arg2: memref<1x192x64xf32, #tpu.memory_space<vmem>>, %arg3: memref<1x96x64xf32, #tpu.memory_space<vmem>>, %arg4: memref<240x1xf32, #tpu.memory_space<vmem>>, %arg5: memref<3x192x64xbf16, #tpu.memory_space<vmem>>, %arg6: memref<3x192x64xbf16, #tpu.memory_space<vmem>>, %arg7: memref<1x192x64xf32, #tpu.memory_space<vmem>>, %arg8: memref<288x64xf32, #tpu.memory_space<vmem>>, %arg9: memref<240x64xf32, #tpu.memory_space<vmem>>) attributes {dimension_semantics = [#tpu.dimension_semantics<parallel>, #tpu.dimension_semantics<parallel>], iteration_bounds = array<i64: 2, 2>, scalar_prefetch = 0 : i64, scratch_operands = 2 : i64, tpu.core_type = #tpu.core_type<tc>, window_params = [{transform_indices = @transform_0, window_bounds = array<i64: 1, 192, 64>}, {transform_indices = @transform_1, window_bounds = array<i64: 1, 96, 64>}, {pipeline_mode = #tpu.pipeline_mode<synchronous>, transform_indices = @transform_2, window_bounds = array<i64: 240, 1>}, {pipeline_mode = #tpu.pipeline_mode<synchronous>, transform_indices = @transform_3, window_bounds = array<i64: 3, 192, 64>}, {pipeline_mode = #tpu.pipeline_mode<synchronous>, transform_indices = @transform_4, window_bounds = array<i64: 3, 192, 64>}, {transform_indices = @transform_5, window_bounds = array<i64: 1, 192, 64>}]} {
    %c0 = arith.constant 0 : index
    %c0_0 = arith.constant 0 : index
    %c0_1 = arith.constant 0 : index
    %0 = vector.load %arg2[%c0, %c0_0, %c0_1] : memref<1x192x64xf32, #tpu.memory_space<vmem>>, vector<1x192x64xf32>
    %1 = vector.shape_cast %0 : vector<1x192x64xf32> to vector<192x64xf32>
    %c0_2 = arith.constant 0 : index
    %c0_3 = arith.constant 0 : index
    %2 = vector.load %arg8[%c0_2, %c0_3] : memref<288x64xf32, #tpu.memory_space<vmem>>, vector<192x64xf32>
    tpu.vector_store %arg8[%c0_2, %c0_3], %1 {strides = array<i32>} : memref<288x64xf32, #tpu.memory_space<vmem>>, vector<192x64xf32>,
    %c0_4 = arith.constant 0 : index
    %c0_5 = arith.constant 0 : index
    %c0_6 = arith.constant 0 : index
    %3 = vector.load %arg3[%c0_4, %c0_5, %c0_6] : memref<1x96x64xf32, #tpu.memory_space<vmem>>, vector<1x96x64xf32>
    %4 = vector.shape_cast %3 : vector<1x96x64xf32> to vector<96x64xf32>
    %c192 = arith.constant 192 : index
    %c0_7 = arith.constant 0 : index
    %5 = vector.load %arg8[%c192, %c0_7] : memref<288x64xf32, #tpu.memory_space<vmem>>, vector<96x64xf32>
    tpu.vector_store %arg8[%c192, %c0_7], %4 {strides = array<i32>} : memref<288x64xf32, #tpu.memory_space<vmem>>, vector<96x64xf32>,
    %c0_8 = arith.constant 0 : index
    %c0_9 = arith.constant 0 : index
    %6 = vector.load %arg8[%c0_8, %c0_9] : memref<288x64xf32, #tpu.memory_space<vmem>>, vector<240x64xf32>
    %c239_i32 = arith.constant 239 : i32
    %7 = tpu.dynamic_rotate %6 by %c239_i32 dim 0 : vector<240x64xf32>, i32 -> vector<240x64xf32>
    %c238_i32 = arith.constant 238 : i32
    %8 = tpu.dynamic_rotate %6 by %c238_i32 dim 0 : vector<240x64xf32>, i32 -> vector<240x64xf32>
    %9 = tpu.concatenate %6, %7, %8 in 1 : vector<240x64xf32>, vector<240x64xf32>, vector<240x64xf32> -> vector<240x192xf32>
    %10 = arith.truncf %9 : vector<240x192xf32> to vector<240x192xbf16>
    %c0_10 = arith.constant 0 : index
    %c0_11 = arith.constant 0 : index
    %c0_12 = arith.constant 0 : index
    %11 = vector.load %arg5[%c0_10, %c0_11, %c0_12] : memref<3x192x64xbf16, #tpu.memory_space<vmem>>, vector<1x192x64xbf16>
    %12 = vector.shape_cast %11 : vector<1x192x64xbf16> to vector<192x64xbf16>
    %cst = arith.constant dense<0.000000e+00> : vector<240x64xf32>
    %13 = tpu.matmul %10, %12, %cst {dimension_numbers = #tpu.dot_dimension_numbers<[1], [0], [0], [1], [0, 0, 1, 1], [], []>} : vector<240x192xbf16>, vector<192x64xbf16>, vector<240x64xf32> -> vector<240x64xf32>
    %c24 = arith.constant 24 : index
    %c0_13 = arith.constant 0 : index
    %14 = vector.load %arg8[%c24, %c0_13] : memref<288x64xf32, #tpu.memory_space<vmem>>, vector<240x64xf32>
    %c239_i32_14 = arith.constant 239 : i32
    %15 = tpu.dynamic_rotate %14 by %c239_i32_14 dim 0 : vector<240x64xf32>, i32 -> vector<240x64xf32>
    %c238_i32_15 = arith.constant 238 : i32
    %16 = tpu.dynamic_rotate %14 by %c238_i32_15 dim 0 : vector<240x64xf32>, i32 -> vector<240x64xf32>
    %17 = tpu.concatenate %14, %15, %16 in 1 : vector<240x64xf32>, vector<240x64xf32>, vector<240x64xf32> -> vector<240x192xf32>
    %18 = arith.truncf %17 : vector<240x192xf32> to vector<240x192xbf16>
    %c1 = arith.constant 1 : index
    %c0_16 = arith.constant 0 : index
    %c0_17 = arith.constant 0 : index
    %19 = vector.load %arg5[%c1, %c0_16, %c0_17] : memref<3x192x64xbf16, #tpu.memory_space<vmem>>, vector<1x192x64xbf16>
    %20 = vector.shape_cast %19 : vector<1x192x64xbf16> to vector<192x64xbf16>
    %cst_18 = arith.constant dense<0.000000e+00> : vector<240x64xf32>
    %21 = tpu.matmul %18, %20, %cst_18 {dimension_numbers = #tpu.dot_dimension_numbers<[1], [0], [0], [1], [0, 0, 1, 1], [], []>} : vector<240x192xbf16>, vector<192x64xbf16>, vector<240x64xf32> -> vector<240x64xf32>
    %22 = arith.addf %13, %21 : vector<240x64xf32>
    %c48 = arith.constant 48 : index
    %c0_19 = arith.constant 0 : index
    %23 = vector.load %arg8[%c48, %c0_19] : memref<288x64xf32, #tpu.memory_space<vmem>>, vector<240x64xf32>
    %c239_i32_20 = arith.constant 239 : i32
    %24 = tpu.dynamic_rotate %23 by %c239_i32_20 dim 0 : vector<240x64xf32>, i32 -> vector<240x64xf32>
    %c238_i32_21 = arith.constant 238 : i32
    %25 = tpu.dynamic_rotate %23 by %c238_i32_21 dim 0 : vector<240x64xf32>, i32 -> vector<240x64xf32>
    %26 = tpu.concatenate %23, %24, %25 in 1 : vector<240x64xf32>, vector<240x64xf32>, vector<240x64xf32> -> vector<240x192xf32>
    %27 = arith.truncf %26 : vector<240x192xf32> to vector<240x192xbf16>
    %c2 = arith.constant 2 : index
    %c0_22 = arith.constant 0 : index
    %c0_23 = arith.constant 0 : index
    %28 = vector.load %arg5[%c2, %c0_22, %c0_23] : memref<3x192x64xbf16, #tpu.memory_space<vmem>>, vector<1x192x64xbf16>
    %29 = vector.shape_cast %28 : vector<1x192x64xbf16> to vector<192x64xbf16>
    %cst_24 = arith.constant dense<0.000000e+00> : vector<240x64xf32>
    %30 = tpu.matmul %27, %29, %cst_24 {dimension_numbers = #tpu.dot_dimension_numbers<[1], [0], [0], [1], [0, 0, 1, 1], [], []>} : vector<240x192xbf16>, vector<192x64xbf16>, vector<240x64xf32> -> vector<240x64xf32>
    %31 = arith.addf %22, %30 : vector<240x64xf32>
    %cst_25 = arith.constant 0.000000e+00 : f32
    %32 = vector.broadcast %cst_25 : f32 to vector<240x64xf32>
    %33 = arith.maximumf %31, %32 : vector<240x64xf32>
    %c0_26 = arith.constant 0 : index
    %c0_27 = arith.constant 0 : index
    %34 = vector.load %arg4[%c0_26, %c0_27] : memref<240x1xf32, #tpu.memory_space<vmem>>, vector<240x1xf32>
    %35 = vector.broadcast %34 : vector<240x1xf32> to vector<240x64xf32>
    %36 = arith.mulf %33, %35 : vector<240x64xf32>
    %c1_i32 = arith.constant 1 : i32
    %37 = tpu.dynamic_rotate %36 by %c1_i32 dim 0 : vector<240x64xf32>, i32 -> vector<240x64xf32>
    %c0_28 = arith.constant 0 : index
    %c0_29 = arith.constant 0 : index
    %38 = vector.load %arg9[%c0_28, %c0_29] : memref<240x64xf32, #tpu.memory_space<vmem>>, vector<240x64xf32>
    tpu.vector_store %arg9[%c0_28, %c0_29], %37 {strides = array<i32>} : memref<240x64xf32, #tpu.memory_space<vmem>>, vector<240x64xf32>,
    %c0_i32 = arith.constant 0 : i32
    %39 = arith.cmpi eq, %arg1, %c0_i32 : i32
    %40 = arith.extui %39 : i1 to i32
    %c0_i32_30 = arith.constant 0 : i32
    %41 = arith.cmpi ne, %40, %c0_i32_30 : i32
    scf.if %41 {
      %cst_62 = arith.constant 0.000000e+00 : f32
      %79 = vector.broadcast %cst_62 : f32 to vector<24x64xf32>
      %c0_63 = arith.constant 0 : index
      %c0_64 = arith.constant 0 : index
      %80 = vector.load %arg9[%c0_63, %c0_64] : memref<240x64xf32, #tpu.memory_space<vmem>>, vector<24x64xf32>
      tpu.vector_store %arg9[%c0_63, %c0_64], %79 {strides = array<i32>} : memref<240x64xf32, #tpu.memory_space<vmem>>, vector<24x64xf32>,
    } else {
    }
    %c1_i32_31 = arith.constant 1 : i32
    %42 = arith.cmpi eq, %arg1, %c1_i32_31 : i32
    %43 = arith.extui %42 : i1 to i32
    %c0_i32_32 = arith.constant 0 : i32
    %44 = arith.cmpi ne, %43, %c0_i32_32 : i32
    scf.if %44 {
      %cst_62 = arith.constant 0.000000e+00 : f32
      %79 = vector.broadcast %cst_62 : f32 to vector<24x64xf32>
      %c216 = arith.constant 216 : index
      %c0_63 = arith.constant 0 : index
      %80 = vector.load %arg9[%c216, %c0_63] : memref<240x64xf32, #tpu.memory_space<vmem>>, vector<24x64xf32>
      tpu.vector_store %arg9[%c216, %c0_63], %79 {strides = array<i32>} : memref<240x64xf32, #tpu.memory_space<vmem>>, vector<24x64xf32>,
    } else {
    }
    %c0_33 = arith.constant 0 : index
    %c0_34 = arith.constant 0 : index
    %45 = vector.load %arg9[%c0_33, %c0_34] : memref<240x64xf32, #tpu.memory_space<vmem>>, vector<192x64xf32>
    %c191_i32 = arith.constant 191 : i32
    %46 = tpu.dynamic_rotate %45 by %c191_i32 dim 0 : vector<192x64xf32>, i32 -> vector<192x64xf32>
    %c190_i32 = arith.constant 190 : i32
    %47 = tpu.dynamic_rotate %45 by %c190_i32 dim 0 : vector<192x64xf32>, i32 -> vector<192x64xf32>
    %48 = tpu.concatenate %45, %46, %47 in 1 : vector<192x64xf32>, vector<192x64xf32>, vector<192x64xf32> -> vector<192x192xf32>
    %49 = arith.truncf %48 : vector<192x192xf32> to vector<192x192xbf16>
    %c0_35 = arith.constant 0 : index
    %c0_36 = arith.constant 0 : index
    %c0_37 = arith.constant 0 : index
    %50 = vector.load %arg6[%c0_35, %c0_36, %c0_37] : memref<3x192x64xbf16, #tpu.memory_space<vmem>>, vector<1x192x64xbf16>
    %51 = vector.shape_cast %50 : vector<1x192x64xbf16> to vector<192x64xbf16>
    %cst_38 = arith.constant dense<0.000000e+00> : vector<192x64xf32>
    %52 = tpu.matmul %49, %51, %cst_38 {dimension_numbers = #tpu.dot_dimension_numbers<[1], [0], [0], [1], [0, 0, 1, 1], [], []>} : vector<192x192xbf16>, vector<192x64xbf16>, vector<192x64xf32> -> vector<192x64xf32>
    %c24_39 = arith.constant 24 : index
    %c0_40 = arith.constant 0 : index
    %53 = vector.load %arg9[%c24_39, %c0_40] : memref<240x64xf32, #tpu.memory_space<vmem>>, vector<192x64xf32>
    %c191_i32_41 = arith.constant 191 : i32
    %54 = tpu.dynamic_rotate %53 by %c191_i32_41 dim 0 : vector<192x64xf32>, i32 -> vector<192x64xf32>
    %c190_i32_42 = arith.constant 190 : i32
    %55 = tpu.dynamic_rotate %53 by %c190_i32_42 dim 0 : vector<192x64xf32>, i32 -> vector<192x64xf32>
    %56 = tpu.concatenate %53, %54, %55 in 1 : vector<192x64xf32>, vector<192x64xf32>, vector<192x64xf32> -> vector<192x192xf32>
    %57 = arith.truncf %56 : vector<192x192xf32> to vector<192x192xbf16>
    %c1_43 = arith.constant 1 : index
    %c0_44 = arith.constant 0 : index
    %c0_45 = arith.constant 0 : index
    %58 = vector.load %arg6[%c1_43, %c0_44, %c0_45] : memref<3x192x64xbf16, #tpu.memory_space<vmem>>, vector<1x192x64xbf16>
    %59 = vector.shape_cast %58 : vector<1x192x64xbf16> to vector<192x64xbf16>
    %cst_46 = arith.constant dense<0.000000e+00> : vector<192x64xf32>
    %60 = tpu.matmul %57, %59, %cst_46 {dimension_numbers = #tpu.dot_dimension_numbers<[1], [0], [0], [1], [0, 0, 1, 1], [], []>} : vector<192x192xbf16>, vector<192x64xbf16>, vector<192x64xf32> -> vector<192x64xf32>
    %61 = arith.addf %52, %60 : vector<192x64xf32>
    %c48_47 = arith.constant 48 : index
    %c0_48 = arith.constant 0 : index
    %62 = vector.load %arg9[%c48_47, %c0_48] : memref<240x64xf32, #tpu.memory_space<vmem>>, vector<192x64xf32>
    %c191_i32_49 = arith.constant 191 : i32
    %63 = tpu.dynamic_rotate %62 by %c191_i32_49 dim 0 : vector<192x64xf32>, i32 -> vector<192x64xf32>
    %c190_i32_50 = arith.constant 190 : i32
    %64 = tpu.dynamic_rotate %62 by %c190_i32_50 dim 0 : vector<192x64xf32>, i32 -> vector<192x64xf32>
    %65 = tpu.concatenate %62, %63, %64 in 1 : vector<192x64xf32>, vector<192x64xf32>, vector<192x64xf32> -> vector<192x192xf32>
    %66 = arith.truncf %65 : vector<192x192xf32> to vector<192x192xbf16>
    %c2_51 = arith.constant 2 : index
    %c0_52 = arith.constant 0 : index
    %c0_53 = arith.constant 0 : index
    %67 = vector.load %arg6[%c2_51, %c0_52, %c0_53] : memref<3x192x64xbf16, #tpu.memory_space<vmem>>, vector<1x192x64xbf16>
    %68 = vector.shape_cast %67 : vector<1x192x64xbf16> to vector<192x64xbf16>
    %cst_54 = arith.constant dense<0.000000e+00> : vector<192x64xf32>
    %69 = tpu.matmul %66, %68, %cst_54 {dimension_numbers = #tpu.dot_dimension_numbers<[1], [0], [0], [1], [0, 0, 1, 1], [], []>} : vector<192x192xbf16>, vector<192x64xbf16>, vector<192x64xf32> -> vector<192x64xf32>
    %70 = arith.addf %61, %69 : vector<192x64xf32>
    %c48_55 = arith.constant 48 : index
    %c0_56 = arith.constant 0 : index
    %71 = vector.load %arg8[%c48_55, %c0_56] : memref<288x64xf32, #tpu.memory_space<vmem>>, vector<192x64xf32>
    %c191_i32_57 = arith.constant 191 : i32
    %72 = tpu.dynamic_rotate %71 by %c191_i32_57 dim 0 : vector<192x64xf32>, i32 -> vector<192x64xf32>
    %cst_58 = arith.constant 1.000000e-01 : f32
    %73 = vector.broadcast %cst_58 : f32 to vector<192x64xf32>
    %74 = arith.mulf %73, %70 : vector<192x64xf32>
    %75 = arith.addf %72, %74 : vector<192x64xf32>
    %c0_59 = arith.constant 0 : index
    %c0_60 = arith.constant 0 : index
    %c0_61 = arith.constant 0 : index
    %76 = vector.load %arg7[%c0_59, %c0_60, %c0_61] : memref<1x192x64xf32, #tpu.memory_space<vmem>>, vector<1x192x64xf32>
    %77 = vector.shape_cast %76 : vector<1x192x64xf32> to vector<192x64xf32>
    %78 = vector.shape_cast %75 : vector<192x64xf32> to vector<1x192x64xf32>
    tpu.vector_store %arg7[%c0_59, %c0_60, %c0_61], %78 {strides = array<i32>} : memref<1x192x64xf32, #tpu.memory_space<vmem>>, vector<1x192x64xf32>,
    return
  }
  func.func @transform_0(%arg0: i32, %arg1: i32) -> (i32, i32, i32) {
    %c0_i32 = arith.constant 0 : i32
    %c0_i32_0 = arith.constant 0 : i32
    return %arg0, %arg1, %c0_i32 : i32, i32, i32
  }
  func.func @transform_1(%arg0: i32, %arg1: i32) -> (i32, i32, i32) {
    %c1_i32 = arith.constant 1 : i32
    %0 = arith.addi %arg1, %c1_i32 : i32
    %c2_i32 = arith.constant 2 : i32
    %1 = arith.muli %0, %c2_i32 : i32
    %c0_i32 = arith.constant 0 : i32
    %c0_i32_0 = arith.constant 0 : i32
    return %arg0, %1, %c0_i32 : i32, i32, i32
  }
  func.func @transform_2(%arg0: i32, %arg1: i32) -> (i32, i32) {
    %c0_i32 = arith.constant 0 : i32
    %c0_i32_0 = arith.constant 0 : i32
    %c0_i32_1 = arith.constant 0 : i32
    return %c0_i32, %c0_i32_0 : i32, i32
  }
  func.func @transform_3(%arg0: i32, %arg1: i32) -> (i32, i32, i32) {
    %c0_i32 = arith.constant 0 : i32
    %c0_i32_0 = arith.constant 0 : i32
    %c0_i32_1 = arith.constant 0 : i32
    %c0_i32_2 = arith.constant 0 : i32
    return %c0_i32, %c0_i32_0, %c0_i32_1 : i32, i32, i32
  }
  func.func @transform_4(%arg0: i32, %arg1: i32) -> (i32, i32, i32) {
    %c0_i32 = arith.constant 0 : i32
    %c0_i32_0 = arith.constant 0 : i32
    %c0_i32_1 = arith.constant 0 : i32
    %c0_i32_2 = arith.constant 0 : i32
    return %c0_i32, %c0_i32_0, %c0_i32_1 : i32, i32, i32
  }
  func.func @transform_5(%arg0: i32, %arg1: i32) -> (i32, i32, i32) {
    %c0_i32 = arith.constant 0 : i32
    %c0_i32_0 = arith.constant 0 : i32
    return %arg0, %arg1, %c0_i32 : i32, i32, i32
  }
}

</mosaic_0001>

<llo_original>
// kernel: tpu_custom_call.1
$region0: #{tpu_custom_call.1}
  #allocation0 [shape = 'u32[]', space=smem, size = 0x4, offset = 0x4, fixed_abs, tag = 'smem constant byte address 0x4 - core index']
  #allocation1 [shape = 'u32[144,128]{1,0:T(1,128)}', space=vmem, size = 0x12000, scoped, tag = 'internal scratch']
  #allocation2 [shape = 'f32[288,64]{1,0:T(8,128)}', space=vmem, size = 0x24000, scoped, tag = 'scratch operand']
  #allocation3 [shape = 'f32[240,64]{1,0:T(8,128)}', space=vmem, size = 0x1e000, scoped, tag = 'scratch operand']
  %s0 = inlined_call_operand.hbm [shape: f32[2,480,64], index: 0, kind: input, shape index: {}]
  %s1 = inlined_call_operand.hbm [shape: f32[2,480,64], index: 1, kind: input, shape index: {}]
  %s2 = inlined_call_operand.hbm [shape: f32[240,1], index: 2, kind: input, shape index: {}]
  %s3 = inlined_call_operand.hbm [shape: bf16[3,192,64], index: 3, kind: input, shape index: {}]
  %s4 = inlined_call_operand.hbm [shape: bf16[3,192,64], index: 4, kind: input, shape index: {}]
  %s5 = inlined_call_operand.hbm [shape: f32[2,384,64], index: 5, kind: output, shape index: {}]
  %s6 = sld [smem:[#allocation0]]
  $region81: #{tpu_custom_call.1} parent=0
    _
  %s8 = ssub.s32 1, %s6
  %s9 = scalar_select 0, %s8, %s6
  $region1: #{tpu_custom_call.1} parent=0
    #allocation4 [shape = 'u8[196608]{0}', space=vmem, size = 0x30000, scoped, tag = 'input window, operand 0']
    #allocation5 [shape = 's32[2]{0}', space=sflag, size = 0x8, scoped, tag = 'scoped memory for tpu_custom_call.1']
    #allocation6 [shape = 's32[2]{0}', space=sflag, size = 0x8, scoped, tag = 'scoped memory for tpu_custom_call.1']
    #allocation7 [shape = 'u8[98304]{0}', space=vmem, size = 0x18000, scoped, tag = 'input window, operand 1']
    #allocation8 [shape = 's32[2]{0}', space=sflag, size = 0x8, scoped, tag = 'scoped memory for tpu_custom_call.1']
    #allocation9 [shape = 'u8[122880]{0}', space=vmem, size = 0x1e000, scoped, tag = 'input window, operand 2, single buffered']
    #allocation10 [shape = 'u8[147456]{0}', space=vmem, size = 0x24000, scoped, tag = 'input window, operand 3, single buffered']
    #allocation11 [shape = 's32[1]{0}', space=sflag, size = 0x4, scoped, tag = 'scoped memory for tpu_custom_call.1']
    #allocation12 [shape = 'u8[147456]{0}', space=vmem, size = 0x24000, scoped, tag = 'input window, operand 4, single buffered']
    #allocation13 [shape = 'u8[196608]{0}', space=vmem, size = 0x30000, scoped, tag = 'output window, operand 0']
    %10 = vsyncpa [#allocation5], 0
    %s11 = scalar_lea.sflag [#allocation5], 1
    %12 = vsyncpa %s11, 0
    %13 = vsyncpa [#allocation8], 0
    %s14 = scalar_lea.sflag [#allocation8], 1
    %15 = vsyncpa %s14, 0
    %16 = vsyncpa [#allocation11], 0
    %17 = vsyncpa [#allocation6], 0
    %s18 = scalar_lea.sflag [#allocation6], 1
    %19 = vsyncpa %s18, 0
    loop: start=0, step=1, limit=6
    $region2: #{tpu_custom_call.1} parent=1 // loop_pre_header
      _
    $region3: #{tpu_custom_call.1} parent=1 // loop_header
      %s21 = sphi 0, %s25
      %p22 = scmp.ge.s32.totalorder %s21, 6
      %s28 = sphi 0, %s40
      %s29 = sphi 0, %s36
      %s30 = sphi 0, %s28
      %s31 = sphi 0, %s29
      %s32 = sphi 0, %s30
      %s33 = sphi 0, %s31
      %s45 = sphi 0, %s47
      %s48 = sphi 0, %s45
      %s49 = sphi 0, %s48
      %s65 = sphi 0, %s49
      %s77 = sphi 0, %s79
      %s80 = sphi 0, %s77
      %s81 = sphi 0, %s80
      %s97 = sphi 0, %s81
      %s101 = sphi 0, %s101
      %s103 = sphi 0, %s101
      %s104 = sphi 0, %s103
      %s118 = sphi 0, %s104
      %s122 = sphi 0, %s122
      %s124 = sphi 0, %s122
      %s125 = sphi 0, %s124
      %s139 = sphi 0, %s125
      %s143 = sphi 0, %s143
      %s145 = sphi 0, %s143
      %s146 = sphi 0, %s145
      %s160 = sphi 0, %s146
      %s168 = sphi 0, %s170
      %s171 = sphi 0, %s168
      %s172 = sphi 0, %s171
      %s188 = sphi 0, %s172
    $region4: #{tpu_custom_call.1} parent=1 // loop_header_branch
      %24 = sbr.rel (%p22) target = $region8
    $region5: #{tpu_custom_call.1} parent=1 // loop_body
      %s26 = ssub.s32 %s21, 1
      %s27 = ssub.s32 %s21, 2
      %s34 = sadd.s32 1, %s29
      %p35 = scmp.ge.s32.totalorder %s34, 2
      %s36 = scalar_select %p35, 0, %s34
      %s37 = sadd.s32 1, %s28
      %s38 = scalar_select %p35, %s37, %s28
      %p39 = scmp.ge.s32.totalorder %s38, 2
      %s40 = scalar_select %p39, 0, %s38
      %s41 = ssub.s32 %s28, %s40
      %s42 = ssub.s32 %s29, %s36
      %s43 = sor.u32 %s41, %s42
      %p44 = scmp.eq.s32.totalorder %s43, 0
      %s46 = sadd.s32 %s45, 1
      %s47 = scalar_select %p44, %s45, %s46
      %p50 = pneg %p44
      %p51 = scmp.eq.s32.totalorder %s21, 3
      %p52 = por %p50, %p51
      %p53 = scmp.ne.s32.totalorder %s45, %s48
      %p54 = scmp.eq.s32.totalorder %s21, 0
      %p55 = por %p53, %p54
      %p56 = scmp.ne.s32.totalorder %s45, %s48
      %p57 = scmp.eq.s32.totalorder %s26, 3
      %p58 = por %p56, %p57
      %p59 = scmp.ne.s32.totalorder %s48, %s49
      %p60 = scmp.eq.s32.totalorder %s26, 0
      %p61 = por %p59, %p60
      %p62 = scmp.ne.s32.totalorder %s48, %s49
      %p63 = scmp.eq.s32.totalorder %s27, 3
      %p64 = por %p62, %p63
      %p66 = scmp.ne.s32.totalorder %s49, %s65
      %p67 = scmp.eq.s32.totalorder %s27, 0
      %p68 = por %p66, %p67
      %s69 = sadd.s32 %s29, 1
      %s70 = smul.u32 %s69, 2
      %s71 = sadd.s32 %s36, 1
      %s72 = smul.u32 %s71, 2
      %s73 = ssub.s32 %s28, %s40
      %s74 = ssub.s32 %s70, %s72
      %s75 = sor.u32 %s73, %s74
      %p76 = scmp.eq.s32.totalorder %s75, 0
      %s78 = sadd.s32 %s77, 1
      %s79 = scalar_select %p76, %s77, %s78
      %p82 = pneg %p76
      %p83 = scmp.eq.s32.totalorder %s21, 3
      %p84 = por %p82, %p83
      %p85 = scmp.ne.s32.totalorder %s77, %s80
      %p86 = scmp.eq.s32.totalorder %s21, 0
      %p87 = por %p85, %p86
      %p88 = scmp.ne.s32.totalorder %s77, %s80
      %p89 = scmp.eq.s32.totalorder %s26, 3
      %p90 = por %p88, %p89
      %p91 = scmp.ne.s32.totalorder %s80, %s81
      %p92 = scmp.eq.s32.totalorder %s26, 0
      %p93 = por %p91, %p92
      %p94 = scmp.ne.s32.totalorder %s80, %s81
      %p95 = scmp.eq.s32.totalorder %s27, 3
      %p96 = por %p94, %p95
      %p98 = scmp.ne.s32.totalorder %s81, %s97
      %p99 = scmp.eq.s32.totalorder %s27, 0
      %p100 = por %p98, %p99
      %s102 = sadd.s32 %s101, 1
      %p105 = scmp.eq.s32.totalorder %s21, 3
      %p106 = scmp.ne.s32.totalorder %s101, %s103
      %p107 = scmp.eq.s32.totalorder %s21, 0
      %p108 = por %p106, %p107
      %p109 = scmp.ne.s32.totalorder %s101, %s103
      %p110 = scmp.eq.s32.totalorder %s26, 3
      %p111 = por %p109, %p110
      %p112 = scmp.ne.s32.totalorder %s103, %s104
      %p113 = scmp.eq.s32.totalorder %s26, 0
      %p114 = por %p112, %p113
      %p115 = scmp.ne.s32.totalorder %s103, %s104
      %p116 = scmp.eq.s32.totalorder %s27, 3
      %p117 = por %p115, %p116
      %p119 = scmp.ne.s32.totalorder %s104, %s118
      %p120 = scmp.eq.s32.totalorder %s27, 0
      %p121 = por %p119, %p120
      %s123 = sadd.s32 %s122, 1
      %p126 = scmp.eq.s32.totalorder %s21, 3
      %p127 = scmp.ne.s32.totalorder %s122, %s124
      %p128 = scmp.eq.s32.totalorder %s21, 0
      %p129 = por %p127, %p128
      %p130 = scmp.ne.s32.totalorder %s122, %s124
      %p131 = scmp.eq.s32.totalorder %s26, 3
      %p132 = por %p130, %p131
      %p133 = scmp.ne.s32.totalorder %s124, %s125
      %p134 = scmp.eq.s32.totalorder %s26, 0
      %p135 = por %p133, %p134
      %p136 = scmp.ne.s32.totalorder %s124, %s125
      %p137 = scmp.eq.s32.totalorder %s27, 3
      %p138 = por %p136, %p137
      %p140 = scmp.ne.s32.totalorder %s125, %s139
      %p141 = scmp.eq.s32.totalorder %s27, 0
      %p142 = por %p140, %p141
      %s144 = sadd.s32 %s143, 1
      %p147 = scmp.eq.s32.totalorder %s21, 3
      %p148 = scmp.ne.s32.totalorder %s143, %s145
      %p149 = scmp.eq.s32.totalorder %s21, 0
      %p150 = por %p148, %p149
      %p151 = scmp.ne.s32.totalorder %s143, %s145
      %p152 = scmp.eq.s32.totalorder %s26, 3
      %p153 = por %p151, %p152
      %p154 = scmp.ne.s32.totalorder %s145, %s146
      %p155 = scmp.eq.s32.totalorder %s26, 0
      %p156 = por %p154, %p155
      %p157 = scmp.ne.s32.totalorder %s145, %s146
      %p158 = scmp.eq.s32.totalorder %s27, 3
      %p159 = por %p157, %p158
      %p161 = scmp.ne.s32.totalorder %s146, %s160
      %p162 = scmp.eq.s32.totalorder %s27, 0
      %p163 = por %p161, %p162
      %s164 = ssub.s32 %s28, %s40
      %s165 = ssub.s32 %s29, %s36
      %s166 = sor.u32 %s164, %s165
      %p167 = scmp.eq.s32.totalorder %s166, 0
      %s169 = sadd.s32 %s168, 1
      %s170 = scalar_select %p167, %s168, %s169
      %p173 = pneg %p167
      %p174 = scmp.eq.s32.totalorder %s21, 3
      %p175 = por %p173, %p174
      %p176 = scmp.ne.s32.totalorder %s168, %s171
      %p177 = scmp.eq.s32.totalorder %s21, 0
      %p178 = por %p176, %p177
      %p179 = scmp.ne.s32.totalorder %s168, %s171
      %p180 = scmp.eq.s32.totalorder %s26, 3
      %p181 = por %p179, %p180
      %p182 = scmp.ne.s32.totalorder %s171, %s172
      %p183 = scmp.eq.s32.totalorder %s26, 0
      %p184 = por %p182, %p183
      %p185 = scmp.ne.s32.totalorder %s171, %s172
      %p186 = scmp.eq.s32.totalorder %s27, 3
      %p187 = por %p185, %p186
      %p189 = scmp.ne.s32.totalorder %s172, %s188
      %p190 = scmp.eq.s32.totalorder %s27, 0
      %p191 = por %p189, %p190
      %p192 = scmp.le.s32.totalorder 1, %s21
      %p193 = scmp.lt.s32.totalorder %s21, 5
      %p194 = pnand %p192, %p193
      %p195 = pneg %p194
      // Predicated region
      $region9: #{tpu_custom_call.1} parent=5 // pred_check
        _
      $region10: #{tpu_custom_call.1} parent=5 // pred_check_branch
        %197 = sbr.rel (%p194) target = $region12
      $region11: #{tpu_custom_call.1} parent=5 // pred_region
        %s198 = ssub.s32 %s21, 1
        // Predicated region
        $region13: #{tpu_custom_call.1} parent=11 // pred_check
          %p199 = pneg %p114
        $region14: #{tpu_custom_call.1} parent=11 // pred_check_branch
          %201 = sbr.rel (%p199) target = $region16
        $region15: #{tpu_custom_call.1} parent=11 // pred_region
          %s203 = ssub.s32 3840, 3840
          %204 = vsyncadd [#allocation8], %s203
          %s205 = sshll.u32 [#allocation9], 4
          %s206 = int_to_ptr.vmem [resolvable:$true] %s205
          %211 = dma.hbm_to_vmem [thread:$0]  %s2, 3840, %s206, [#allocation8], 128, 128, 8
        $region16: #{tpu_custom_call.1} parent=11 // pred_fallthru
          _
        // Predicated region
        $region17: #{tpu_custom_call.1} parent=11 // pred_check
          %p212 = pneg %p135
        $region18: #{tpu_custom_call.1} parent=11 // pred_check_branch
          %214 = sbr.rel (%p212) target = $region20
        $region19: #{tpu_custom_call.1} parent=11 // pred_region
          %s216 = ssub.s32 4608, 4608
          %217 = vsyncadd [#allocation11], %s216
          %s218 = sshll.u32 [#allocation10], 4
          %s219 = int_to_ptr.vmem [resolvable:$true] %s218
          %224 = dma.hbm_to_vmem [thread:$0]  %s3, 4608, %s219, [#allocation11], 64, 64, 4
        $region20: #{tpu_custom_call.1} parent=11 // pred_fallthru
          _
        // Predicated region
        $region21: #{tpu_custom_call.1} parent=11 // pred_check
          %p225 = pneg %p156
        $region22: #{tpu_custom_call.1} parent=11 // pred_check_branch
          %227 = sbr.rel (%p225) target = $region24
        $region23: #{tpu_custom_call.1} parent=11 // pred_region
          %s229 = ssub.s32 4608, 4608
          %230 = vsyncadd [#allocation11], %s229
          %s231 = sshll.u32 [#allocation12], 4
          %s232 = int_to_ptr.vmem [resolvable:$true] %s231
          %237 = dma.hbm_to_vmem [thread:$0]  %s4, 4608, %s232, [#allocation11], 64, 64, 4
        $region24: #{tpu_custom_call.1} parent=11 // pred_fallthru
          _
      $region12: #{tpu_custom_call.1} parent=5 // pred_fallthru
        _
      %p238 = scmp.lt.s32.totalorder %s21, 4
      // Predicated region
      $region25: #{tpu_custom_call.1} parent=5 // pred_check
        %p239 = pneg %p238
      $region26: #{tpu_custom_call.1} parent=5 // pred_check_branch
        %241 = sbr.rel (%p239) target = $region28
      $region27: #{tpu_custom_call.1} parent=5 // pred_region
        // Predicated region
        $region29: #{tpu_custom_call.1} parent=27 // pred_check
          %p242 = pneg %p55
        $region30: #{tpu_custom_call.1} parent=27 // pred_check_branch
          %244 = sbr.rel (%p242) target = $region32
        $region31: #{tpu_custom_call.1} parent=27 // pred_region
          %s245 = sand.u32 %s45, 1
          %s246 = scalar_lea.sflag [#allocation5], %s245
          %s247 = sand.u32 %s45, 1
          %s248 = smul.addr %s247, 192
          %s249 = scalar_lea.vmem [#allocation4], %s248
          %s250 = smul.u32 24, %s29
          %s251 = ssub.s32 60, %s250
          %p252 = scmp.lt.s32.totalorder %s251, 24
          %s253 = scalar_select %p252, %s251, 24
          %s254 = smul.u32 128, %s253
          %s256 = ssub.s32 3072, %s254
          %257 = vsyncadd %s246, %s256
          %p258 = scmp.ne.s32.totalorder 0, %s254
          %s259 = smul.addr %s28, 60
          %s260 = sadd.s32 %s250, %s259
          %s261 = smul.addr %s260, 128
          %s262 = scalar_lea.hbm %s0, %s261
          %s263 = smul.u32 8, %s253
          %s264 = sshll.u32 %s249, 4
          %s265 = int_to_ptr.vmem [resolvable:$true] %s264
          %s266 = sshll.u32 %s263, 4
          %270 = dma.hbm_to_vmem [thread:$0]  (%p258), %s262, %s266, %s265, %s246, 128, 128, 8
        $region32: #{tpu_custom_call.1} parent=27 // pred_fallthru
          _
        // Predicated region
        $region33: #{tpu_custom_call.1} parent=27 // pred_check
          %p271 = pneg %p87
        $region34: #{tpu_custom_call.1} parent=27 // pred_check_branch
          %273 = sbr.rel (%p271) target = $region36
        $region35: #{tpu_custom_call.1} parent=27 // pred_region
          %s274 = sand.u32 %s21, 1
          %s275 = scalar_lea.sflag [#allocation8], %s274
          %s276 = sand.u32 %s77, 1
          %s277 = smul.addr %s276, 96
          %s278 = scalar_lea.vmem [#allocation7], %s277
          %s279 = sadd.s32 %s29, 1
          %s280 = smul.u32 %s279, 2
          %s281 = smul.u32 12, %s280
          %s283 = ssub.s32 1536, 1536
          %284 = vsyncadd %s275, %s283
          %s285 = smul.addr %s28, 60
          %s286 = sadd.s32 %s281, %s285
          %s287 = smul.addr %s286, 128
          %s288 = scalar_lea.hbm %s1, %s287
          %s289 = sshll.u32 %s278, 4
          %s290 = int_to_ptr.vmem [resolvable:$true] %s289
          %295 = dma.hbm_to_vmem [thread:$0]  %s288, 1536, %s290, %s275, 128, 128, 8
        $region36: #{tpu_custom_call.1} parent=27 // pred_fallthru
          _
      $region28: #{tpu_custom_call.1} parent=5 // pred_fallthru
        _
      %p296 = scmp.le.s32.totalorder 1, %s21
      %p297 = scmp.lt.s32.totalorder %s21, 5
      %p298 = pnand %p296, %p297
      %p299 = pneg %p298
      // Predicated region
      $region37: #{tpu_custom_call.1} parent=5 // pred_check
        _
      $region38: #{tpu_custom_call.1} parent=5 // pred_check_branch
        %301 = sbr.rel (%p298) target = $region40
      $region39: #{tpu_custom_call.1} parent=5 // pred_region
        %s302 = ssub.s32 %s21, 1
        %s303 = sand.u32 %s48, 1
        %s304 = scalar_lea.sflag [#allocation5], %s303
        %s305 = sand.u32 %s48, 1
        %s306 = smul.addr %s305, 192
        %s307 = scalar_lea.vmem [#allocation4], %s306
        // Predicated region
        $region41: #{tpu_custom_call.1} parent=39 // pred_check
          %p308 = pneg %p61
        $region42: #{tpu_custom_call.1} parent=39 // pred_check_branch
          %310 = sbr.rel (%p308) target = $region44
        $region43: #{tpu_custom_call.1} parent=39 // pred_region
          %311 = dma.done %s304, 3072
        $region44: #{tpu_custom_call.1} parent=39 // pred_fallthru
          _
        %s312 = sand.u32 %s26, 1
        %s313 = scalar_lea.sflag [#allocation8], %s312
        %s314 = sand.u32 %s80, 1
        %s315 = smul.addr %s314, 96
        %s316 = scalar_lea.vmem [#allocation7], %s315
        // Predicated region
        $region45: #{tpu_custom_call.1} parent=39 // pred_check
          %p317 = pneg %p93
        $region46: #{tpu_custom_call.1} parent=39 // pred_check_branch
          %319 = sbr.rel (%p317) target = $region48
        $region47: #{tpu_custom_call.1} parent=39 // pred_region
          %320 = dma.done %s313, 1536
        $region48: #{tpu_custom_call.1} parent=39 // pred_fallthru
          _
        // Predicated region
        $region49: #{tpu_custom_call.1} parent=39 // pred_check
          %p321 = pneg %p114
        $region50: #{tpu_custom_call.1} parent=39 // pred_check_branch
          %323 = sbr.rel (%p321) target = $region52
        $region51: #{tpu_custom_call.1} parent=39 // pred_region
          %324 = dma.done [#allocation8], 3840
        $region52: #{tpu_custom_call.1} parent=39 // pred_fallthru
          _
        // Predicated region
        $region53: #{tpu_custom_call.1} parent=39 // pred_check
          %p325 = pneg %p135
        $region54: #{tpu_custom_call.1} parent=39 // pred_check_branch
          %327 = sbr.rel (%p325) target = $region56
        $region55: #{tpu_custom_call.1} parent=39 // pred_region
          %328 = dma.done [#allocation11], 4608
        $region56: #{tpu_custom_call.1} parent=39 // pred_fallthru
          _
        // Predicated region
        $region57: #{tpu_custom_call.1} parent=39 // pred_check
          %p329 = pneg %p156
        $region58: #{tpu_custom_call.1} parent=39 // pred_check_branch
          %331 = sbr.rel (%p329) target = $region60
        $region59: #{tpu_custom_call.1} parent=39 // pred_region
          %332 = dma.done [#allocation11], 4608
        $region60: #{tpu_custom_call.1} parent=39 // pred_fallthru
          _
        %s333 = sand.u32 %s48, 1
        %s334 = scalar_lea.sflag [#allocation5], %s333
        %s335 = sand.u32 %s48, 1
        %s336 = smul.addr %s335, 192
        %s337 = scalar_lea.vmem [#allocation4], %s336
        %p338 = pneg %p61
        %p339 = pneg %p58
        %s340 = sand.u32 %s26, 1
        %s341 = scalar_lea.sflag [#allocation8], %s340
        %s342 = sand.u32 %s80, 1
        %s343 = smul.addr %s342, 96
        %s344 = scalar_lea.vmem [#allocation7], %s343
        %p345 = pneg %p93
        %p346 = pneg %p90
        %p347 = pneg %p114
        %p348 = pneg %p111
        %p349 = pneg %p135
        %p350 = pneg %p132
        %p351 = pneg %p156
        %p352 = pneg %p153
        %p353 = pneg %p184
        %p354 = pneg %p181
        %s355 = sand.u32 %s171, 1
        %s356 = scalar_lea.sflag [#allocation6], %s355
        %s357 = sand.u32 %s171, 1
        %s358 = smul.addr %s357, 192
        %s359 = scalar_lea.vmem [#allocation13], %s358
        %s360 = smul.u32 24, %s31
        %s361 = ssub.s32 60, %s360
        %p362 = scmp.lt.s32.totalorder %s361, 24
        %s363 = scalar_select %p362, %s361, 24
        %s364 = smul.u32 128, %s363
        %s365 = sadd.s32 %s31, 1
        %s366 = smul.u32 %s365, 2
        %s367 = smul.u32 12, %s366
        %s368 = smul.u32 24, %s31
        %v370 = vld [vmem:[%s307] sm:$0xff]
        %v371 = vld [vmem:[%s307 + $0x8] sm:$0xff]
        %v372 = vld [vmem:[%s307 + $0x10] sm:$0xff]
        %v373 = vld [vmem:[%s307 + $0x18] sm:$0xff]
        %v374 = vld [vmem:[%s307 + $0x20] sm:$0xff]
        %v375 = vld [vmem:[%s307 + $0x28] sm:$0xff]
        %v376 = vld [vmem:[%s307 + $0x30] sm:$0xff]
        %v377 = vld [vmem:[%s307 + $0x38] sm:$0xff]
        %v378 = vld [vmem:[%s307 + $0x40] sm:$0xff]
        %v379 = vld [vmem:[%s307 + $0x48] sm:$0xff]
        %v380 = vld [vmem:[%s307 + $0x50] sm:$0xff]
        %v381 = vld [vmem:[%s307 + $0x58] sm:$0xff]
        %v382 = vld [vmem:[%s307 + $0x60] sm:$0xff]
        %v383 = vld [vmem:[%s307 + $0x68] sm:$0xff]
        %v384 = vld [vmem:[%s307 + $0x70] sm:$0xff]
        %v385 = vld [vmem:[%s307 + $0x78] sm:$0xff]
        %v386 = vld [vmem:[%s307 + $0x80] sm:$0xff]
        %v387 = vld [vmem:[%s307 + $0x88] sm:$0xff]
        %v388 = vld [vmem:[%s307 + $0x90] sm:$0xff]
        %v389 = vld [vmem:[%s307 + $0x98] sm:$0xff]
        %v390 = vld [vmem:[%s307 + $0xa0] sm:$0xff]
        %v391 = vld [vmem:[%s307 + $0xa8] sm:$0xff]
        %v392 = vld [vmem:[%s307 + $0xb0] sm:$0xff]
        %v393 = vld [vmem:[%s307 + $0xb8] sm:$0xff]
        %vm394 = vcmask 523264
        %395 = vst.msk [vmem:[#allocation2] sm:$0xff] %vm394, %v370
        %396 = vst.msk [vmem:[#allocation2 + $0x8] sm:$0xff] %vm394, %v371
        %397 = vst.msk [vmem:[#allocation2 + $0x10] sm:$0xff] %vm394, %v372
        %398 = vst.msk [vmem:[#allocation2 + $0x18] sm:$0xff] %vm394, %v373
        %399 = vst.msk [vmem:[#allocation2 + $0x20] sm:$0xff] %vm394, %v374
        %400 = vst.msk [vmem:[#allocation2 + $0x28] sm:$0xff] %vm394, %v375
        %401 = vst.msk [vmem:[#allocation2 + $0x30] sm:$0xff] %vm394, %v376
        %402 = vst.msk [vmem:[#allocation2 + $0x38] sm:$0xff] %vm394, %v377
        %403 = vst.msk [vmem:[#allocation2 + $0x40] sm:$0xff] %vm394, %v378
        %404 = vst.msk [vmem:[#allocation2 + $0x48] sm:$0xff] %vm394, %v379
        %405 = vst.msk [vmem:[#allocation2 + $0x50] sm:$0xff] %vm394, %v380
        %406 = vst.msk [vmem:[#allocation2 + $0x58] sm:$0xff] %vm394, %v381
        %407 = vst.msk [vmem:[#allocation2 + $0x60] sm:$0xff] %vm394, %v382
        %408 = vst.msk [vmem:[#allocation2 + $0x68] sm:$0xff] %vm394, %v383
        %409 = vst.msk [vmem:[#allocation2 + $0x70] sm:$0xff] %vm394, %v384
        %410 = vst.msk [vmem:[#allocation2 + $0x78] sm:$0xff] %vm394, %v385
        %411 = vst.msk [vmem:[#allocation2 + $0x80] sm:$0xff] %vm394, %v386
        %412 = vst.msk [vmem:[#allocation2 + $0x88] sm:$0xff] %vm394, %v387
        %413 = vst.msk [vmem:[#allocation2 + $0x90] sm:$0xff] %vm394, %v388
        %414 = vst.msk [vmem:[#allocation2 + $0x98] sm:$0xff] %vm394, %v389
        %415 = vst.msk [vmem:[#allocation2 + $0xa0] sm:$0xff] %vm394, %v390
        %416 = vst.msk [vmem:[#allocation2 + $0xa8] sm:$0xff] %vm394, %v391
        %417 = vst.msk [vmem:[#allocation2 + $0xb0] sm:$0xff] %vm394, %v392
        %418 = vst.msk [vmem:[#allocation2 + $0xb8] sm:$0xff] %vm394, %v393
        %v419 = vld [vmem:[%s316] sm:$0xff]
        %v420 = vld [vmem:[%s316 + $0x8] sm:$0xff]
        %v421 = vld [vmem:[%s316 + $0x10] sm:$0xff]
        %v422 = vld [vmem:[%s316 + $0x18] sm:$0xff]
        %v423 = vld [vmem:[%s316 + $0x20] sm:$0xff]
        %v424 = vld [vmem:[%s316 + $0x28] sm:$0xff]
        %v425 = vld [vmem:[%s316 + $0x30] sm:$0xff]
        %v426 = vld [vmem:[%s316 + $0x38] sm:$0xff]
        %v427 = vld [vmem:[%s316 + $0x40] sm:$0xff]
        %v428 = vld [vmem:[%s316 + $0x48] sm:$0xff]
        %v429 = vld [vmem:[%s316 + $0x50] sm:$0xff]
        %v430 = vld [vmem:[%s316 + $0x58] sm:$0xff]
        %431 = vst.msk [vmem:[#allocation2 + $0xc0] sm:$0xff] %vm394, %v419
        %432 = vst.msk [vmem:[#allocation2 + $0xc8] sm:$0xff] %vm394, %v420
        %433 = vst.msk [vmem:[#allocation2 + $0xd0] sm:$0xff] %vm394, %v421
        %434 = vst.msk [vmem:[#allocation2 + $0xd8] sm:$0xff] %vm394, %v422
        %435 = vst.msk [vmem:[#allocation2 + $0xe0] sm:$0xff] %vm394, %v423
        %436 = vst.msk [vmem:[#allocation2 + $0xe8] sm:$0xff] %vm394, %v424
        %437 = vst.msk [vmem:[#allocation2 + $0xf0] sm:$0xff] %vm394, %v425
        %438 = vst.msk [vmem:[#allocation2 + $0xf8] sm:$0xff] %vm394, %v426
        %439 = vst.msk [vmem:[#allocation2 + $0x100] sm:$0xff] %vm394, %v427
        %440 = vst.msk [vmem:[#allocation2 + $0x108] sm:$0xff] %vm394, %v428
        %441 = vst.msk [vmem:[#allocation2 + $0x110] sm:$0xff] %vm394, %v429
        %442 = vst.msk [vmem:[#allocation2 + $0x118] sm:$0xff] %vm394, %v430
        %v443 = vld [vmem:[#allocation2] sm:$0xff]
        %v444 = vld [vmem:[#allocation2 + $0x8] sm:$0xff]
        %v445 = vld [vmem:[#allocation2 + $0x10] sm:$0xff]
        %v446 = vld [vmem:[#allocation2 + $0x18] sm:$0xff]
        %v447 = vld [vmem:[#allocation2 + $0x20] sm:$0xff]
        %v448 = vld [vmem:[#allocation2 + $0x28] sm:$0xff]
        %v449 = vld [vmem:[#allocation2 + $0x30] sm:$0xff]
        %v450 = vld [vmem:[#allocation2 + $0x38] sm:$0xff]
        %v451 = vld [vmem:[#allocation2 + $0x40] sm:$0xff]
        %v452 = vld [vmem:[#allocation2 + $0x48] sm:$0xff]
        %v453 = vld [vmem:[#allocation2 + $0x50] sm:$0xff]
        %v454 = vld [vmem:[#allocation2 + $0x58] sm:$0xff]
        %v455 = vld [vmem:[#allocation2 + $0x60] sm:$0xff]
        %v456 = vld [vmem:[#allocation2 + $0x68] sm:$0xff]
        %v457 = vld [vmem:[#allocation2 + $0x70] sm:$0xff]
        %v458 = vld [vmem:[#allocation2 + $0x78] sm:$0xff]
        %v459 = vld [vmem:[#allocation2 + $0x80] sm:$0xff]
        %v460 = vld [vmem:[#allocation2 + $0x88] sm:$0xff]
        %v461 = vld [vmem:[#allocation2 + $0x90] sm:$0xff]
        %v462 = vld [vmem:[#allocation2 + $0x98] sm:$0xff]
        %v463 = vld [vmem:[#allocation2 + $0xa0] sm:$0xff]
        %v464 = vld [vmem:[#allocation2 + $0xa8] sm:$0xff]
        %v465 = vld [vmem:[#allocation2 + $0xb0] sm:$0xff]
        %v466 = vld [vmem:[#allocation2 + $0xb8] sm:$0xff]
        %v467 = vld [vmem:[#allocation2 + $0xc0] sm:$0xff]
        %v468 = vld [vmem:[#allocation2 + $0xc8] sm:$0xff]
        %v469 = vld [vmem:[#allocation2 + $0xd0] sm:$0xff]
        %v470 = vld [vmem:[#allocation2 + $0xd8] sm:$0xff]
        %v471 = vld [vmem:[#allocation2 + $0xe0] sm:$0xff]
        %v472 = vld [vmem:[#allocation2 + $0xe8] sm:$0xff]
        %v473 = vrot.slane %v443, 1
        %v474 = vrot.slane %v444, 1
        %v475 = vrot.slane %v445, 1
        %v476 = vrot.slane %v446, 1
        %v477 = vrot.slane %v447, 1
        %v478 = vrot.slane %v448, 1
        %v479 = vrot.slane %v449, 1
        %v480 = vrot.slane %v450, 1
        %v481 = vrot.slane %v451, 1
        %v482 = vrot.slane %v452, 1
        %v483 = vrot.slane %v453, 1
        %v484 = vrot.slane %v454, 1
        %v485 = vrot.slane %v455, 1
        %v486 = vrot.slane %v456, 1
        %v487 = vrot.slane %v457, 1
        %v488 = vrot.slane %v458, 1
        %v489 = vrot.slane %v459, 1
        %v490 = vrot.slane %v460, 1
        %v491 = vrot.slane %v461, 1
        %v492 = vrot.slane %v462, 1
        %v493 = vrot.slane %v463, 1
        %v494 = vrot.slane %v464, 1
        %v495 = vrot.slane %v465, 1
        %v496 = vrot.slane %v466, 1
        %v497 = vrot.slane %v467, 1
        %v498 = vrot.slane %v468, 1
        %v499 = vrot.slane %v469, 1
        %v500 = vrot.slane %v470, 1
        %v501 = vrot.slane %v471, 1
        %v502 = vrot.slane %v472, 1
        %v503 = vlaneseq
        %v504 = vshrl.u32 %v503, 7
        %vm505 = vcmp.lt.s32.totalorder %v504, 7
        %v506 = vsel %vm505, %v501, %v502
        %v507 = vsel %vm505, %v500, %v501
        %v508 = vsel %vm505, %v499, %v500
        %v509 = vsel %vm505, %v498, %v499
        %v510 = vsel %vm505, %v497, %v498
        %v511 = vsel %vm505, %v496, %v497
        %v512 = vsel %vm505, %v495, %v496
        %v513 = vsel %vm505, %v494, %v495
        %v514 = vsel %vm505, %v493, %v494
        %v515 = vsel %vm505, %v492, %v493
        %v516 = vsel %vm505, %v491, %v492
        %v517 = vsel %vm505, %v490, %v491
        %v518 = vsel %vm505, %v489, %v490
        %v519 = vsel %vm505, %v488, %v489
        %v520 = vsel %vm505, %v487, %v488
        %v521 = vsel %vm505, %v486, %v487
        %v522 = vsel %vm505, %v485, %v486
        %v523 = vsel %vm505, %v484, %v485
        %v524 = vsel %vm505, %v483, %v484
        %v525 = vsel %vm505, %v482, %v483
        %v526 = vsel %vm505, %v481, %v482
        %v527 = vsel %vm505, %v480, %v481
        %v528 = vsel %vm505, %v479, %v480
        %v529 = vsel %vm505, %v478, %v479
        %v530 = vsel %vm505, %v477, %v478
        %v531 = vsel %vm505, %v476, %v477
        %v532 = vsel %vm505, %v475, %v476
        %v533 = vsel %vm505, %v474, %v475
        %v534 = vsel %vm505, %v473, %v474
        %v535 = vsel %vm505, %v502, %v473
        %v536 = vrot.slane %v443, 2
        %v537 = vrot.slane %v444, 2
        %v538 = vrot.slane %v445, 2
        %v539 = vrot.slane %v446, 2
        %v540 = vrot.slane %v447, 2
        %v541 = vrot.slane %v448, 2
        %v542 = vrot.slane %v449, 2
        %v543 = vrot.slane %v450, 2
        %v544 = vrot.slane %v451, 2
        %v545 = vrot.slane %v452, 2
        %v546 = vrot.slane %v453, 2
        %v547 = vrot.slane %v454, 2
        %v548 = vrot.slane %v455, 2
        %v549 = vrot.slane %v456, 2
        %v550 = vrot.slane %v457, 2
        %v551 = vrot.slane %v458, 2
        %v552 = vrot.slane %v459, 2
        %v553 = vrot.slane %v460, 2
        %v554 = vrot.slane %v461, 2
        %v555 = vrot.slane %v462, 2
        %v556 = vrot.slane %v463, 2
        %v557 = vrot.slane %v464, 2
        %v558 = vrot.slane %v465, 2
        %v559 = vrot.slane %v466, 2
        %v560 = vrot.slane %v467, 2
        %v561 = vrot.slane %v468, 2
        %v562 = vrot.slane %v469, 2
        %v563 = vrot.slane %v470, 2
        %v564 = vrot.slane %v471, 2
        %v565 = vrot.slane %v472, 2
        %vm566 = vcmp.lt.s32.totalorder %v504, 6
        %v567 = vsel %vm566, %v564, %v565
        %v568 = vsel %vm566, %v563, %v564
        %v569 = vsel %vm566, %v562, %v563
        %v570 = vsel %vm566, %v561, %v562
        %v571 = vsel %vm566, %v560, %v561
        %v572 = vsel %vm566, %v559, %v560
        %v573 = vsel %vm566, %v558, %v559
        %v574 = vsel %vm566, %v557, %v558
        %v575 = vsel %vm566, %v556, %v557
        %v576 = vsel %vm566, %v555, %v556
        %v577 = vsel %vm566, %v554, %v555
        %v578 = vsel %vm566, %v553, %v554
        %v579 = vsel %vm566, %v552, %v553
        %v580 = vsel %vm566, %v551, %v552
        %v581 = vsel %vm566, %v550, %v551
        %v582 = vsel %vm566, %v549, %v550
        %v583 = vsel %vm566, %v548, %v549
        %v584 = vsel %vm566, %v547, %v548
        %v585 = vsel %vm566, %v546, %v547
        %v586 = vsel %vm566, %v545, %v546
        %v587 = vsel %vm566, %v544, %v545
        %v588 = vsel %vm566, %v543, %v544
        %v589 = vsel %vm566, %v542, %v543
        %v590 = vsel %vm566, %v541, %v542
        %v591 = vsel %vm566, %v540, %v541
        %v592 = vsel %vm566, %v539, %v540
        %v593 = vsel %vm566, %v538, %v539
        %v594 = vsel %vm566, %v537, %v538
        %v595 = vsel %vm566, %v536, %v537
        %v596 = vsel %vm566, %v565, %v536
        %627 = vrot.lane.b32.xlu0 %v534, 64
        %v628 = vpop.permute.xlu0 %627
        %629 = vrot.lane.b32.xlu0 %v533, 64
        %v630 = vpop.permute.xlu0 %629
        %631 = vrot.lane.b32.xlu0 %v532, 64
        %v632 = vpop.permute.xlu0 %631
        %633 = vrot.lane.b32.xlu0 %v531, 64
        %v634 = vpop.permute.xlu0 %633
        %635 = vrot.lane.b32.xlu0 %v530, 64
        %v636 = vpop.permute.xlu0 %635
        %637 = vrot.lane.b32.xlu0 %v529, 64
        %v638 = vpop.permute.xlu0 %637
        %639 = vrot.lane.b32.xlu0 %v528, 64
        %v640 = vpop.permute.xlu0 %639
        %641 = vrot.lane.b32.xlu0 %v527, 64
        %v642 = vpop.permute.xlu0 %641
        %643 = vrot.lane.b32.xlu0 %v526, 64
        %v644 = vpop.permute.xlu0 %643
        %645 = vrot.lane.b32.xlu0 %v525, 64
        %v646 = vpop.permute.xlu0 %645
        %647 = vrot.lane.b32.xlu0 %v524, 64
        %v648 = vpop.permute.xlu0 %647
        %649 = vrot.lane.b32.xlu0 %v523, 64
        %v650 = vpop.permute.xlu0 %649
        %651 = vrot.lane.b32.xlu0 %v522, 64
        %v652 = vpop.permute.xlu0 %651
        %653 = vrot.lane.b32.xlu0 %v521, 64
        %v654 = vpop.permute.xlu0 %653
        %655 = vrot.lane.b32.xlu0 %v520, 64
        %v656 = vpop.permute.xlu0 %655
        %657 = vrot.lane.b32.xlu0 %v519, 64
        %v658 = vpop.permute.xlu0 %657
        %659 = vrot.lane.b32.xlu0 %v518, 64
        %v660 = vpop.permute.xlu0 %659
        %661 = vrot.lane.b32.xlu0 %v517, 64
        %v662 = vpop.permute.xlu0 %661
        %663 = vrot.lane.b32.xlu0 %v516, 64
        %v664 = vpop.permute.xlu0 %663
        %665 = vrot.lane.b32.xlu0 %v515, 64
        %v666 = vpop.permute.xlu0 %665
        %667 = vrot.lane.b32.xlu0 %v514, 64
        %v668 = vpop.permute.xlu0 %667
        %669 = vrot.lane.b32.xlu0 %v513, 64
        %v670 = vpop.permute.xlu0 %669
        %671 = vrot.lane.b32.xlu0 %v512, 64
        %v672 = vpop.permute.xlu0 %671
        %673 = vrot.lane.b32.xlu0 %v511, 64
        %v674 = vpop.permute.xlu0 %673
        %675 = vrot.lane.b32.xlu0 %v510, 64
        %v676 = vpop.permute.xlu0 %675
        %677 = vrot.lane.b32.xlu0 %v509, 64
        %v678 = vpop.permute.xlu0 %677
        %679 = vrot.lane.b32.xlu0 %v508, 64
        %v680 = vpop.permute.xlu0 %679
        %681 = vrot.lane.b32.xlu0 %v507, 64
        %v682 = vpop.permute.xlu0 %681
        %683 = vrot.lane.b32.xlu0 %v506, 64
        %v684 = vpop.permute.xlu0 %683
        %685 = vrot.lane.b32.xlu0 %v535, 64
        %v686 = vpop.permute.xlu0 %685
        %v717 = vsel %vm394, %v443, %v628
        %v718 = vsel %vm394, %v444, %v630
        %v719 = vsel %vm394, %v445, %v632
        %v720 = vsel %vm394, %v446, %v634
        %v721 = vsel %vm394, %v447, %v636
        %v722 = vsel %vm394, %v448, %v638
        %v723 = vsel %vm394, %v449, %v640
        %v724 = vsel %vm394, %v450, %v642
        %v725 = vsel %vm394, %v451, %v644
        %v726 = vsel %vm394, %v452, %v646
        %v727 = vsel %vm394, %v453, %v648
        %v728 = vsel %vm394, %v454, %v650
        %v729 = vsel %vm394, %v455, %v652
        %v730 = vsel %vm394, %v456, %v654
        %v731 = vsel %vm394, %v457, %v656
        %v732 = vsel %vm394, %v458, %v658
        %v733 = vsel %vm394, %v459, %v660
        %v734 = vsel %vm394, %v460, %v662
        %v735 = vsel %vm394, %v461, %v664
        %v736 = vsel %vm394, %v462, %v666
        %v737 = vsel %vm394, %v463, %v668
        %v738 = vsel %vm394, %v464, %v670
        %v739 = vsel %vm394, %v465, %v672
        %v740 = vsel %vm394, %v466, %v674
        %v741 = vsel %vm394, %v467, %v676
        %v742 = vsel %vm394, %v468, %v678
        %v743 = vsel %vm394, %v469, %v680
        %v744 = vsel %vm394, %v470, %v682
        %v745 = vsel %vm394, %v471, %v684
        %v746 = vsel %vm394, %v472, %v686
        %v747 = vpack.c.bf16 %v718, %v717
        %v748 = vpack.c.bf16 %v594, %v595
        %v749 = vpack.c.bf16 %v720, %v719
        %v750 = vpack.c.bf16 %v592, %v593
        %v751 = vpack.c.bf16 %v722, %v721
        %v752 = vpack.c.bf16 %v590, %v591
        %v753 = vpack.c.bf16 %v724, %v723
        %v754 = vpack.c.bf16 %v588, %v589
        %v755 = vpack.c.bf16 %v726, %v725
        %v756 = vpack.c.bf16 %v586, %v587
        %v757 = vpack.c.bf16 %v728, %v727
        %v758 = vpack.c.bf16 %v584, %v585
        %v759 = vpack.c.bf16 %v730, %v729
        %v760 = vpack.c.bf16 %v582, %v583
        %v761 = vpack.c.bf16 %v732, %v731
        %v762 = vpack.c.bf16 %v580, %v581
        %v763 = vpack.c.bf16 %v734, %v733
        %v764 = vpack.c.bf16 %v578, %v579
        %v765 = vpack.c.bf16 %v736, %v735
        %v766 = vpack.c.bf16 %v576, %v577
        %v767 = vpack.c.bf16 %v738, %v737
        %v768 = vpack.c.bf16 %v574, %v575
        %v769 = vpack.c.bf16 %v740, %v739
        %v770 = vpack.c.bf16 %v572, %v573
        %v771 = vpack.c.bf16 %v742, %v741
        %v772 = vpack.c.bf16 %v570, %v571
        %v773 = vpack.c.bf16 %v744, %v743
        %v774 = vpack.c.bf16 %v568, %v569
        %v775 = vpack.c.bf16 %v746, %v745
        %v776 = vpack.c.bf16 %v596, %v567
        %v777 = vld [vmem:[#allocation10] sm:$0xf]
        %v778 = vld [vmem:[#allocation10 + $0x4] sm:$0xf]
        %v779 = vld [vmem:[#allocation10 + $0x8] sm:$0xf]
        %v780 = vld [vmem:[#allocation10 + $0xc] sm:$0xf]
        %v781 = vld [vmem:[#allocation10 + $0x10] sm:$0xf]
        %v782 = vld [vmem:[#allocation10 + $0x14] sm:$0xf]
        %v783 = vld [vmem:[#allocation10 + $0x18] sm:$0xf]
        %v784 = vld [vmem:[#allocation10 + $0x1c] sm:$0xf]
        %v785 = vld [vmem:[#allocation10 + $0x20] sm:$0xf]
        %v786 = vld [vmem:[#allocation10 + $0x24] sm:$0xf]
        %v787 = vld [vmem:[#allocation10 + $0x28] sm:$0xf]
        %v788 = vld [vmem:[#allocation10 + $0x2c] sm:$0xf]
        %v789 = vld [vmem:[#allocation10 + $0x30] sm:$0xf]
        %v790 = vld [vmem:[#allocation10 + $0x34] sm:$0xf]
        %v791 = vld [vmem:[#allocation10 + $0x38] sm:$0xf]
        %v792 = vld [vmem:[#allocation10 + $0x3c] sm:$0xf]
        %v793 = vld [vmem:[#allocation10 + $0x40] sm:$0xf]
        %v794 = vld [vmem:[#allocation10 + $0x44] sm:$0xf]
        %v795 = vld [vmem:[#allocation10 + $0x48] sm:$0xf]
        %v796 = vld [vmem:[#allocation10 + $0x4c] sm:$0xf]
        %v797 = vld [vmem:[#allocation10 + $0x50] sm:$0xf]
        %v798 = vld [vmem:[#allocation10 + $0x54] sm:$0xf]
        %v799 = vld [vmem:[#allocation10 + $0x58] sm:$0xf]
        %v800 = vld [vmem:[#allocation10 + $0x5c] sm:$0xf]
        %v801 = vld [vmem:[#allocation2 + $0x18] sm:$0xff]
        %v802 = vld [vmem:[#allocation2 + $0x20] sm:$0xff]
        %v803 = vld [vmem:[#allocation2 + $0x28] sm:$0xff]
        %v804 = vld [vmem:[#allocation2 + $0x30] sm:$0xff]
        %v805 = vld [vmem:[#allocation2 + $0x38] sm:$0xff]
        %v806 = vld [vmem:[#allocation2 + $0x40] sm:$0xff]
        %v807 = vld [vmem:[#allocation2 + $0x48] sm:$0xff]
        %v808 = vld [vmem:[#allocation2 + $0x50] sm:$0xff]
        %v809 = vld [vmem:[#allocation2 + $0x58] sm:$0xff]
        %v810 = vld [vmem:[#allocation2 + $0x60] sm:$0xff]
        %v811 = vld [vmem:[#allocation2 + $0x68] sm:$0xff]
        %v812 = vld [vmem:[#allocation2 + $0x70] sm:$0xff]
        %v813 = vld [vmem:[#allocation2 + $0x78] sm:$0xff]
        %v814 = vld [vmem:[#allocation2 + $0x80] sm:$0xff]
        %v815 = vld [vmem:[#allocation2 + $0x88] sm:$0xff]
        %v816 = vld [vmem:[#allocation2 + $0x90] sm:$0xff]
        %v817 = vld [vmem:[#allocation2 + $0x98] sm:$0xff]
        %v818 = vld [vmem:[#allocation2 + $0xa0] sm:$0xff]
        %v819 = vld [vmem:[#allocation2 + $0xa8] sm:$0xff]
        %v820 = vld [vmem:[#allocation2 + $0xb0] sm:$0xff]
        %v821 = vld [vmem:[#allocation2 + $0xb8] sm:$0xff]
        %v822 = vld [vmem:[#allocation2 + $0xc0] sm:$0xff]
        %v823 = vld [vmem:[#allocation2 + $0xc8] sm:$0xff]
        %v824 = vld [vmem:[#allocation2 + $0xd0] sm:$0xff]
        %v825 = vld [vmem:[#allocation2 + $0xd8] sm:$0xff]
        %v826 = vld [vmem:[#allocation2 + $0xe0] sm:$0xff]
        %v827 = vld [vmem:[#allocation2 + $0xe8] sm:$0xff]
        %v828 = vld [vmem:[#allocation2 + $0xf0] sm:$0xff]
        %v829 = vld [vmem:[#allocation2 + $0xf8] sm:$0xff]
        %v830 = vld [vmem:[#allocation2 + $0x100] sm:$0xff]
        %v831 = vrot.slane %v801, 1
        %v832 = vrot.slane %v802, 1
        %v833 = vrot.slane %v803, 1
        %v834 = vrot.slane %v804, 1
        %v835 = vrot.slane %v805, 1
        %v836 = vrot.slane %v806, 1
        %v837 = vrot.slane %v807, 1
        %v838 = vrot.slane %v808, 1
        %v839 = vrot.slane %v809, 1
        %v840 = vrot.slane %v810, 1
        %v841 = vrot.slane %v811, 1
        %v842 = vrot.slane %v812, 1
        %v843 = vrot.slane %v813, 1
        %v844 = vrot.slane %v814, 1
        %v845 = vrot.slane %v815, 1
        %v846 = vrot.slane %v816, 1
        %v847 = vrot.slane %v817, 1
        %v848 = vrot.slane %v818, 1
        %v849 = vrot.slane %v819, 1
        %v850 = vrot.slane %v820, 1
        %v851 = vrot.slane %v821, 1
        %v852 = vrot.slane %v822, 1
        %v853 = vrot.slane %v823, 1
        %v854 = vrot.slane %v824, 1
        %v855 = vrot.slane %v825, 1
        %v856 = vrot.slane %v826, 1
        %v857 = vrot.slane %v827, 1
        %v858 = vrot.slane %v828, 1
        %v859 = vrot.slane %v829, 1
        %v860 = vrot.slane %v830, 1
        %v861 = vsel %vm505, %v859, %v860
        %v862 = vsel %vm505, %v858, %v859
        %v863 = vsel %vm505, %v857, %v858
        %v864 = vsel %vm505, %v856, %v857
        %v865 = vsel %vm505, %v855, %v856
        %v866 = vsel %vm505, %v854, %v855
        %v867 = vsel %vm505, %v853, %v854
        %v868 = vsel %vm505, %v852, %v853
        %v869 = vsel %vm505, %v851, %v852
        %v870 = vsel %vm505, %v850, %v851
        %v871 = vsel %vm505, %v849, %v850
        %v872 = vsel %vm505, %v848, %v849
        %v873 = vsel %vm505, %v847, %v848
        %v874 = vsel %vm505, %v846, %v847
        %v875 = vsel %vm505, %v845, %v846
        %v876 = vsel %vm505, %v844, %v845
        %v877 = vsel %vm505, %v843, %v844
        %v878 = vsel %vm505, %v842, %v843
        %v879 = vsel %vm505, %v841, %v842
        %v880 = vsel %vm505, %v840, %v841
        %v881 = vsel %vm505, %v839, %v840
        %v882 = vsel %vm505, %v838, %v839
        %v883 = vsel %vm505, %v837, %v838
        %v884 = vsel %vm505, %v836, %v837
        %v885 = vsel %vm505, %v835, %v836
        %v886 = vsel %vm505, %v834, %v835
        %v887 = vsel %vm505, %v833, %v834
        %v888 = vsel %vm505, %v832, %v833
        %v889 = vsel %vm505, %v831, %v832
        %v890 = vsel %vm505, %v860, %v831
        %v891 = vrot.slane %v801, 2
        %v892 = vrot.slane %v802, 2
        %v893 = vrot.slane %v803, 2
        %v894 = vrot.slane %v804, 2
        %v895 = vrot.slane %v805, 2
        %v896 = vrot.slane %v806, 2
        %v897 = vrot.slane %v807, 2
        %v898 = vrot.slane %v808, 2
        %v899 = vrot.slane %v809, 2
        %v900 = vrot.slane %v810, 2
        %v901 = vrot.slane %v811, 2
        %v902 = vrot.slane %v812, 2
        %v903 = vrot.slane %v813, 2
        %v904 = vrot.slane %v814, 2
        %v905 = vrot.slane %v815, 2
        %v906 = vrot.slane %v816, 2
        %v907 = vrot.slane %v817, 2
        %v908 = vrot.slane %v818, 2
        %v909 = vrot.slane %v819, 2
        %v910 = vrot.slane %v820, 2
        %v911 = vrot.slane %v821, 2
        %v912 = vrot.slane %v822, 2
        %v913 = vrot.slane %v823, 2
        %v914 = vrot.slane %v824, 2
        %v915 = vrot.slane %v825, 2
        %v916 = vrot.slane %v826, 2
        %v917 = vrot.slane %v827, 2
        %v918 = vrot.slane %v828, 2
        %v919 = vrot.slane %v829, 2
        %v920 = vrot.slane %v830, 2
        %v921 = vsel %vm566, %v919, %v920
        %v922 = vsel %vm566, %v918, %v919
        %v923 = vsel %vm566, %v917, %v918
        %v924 = vsel %vm566, %v916, %v917
        %v925 = vsel %vm566, %v915, %v916
        %v926 = vsel %vm566, %v914, %v915
        %v927 = vsel %vm566, %v913, %v914
        %v928 = vsel %vm566, %v912, %v913
        %v929 = vsel %vm566, %v911, %v912
        %v930 = vsel %vm566, %v910, %v911
        %v931 = vsel %vm566, %v909, %v910
        %v932 = vsel %vm566, %v908, %v909
        %v933 = vsel %vm566, %v907, %v908
        %v934 = vsel %vm566, %v906, %v907
        %v935 = vsel %vm566, %v905, %v906
        %v936 = vsel %vm566, %v904, %v905
        %v937 = vsel %vm566, %v903, %v904
        %v938 = vsel %vm566, %v902, %v903
        %v939 = vsel %vm566, %v901, %v902
        %v940 = vsel %vm566, %v900, %v901
        %v941 = vsel %vm566, %v899, %v900
        %v942 = vsel %vm566, %v898, %v899
        %v943 = vsel %vm566, %v897, %v898
        %v944 = vsel %vm566, %v896, %v897
        %v945 = vsel %vm566, %v895, %v896
        %v946 = vsel %vm566, %v894, %v895
        %v947 = vsel %vm566, %v893, %v894
        %v948 = vsel %vm566, %v892, %v893
        %v949 = vsel %vm566, %v891, %v892
        %v950 = vsel %vm566, %v920, %v891
        %981 = vrot.lane.b32.xlu0 %v889, 64
        %v982 = vpop.permute.xlu0 %981
        %983 = vrot.lane.b32.xlu0 %v888, 64
        %v984 = vpop.permute.xlu0 %983
        %985 = vrot.lane.b32.xlu0 %v887, 64
        %v986 = vpop.permute.xlu0 %985
        %987 = vrot.lane.b32.xlu0 %v886, 64
        %v988 = vpop.permute.xlu0 %987
        %989 = vrot.lane.b32.xlu0 %v885, 64
        %v990 = vpop.permute.xlu0 %989
        %991 = vrot.lane.b32.xlu0 %v884, 64
        %v992 = vpop.permute.xlu0 %991
        %993 = vrot.lane.b32.xlu0 %v883, 64
        %v994 = vpop.permute.xlu0 %993
        %995 = vrot.lane.b32.xlu0 %v882, 64
        %v996 = vpop.permute.xlu0 %995
        %997 = vrot.lane.b32.xlu0 %v881, 64
        %v998 = vpop.permute.xlu0 %997
        %999 = vrot.lane.b32.xlu0 %v880, 64
        %v1000 = vpop.permute.xlu0 %999
        %1001 = vrot.lane.b32.xlu0 %v879, 64
        %v1002 = vpop.permute.xlu0 %1001
        %1003 = vrot.lane.b32.xlu0 %v878, 64
        %v1004 = vpop.permute.xlu0 %1003
        %1005 = vrot.lane.b32.xlu0 %v877, 64
        %v1006 = vpop.permute.xlu0 %1005
        %1007 = vrot.lane.b32.xlu0 %v876, 64
        %v1008 = vpop.permute.xlu0 %1007
        %1009 = vrot.lane.b32.xlu0 %v875, 64
        %v1010 = vpop.permute.xlu0 %1009
        %1011 = vrot.lane.b32.xlu0 %v874, 64
        %v1012 = vpop.permute.xlu0 %1011
        %1013 = vrot.lane.b32.xlu0 %v873, 64
        %v1014 = vpop.permute.xlu0 %1013
        %1015 = vrot.lane.b32.xlu0 %v872, 64
        %v1016 = vpop.permute.xlu0 %1015
        %1017 = vrot.lane.b32.xlu0 %v871, 64
        %v1018 = vpop.permute.xlu0 %1017
        %1019 = vrot.lane.b32.xlu0 %v870, 64
        %v1020 = vpop.permute.xlu0 %1019
        %1021 = vrot.lane.b32.xlu0 %v869, 64
        %v1022 = vpop.permute.xlu0 %1021
        %1023 = vrot.lane.b32.xlu0 %v868, 64
        %v1024 = vpop.permute.xlu0 %1023
        %1025 = vrot.lane.b32.xlu0 %v867, 64
        %v1026 = vpop.permute.xlu0 %1025
        %1027 = vrot.lane.b32.xlu0 %v866, 64
        %v1028 = vpop.permute.xlu0 %1027
        %1029 = vrot.lane.b32.xlu0 %v865, 64
        %v1030 = vpop.permute.xlu0 %1029
        %1031 = vrot.lane.b32.xlu0 %v864, 64
        %v1032 = vpop.permute.xlu0 %1031
        %1033 = vrot.lane.b32.xlu0 %v863, 64
        %v1034 = vpop.permute.xlu0 %1033
        %1035 = vrot.lane.b32.xlu0 %v862, 64
        %v1036 = vpop.permute.xlu0 %1035
        %1037 = vrot.lane.b32.xlu0 %v861, 64
        %v1038 = vpop.permute.xlu0 %1037
        %1039 = vrot.lane.b32.xlu0 %v890, 64
        %v1040 = vpop.permute.xlu0 %1039
        %v1071 = vsel %vm394, %v801, %v982
        %v1072 = vsel %vm394, %v802, %v984
        %v1073 = vsel %vm394, %v803, %v986
        %v1074 = vsel %vm394, %v804, %v988
        %v1075 = vsel %vm394, %v805, %v990
        %v1076 = vsel %vm394, %v806, %v992
        %v1077 = vsel %vm394, %v807, %v994
        %v1078 = vsel %vm394, %v808, %v996
        %v1079 = vsel %vm394, %v809, %v998
        %v1080 = vsel %vm394, %v810, %v1000
        %v1081 = vsel %vm394, %v811, %v1002
        %v1082 = vsel %vm394, %v812, %v1004
        %v1083 = vsel %vm394, %v813, %v1006
        %v1084 = vsel %vm394, %v814, %v1008
        %v1085 = vsel %vm394, %v815, %v1010
        %v1086 = vsel %vm394, %v816, %v1012
        %v1087 = vsel %vm394, %v817, %v1014
        %v1088 = vsel %vm394, %v818, %v1016
        %v1089 = vsel %vm394, %v819, %v1018
        %v1090 = vsel %vm394, %v820, %v1020
        %v1091 = vsel %vm394, %v821, %v1022
        %v1092 = vsel %vm394, %v822, %v1024
        %v1093 = vsel %vm394, %v823, %v1026
        %v1094 = vsel %vm394, %v824, %v1028
        %v1095 = vsel %vm394, %v825, %v1030
        %v1096 = vsel %vm394, %v826, %v1032
        %v1097 = vsel %vm394, %v827, %v1034
        %v1098 = vsel %vm394, %v828, %v1036
        %v1099 = vsel %vm394, %v829, %v1038
        %v1100 = vsel %vm394, %v830, %v1040
        %v1101 = vpack.c.bf16 %v1072, %v1071
        %v1102 = vpack.c.bf16 %v948, %v949
        %v1103 = vpack.c.bf16 %v1074, %v1073
        %v1104 = vpack.c.bf16 %v946, %v947
        %v1105 = vpack.c.bf16 %v1076, %v1075
        %v1106 = vpack.c.bf16 %v944, %v945
        %v1107 = vpack.c.bf16 %v1078, %v1077
        %v1108 = vpack.c.bf16 %v942, %v943
        %v1109 = vpack.c.bf16 %v1080, %v1079
        %v1110 = vpack.c.bf16 %v940, %v941
        %v1111 = vpack.c.bf16 %v1082, %v1081
        %v1112 = vpack.c.bf16 %v938, %v939
        %v1113 = vpack.c.bf16 %v1084, %v1083
        %v1114 = vpack.c.bf16 %v936, %v937
        %v1115 = vpack.c.bf16 %v1086, %v1085
        %v1116 = vpack.c.bf16 %v934, %v935
        %v1117 = vpack.c.bf16 %v1088, %v1087
        %v1118 = vpack.c.bf16 %v932, %v933
        %v1119 = vpack.c.bf16 %v1090, %v1089
        %v1120 = vpack.c.bf16 %v930, %v931
        %v1121 = vpack.c.bf16 %v1092, %v1091
        %v1122 = vpack.c.bf16 %v928, %v929
        %v1123 = vpack.c.bf16 %v1094, %v1093
        %v1124 = vpack.c.bf16 %v926, %v927
        %v1125 = vpack.c.bf16 %v1096, %v1095
        %v1126 = vpack.c.bf16 %v924, %v925
        %v1127 = vpack.c.bf16 %v1098, %v1097
        %v1128 = vpack.c.bf16 %v922, %v923
        %v1129 = vpack.c.bf16 %v1100, %v1099
        %v1130 = vpack.c.bf16 %v950, %v921
        %s1131 = scalar_lea.vmem [#allocation10], 96
        %v1132 = vld [vmem:[%s1131] sm:$0xf]
        %v1133 = vld [vmem:[%s1131 + $0x4] sm:$0xf]
        %v1134 = vld [vmem:[%s1131 + $0x8] sm:$0xf]
        %v1135 = vld [vmem:[%s1131 + $0xc] sm:$0xf]
        %v1136 = vld [vmem:[%s1131 + $0x10] sm:$0xf]
        %v1137 = vld [vmem:[%s1131 + $0x14] sm:$0xf]
        %v1138 = vld [vmem:[%s1131 + $0x18] sm:$0xf]
        %v1139 = vld [vmem:[%s1131 + $0x1c] sm:$0xf]
        %v1140 = vld [vmem:[%s1131 + $0x20] sm:$0xf]
        %v1141 = vld [vmem:[%s1131 + $0x24] sm:$0xf]
        %v1142 = vld [vmem:[%s1131 + $0x28] sm:$0xf]
        %v1143 = vld [vmem:[%s1131 + $0x2c] sm:$0xf]
        %v1144 = vld [vmem:[%s1131 + $0x30] sm:$0xf]
        %v1145 = vld [vmem:[%s1131 + $0x34] sm:$0xf]
        %v1146 = vld [vmem:[%s1131 + $0x38] sm:$0xf]
        %v1147 = vld [vmem:[%s1131 + $0x3c] sm:$0xf]
        %v1148 = vld [vmem:[%s1131 + $0x40] sm:$0xf]
        %v1149 = vld [vmem:[%s1131 + $0x44] sm:$0xf]
        %v1150 = vld [vmem:[%s1131 + $0x48] sm:$0xf]
        %v1151 = vld [vmem:[%s1131 + $0x4c] sm:$0xf]
        %v1152 = vld [vmem:[%s1131 + $0x50] sm:$0xf]
        %v1153 = vld [vmem:[%s1131 + $0x54] sm:$0xf]
        %v1154 = vld [vmem:[%s1131 + $0x58] sm:$0xf]
        %v1155 = vld [vmem:[%s1131 + $0x5c] sm:$0xf]
        %v1180 = vunpack.c.l.b16 %v1132
        %v1181 = vunpack.c.l.b16 %v1133
        %v1182 = vunpack.c.l.b16 %v1134
        %v1183 = vunpack.c.l.b16 %v1135
        %v1184 = vunpack.c.l.b16 %v1136
        %v1185 = vunpack.c.l.b16 %v1137
        %v1186 = vunpack.c.l.b16 %v1138
        %v1187 = vunpack.c.l.b16 %v1139
        %v1188 = vunpack.c.l.b16 %v1140
        %v1189 = vunpack.c.l.b16 %v1141
        %v1190 = vunpack.c.l.b16 %v1142
        %v1191 = vunpack.c.l.b16 %v1143
        %v1192 = vunpack.c.l.b16 %v1144
        %v1193 = vunpack.c.l.b16 %v1145
        %v1194 = vunpack.c.l.b16 %v1146
        %v1195 = vunpack.c.l.b16 %v1147
        %v1196 = vunpack.c.l.b16 %v1148
        %v1197 = vunpack.c.l.b16 %v1149
        %v1198 = vunpack.c.l.b16 %v1150
        %v1199 = vunpack.c.l.b16 %v1151
        %v1200 = vunpack.c.l.b16 %v1152
        %v1201 = vunpack.c.l.b16 %v1153
        %v1202 = vunpack.c.l.b16 %v1154
        %v1203 = vunpack.c.l.b16 %v1155
        %v1204 = vpack.c.b16 %v1181, %v1180
        %v1205 = vpack.c.b16 %v1183, %v1182
        %v1206 = vpack.c.b16 %v1185, %v1184
        %v1207 = vpack.c.b16 %v1187, %v1186
        %v1208 = vpack.c.b16 %v1189, %v1188
        %v1209 = vpack.c.b16 %v1191, %v1190
        %v1210 = vpack.c.b16 %v1193, %v1192
        %v1211 = vpack.c.b16 %v1195, %v1194
        %v1212 = vpack.c.b16 %v1197, %v1196
        %v1213 = vpack.c.b16 %v1199, %v1198
        %v1214 = vpack.c.b16 %v1201, %v1200
        %v1215 = vpack.c.b16 %v1203, %v1202
        %v1229 = vsel %vm394, %v1102, 0
        %v1232 = vsel %vm394, %v1104, 0
        %v1235 = vsel %vm394, %v1106, 0
        %v1238 = vsel %vm394, %v1108, 0
        %v1241 = vsel %vm394, %v1110, 0
        %v1244 = vsel %vm394, %v1112, 0
        %v1247 = vsel %vm394, %v1114, 0
        %v1250 = vsel %vm394, %v1116, 0
        %v1253 = vsel %vm394, %v1118, 0
        %v1256 = vsel %vm394, %v1120, 0
        %v1259 = vsel %vm394, %v1122, 0
        %v1262 = vsel %vm394, %v1124, 0
        %v1265 = vsel %vm394, %v1126, 0
        %v1268 = vsel %vm394, %v1128, 0
        %v1271 = vsel %vm394, %v1130, 0
        %1273 = vmatprep.subr.bf16.mxu0 0
        %1274 = vmatpush1.bf16.msra.mxu0 %v1204
        %1275 = vmatprep.subr.bf16.mxu0 0
        %1276 = vmatpush1.bf16.msra.mxu0 %v1205
        %1277 = vmatprep.subr.bf16.mxu0 0
        %1278 = vmatpush1.bf16.msra.mxu0 %v1206
        %1279 = vmatprep.subr.bf16.mxu0 0
        %1280 = vmatpush1.bf16.msra.mxu0 %v1207
        %1281 = vmatprep.subr.bf16.mxu0 0
        %1282 = vmatpush1.bf16.msra.mxu0 %v1208
        %1283 = vmatprep.subr.bf16.mxu0 0
        %1284 = vmatpush1.bf16.msra.mxu0 %v1209
        %1285 = vmatprep.subr.bf16.mxu0 0
        %1286 = vmatpush1.bf16.msra.mxu0 %v1210
        %1287 = vmatprep.subr.bf16.mxu0 0
        %1288 = vmatpush1.bf16.msra.mxu0 %v1211
        %1289 = vmatprep.subr.bf16.mxu0 0
        %1290 = vmatpush1.bf16.msra.mxu0 %v1212
        %1291 = vmatprep.subr.bf16.mxu0 0
        %1292 = vmatpush1.bf16.msra.mxu0 %v1213
        %1293 = vmatprep.subr.bf16.mxu0 0
        %1294 = vmatpush1.bf16.msra.mxu0 %v1214
        %1295 = vmatprep.subr.bf16.mxu0 0
        %1296 = vmatpush1.bf16.msra.mxu0 %v1215
        %1297 = vmatprep.subr.bf16.mxu0 0
        %1298 = vmatpush1.bf16.msra.mxu0 0
        %1299 = vmatprep.subr.bf16.mxu0 0
        %1300 = vmatpush1.bf16.msra.mxu0 0
        %1301 = vmatprep.subr.bf16.mxu0 0
        %1302 = vmatpush1.bf16.msra.mxu0 0
        %1303 = vmatprep.subr.bf16.mxu0 0
        %1304 = vmatpush1.bf16.msra.mxu0 0
        %1305 = vmatprep.mubr.bf16.mxu0 %v1229
        %1306 = vmatmul.mubr.bf16.gmra.mrb[0].mxu0 %v1101
        %v1307 = vpop.f32.mrb[0].mxu0
        %v1308 = vadd.f32 0.0, %v1307
        %v1309 = vpop.f32.mrb[0].mxu0
        %v1310 = vpop.f32.mrb[0].mxu0
        %v1311 = vadd.f32 0.0, %v1310
        %v1312 = vpop.f32.mrb[0].mxu0
        %1313 = vmatprep.mubr.bf16.mxu0 %v1232
        %1314 = vmatmul.mubr.bf16.gmra.mrb[0].mxu0 %v1103
        %v1315 = vpop.f32.mrb[0].mxu0
        %v1316 = vadd.f32 0.0, %v1315
        %v1317 = vpop.f32.mrb[0].mxu0
        %v1318 = vpop.f32.mrb[0].mxu0
        %v1319 = vadd.f32 0.0, %v1318
        %v1320 = vpop.f32.mrb[0].mxu0
        %1321 = vmatprep.mubr.bf16.mxu0 %v1235
        %1322 = vmatmul.mubr.bf16.gmra.mrb[0].mxu0 %v1105
        %v1323 = vpop.f32.mrb[0].mxu0
        %v1324 = vadd.f32 0.0, %v1323
        %v1325 = vpop.f32.mrb[0].mxu0
        %v1326 = vpop.f32.mrb[0].mxu0
        %v1327 = vadd.f32 0.0, %v1326
        %v1328 = vpop.f32.mrb[0].mxu0
        %1329 = vmatprep.mubr.bf16.mxu0 %v1238
        %1330 = vmatmul.mubr.bf16.gmra.mrb[0].mxu0 %v1107
        %v1331 = vpop.f32.mrb[0].mxu0
        %v1332 = vadd.f32 0.0, %v1331
        %v1333 = vpop.f32.mrb[0].mxu0
        %v1334 = vpop.f32.mrb[0].mxu0
        %v1335 = vadd.f32 0.0, %v1334
        %v1336 = vpop.f32.mrb[0].mxu0
        %1337 = vmatprep.mubr.bf16.mxu0 %v1241
        %1338 = vmatmul.mubr.bf16.gmra.mrb[0].mxu0 %v1109
        %v1339 = vpop.f32.mrb[0].mxu0
        %v1340 = vadd.f32 0.0, %v1339
        %v1341 = vpop.f32.mrb[0].mxu0
        %v1342 = vpop.f32.mrb[0].mxu0
        %v1343 = vadd.f32 0.0, %v1342
        %v1344 = vpop.f32.mrb[0].mxu0
        %1345 = vmatprep.mubr.bf16.mxu0 %v1244
        %1346 = vmatmul.mubr.bf16.gmra.mrb[0].mxu0 %v1111
        %v1347 = vpop.f32.mrb[0].mxu0
        %v1348 = vadd.f32 0.0, %v1347
        %v1349 = vpop.f32.mrb[0].mxu0
        %v1350 = vpop.f32.mrb[0].mxu0
        %v1351 = vadd.f32 0.0, %v1350
        %v1352 = vpop.f32.mrb[0].mxu0
        %1353 = vmatprep.mubr.bf16.mxu0 %v1247
        %1354 = vmatmul.mubr.bf16.gmra.mrb[0].mxu0 %v1113
        %v1355 = vpop.f32.mrb[0].mxu0
        %v1356 = vadd.f32 0.0, %v1355
        %v1357 = vpop.f32.mrb[0].mxu0
        %v1358 = vpop.f32.mrb[0].mxu0
        %v1359 = vadd.f32 0.0, %v1358
        %v1360 = vpop.f32.mrb[0].mxu0
        %1361 = vmatprep.mubr.bf16.mxu0 %v1250
        %1362 = vmatmul.mubr.bf16.gmra.mrb[0].mxu0 %v1115
        %v1363 = vpop.f32.mrb[0].mxu0
        %v1364 = vadd.f32 0.0, %v1363
        %v1365 = vpop.f32.mrb[0].mxu0
        %v1366 = vpop.f32.mrb[0].mxu0
        %v1367 = vadd.f32 0.0, %v1366
        %v1368 = vpop.f32.mrb[0].mxu0
        %1369 = vmatprep.mubr.bf16.mxu0 %v1253
        %1370 = vmatmul.mubr.bf16.gmra.mrb[0].mxu0 %v1117
        %v1371 = vpop.f32.mrb[0].mxu0
        %v1372 = vadd.f32 0.0, %v1371
        %v1373 = vpop.f32.mrb[0].mxu0
        %v1374 = vpop.f32.mrb[0].mxu0
        %v1375 = vadd.f32 0.0, %v1374
        %v1376 = vpop.f32.mrb[0].mxu0
        %1377 = vmatprep.mubr.bf16.mxu0 %v1256
        %1378 = vmatmul.mubr.bf16.gmra.mrb[0].mxu0 %v1119
        %v1379 = vpop.f32.mrb[0].mxu0
        %v1380 = vadd.f32 0.0, %v1379
        %v1381 = vpop.f32.mrb[0].mxu0
        %v1382 = vpop.f32.mrb[0].mxu0
        %v1383 = vadd.f32 0.0, %v1382
        %v1384 = vpop.f32.mrb[0].mxu0
        %1385 = vmatprep.mubr.bf16.mxu0 %v1259
        %1386 = vmatmul.mubr.bf16.gmra.mrb[0].mxu0 %v1121
        %v1387 = vpop.f32.mrb[0].mxu0
        %v1388 = vadd.f32 0.0, %v1387
        %v1389 = vpop.f32.mrb[0].mxu0
        %v1390 = vpop.f32.mrb[0].mxu0
        %v1391 = vadd.f32 0.0, %v1390
        %v1392 = vpop.f32.mrb[0].mxu0
        %1393 = vmatprep.mubr.bf16.mxu0 %v1262
        %1394 = vmatmul.mubr.bf16.gmra.mrb[0].mxu0 %v1123
        %v1395 = vpop.f32.mrb[0].mxu0
        %v1396 = vadd.f32 0.0, %v1395
        %v1397 = vpop.f32.mrb[0].mxu0
        %v1398 = vpop.f32.mrb[0].mxu0
        %v1399 = vadd.f32 0.0, %v1398
        %v1400 = vpop.f32.mrb[0].mxu0
        %1401 = vmatprep.mubr.bf16.mxu0 %v1265
        %1402 = vmatmul.mubr.bf16.gmra.mrb[0].mxu0 %v1125
        %v1403 = vpop.f32.mrb[0].mxu0
        %v1404 = vadd.f32 0.0, %v1403
        %v1405 = vpop.f32.mrb[0].mxu0
        %v1406 = vpop.f32.mrb[0].mxu0
        %v1407 = vadd.f32 0.0, %v1406
        %v1408 = vpop.f32.mrb[0].mxu0
        %1409 = vmatprep.mubr.bf16.mxu0 %v1268
        %1410 = vmatmul.mubr.bf16.gmra.mrb[0].mxu0 %v1127
        %v1411 = vpop.f32.mrb[0].mxu0
        %v1412 = vadd.f32 0.0, %v1411
        %v1413 = vpop.f32.mrb[0].mxu0
        %v1414 = vpop.f32.mrb[0].mxu0
        %v1415 = vadd.f32 0.0, %v1414
        %v1416 = vpop.f32.mrb[0].mxu0
        %1417 = vmatprep.mubr.bf16.mxu0 %v1271
        %1418 = vmatmul.mubr.bf16.gmra.mrb[0].mxu0 %v1129
        %v1419 = vpop.f32.mrb[0].mxu0
        %v1420 = vadd.f32 0.0, %v1419
        %v1421 = vpop.f32.mrb[0].mxu0
        %v1422 = vpop.f32.mrb[0].mxu0
        %v1423 = vadd.f32 0.0, %v1422
        %v1424 = vpop.f32.mrb[0].mxu0
        %1425 = vdwg.mxu0
        %v1450 = vunpack.c.l.b16 %v777
        %v1451 = vunpack.c.l.b16 %v778
        %v1452 = vunpack.c.l.b16 %v779
        %v1453 = vunpack.c.l.b16 %v780
        %v1454 = vunpack.c.l.b16 %v781
        %v1455 = vunpack.c.l.b16 %v782
        %v1456 = vunpack.c.l.b16 %v783
        %v1457 = vunpack.c.l.b16 %v784
        %v1458 = vunpack.c.l.b16 %v785
        %v1459 = vunpack.c.l.b16 %v786
        %v1460 = vunpack.c.l.b16 %v787
        %v1461 = vunpack.c.l.b16 %v788
        %v1462 = vunpack.c.l.b16 %v789
        %v1463 = vunpack.c.l.b16 %v790
        %v1464 = vunpack.c.l.b16 %v791
        %v1465 = vunpack.c.l.b16 %v792
        %v1466 = vunpack.c.l.b16 %v793
        %v1467 = vunpack.c.l.b16 %v794
        %v1468 = vunpack.c.l.b16 %v795
        %v1469 = vunpack.c.l.b16 %v796
        %v1470 = vunpack.c.l.b16 %v797
        %v1471 = vunpack.c.l.b16 %v798
        %v1472 = vunpack.c.l.b16 %v799
        %v1473 = vunpack.c.l.b16 %v800
        %v1474 = vpack.c.b16 %v1451, %v1450
        %v1475 = vpack.c.b16 %v1453, %v1452
        %v1476 = vpack.c.b16 %v1455, %v1454
        %v1477 = vpack.c.b16 %v1457, %v1456
        %v1478 = vpack.c.b16 %v1459, %v1458
        %v1479 = vpack.c.b16 %v1461, %v1460
        %v1480 = vpack.c.b16 %v1463, %v1462
        %v1481 = vpack.c.b16 %v1465, %v1464
        %v1482 = vpack.c.b16 %v1467, %v1466
        %v1483 = vpack.c.b16 %v1469, %v1468
        %v1484 = vpack.c.b16 %v1471, %v1470
        %v1485 = vpack.c.b16 %v1473, %v1472
        %v1499 = vsel %vm394, %v748, 0
        %v1502 = vsel %vm394, %v750, 0
        %v1505 = vsel %vm394, %v752, 0
        %v1508 = vsel %vm394, %v754, 0
        %v1511 = vsel %vm394, %v756, 0
        %v1514 = vsel %vm394, %v758, 0
        %v1517 = vsel %vm394, %v760, 0
        %v1520 = vsel %vm394, %v762, 0
        %v1523 = vsel %vm394, %v764, 0
        %v1526 = vsel %vm394, %v766, 0
        %v1529 = vsel %vm394, %v768, 0
        %v1532 = vsel %vm394, %v770, 0
        %v1535 = vsel %vm394, %v772, 0
        %v1538 = vsel %vm394, %v774, 0
        %v1541 = vsel %vm394, %v776, 0
        %1543 = vmatprep.subr.bf16.mxu0 0
        %1544 = vmatpush1.bf16.msra.mxu0 %v1474
        %1545 = vmatprep.subr.bf16.mxu0 0
        %1546 = vmatpush1.bf16.msra.mxu0 %v1475
        %1547 = vmatprep.subr.bf16.mxu0 0
        %1548 = vmatpush1.bf16.msra.mxu0 %v1476
        %1549 = vmatprep.subr.bf16.mxu0 0
        %1550 = vmatpush1.bf16.msra.mxu0 %v1477
        %1551 = vmatprep.subr.bf16.mxu0 0
        %1552 = vmatpush1.bf16.msra.mxu0 %v1478
        %1553 = vmatprep.subr.bf16.mxu0 0
        %1554 = vmatpush1.bf16.msra.mxu0 %v1479
        %1555 = vmatprep.subr.bf16.mxu0 0
        %1556 = vmatpush1.bf16.msra.mxu0 %v1480
        %1557 = vmatprep.subr.bf16.mxu0 0
        %1558 = vmatpush1.bf16.msra.mxu0 %v1481
        %1559 = vmatprep.subr.bf16.mxu0 0
        %1560 = vmatpush1.bf16.msra.mxu0 %v1482
        %1561 = vmatprep.subr.bf16.mxu0 0
        %1562 = vmatpush1.bf16.msra.mxu0 %v1483
        %1563 = vmatprep.subr.bf16.mxu0 0
        %1564 = vmatpush1.bf16.msra.mxu0 %v1484
        %1565 = vmatprep.subr.bf16.mxu0 0
        %1566 = vmatpush1.bf16.msra.mxu0 %v1485
        %1567 = vmatprep.subr.bf16.mxu0 0
        %1568 = vmatpush1.bf16.msra.mxu0 0
        %1569 = vmatprep.subr.bf16.mxu0 0
        %1570 = vmatpush1.bf16.msra.mxu0 0
        %1571 = vmatprep.subr.bf16.mxu0 0
        %1572 = vmatpush1.bf16.msra.mxu0 0
        %1573 = vmatprep.subr.bf16.mxu0 0
        %1574 = vmatpush1.bf16.msra.mxu0 0
        %1575 = vmatprep.mubr.bf16.mxu0 %v1499
        %1576 = vmatmul.mubr.bf16.gmra.mrb[0].mxu0 %v747
        %v1577 = vpop.f32.mrb[0].mxu0
        %v1578 = vadd.f32 %v1308, %v1577
        %v1579 = vpop.f32.mrb[0].mxu0
        %v1580 = vpop.f32.mrb[0].mxu0
        %v1581 = vadd.f32 %v1311, %v1580
        %v1582 = vpop.f32.mrb[0].mxu0
        %1583 = vmatprep.mubr.bf16.mxu0 %v1502
        %1584 = vmatmul.mubr.bf16.gmra.mrb[0].mxu0 %v749
        %v1585 = vpop.f32.mrb[0].mxu0
        %v1586 = vadd.f32 %v1316, %v1585
        %v1587 = vpop.f32.mrb[0].mxu0
        %v1588 = vpop.f32.mrb[0].mxu0
        %v1589 = vadd.f32 %v1319, %v1588
        %v1590 = vpop.f32.mrb[0].mxu0
        %1591 = vmatprep.mubr.bf16.mxu0 %v1505
        %1592 = vmatmul.mubr.bf16.gmra.mrb[0].mxu0 %v751
        %v1593 = vpop.f32.mrb[0].mxu0
        %v1594 = vadd.f32 %v1324, %v1593
        %v1595 = vpop.f32.mrb[0].mxu0
        %v1596 = vpop.f32.mrb[0].mxu0
        %v1597 = vadd.f32 %v1327, %v1596
        %v1598 = vpop.f32.mrb[0].mxu0
        %1599 = vmatprep.mubr.bf16.mxu0 %v1508
        %1600 = vmatmul.mubr.bf16.gmra.mrb[0].mxu0 %v753
        %v1601 = vpop.f32.mrb[0].mxu0
        %v1602 = vadd.f32 %v1332, %v1601
        %v1603 = vpop.f32.mrb[0].mxu0
        %v1604 = vpop.f32.mrb[0].mxu0
        %v1605 = vadd.f32 %v1335, %v1604
        %v1606 = vpop.f32.mrb[0].mxu0
        %1607 = vmatprep.mubr.bf16.mxu0 %v1511
        %1608 = vmatmul.mubr.bf16.gmra.mrb[0].mxu0 %v755
        %v1609 = vpop.f32.mrb[0].mxu0
        %v1610 = vadd.f32 %v1340, %v1609
        %v1611 = vpop.f32.mrb[0].mxu0
        %v1612 = vpop.f32.mrb[0].mxu0
        %v1613 = vadd.f32 %v1343, %v1612
        %v1614 = vpop.f32.mrb[0].mxu0
        %1615 = vmatprep.mubr.bf16.mxu0 %v1514
        %1616 = vmatmul.mubr.bf16.gmra.mrb[0].mxu0 %v757
        %v1617 = vpop.f32.mrb[0].mxu0
        %v1618 = vadd.f32 %v1348, %v1617
        %v1619 = vpop.f32.mrb[0].mxu0
        %v1620 = vpop.f32.mrb[0].mxu0
        %v1621 = vadd.f32 %v1351, %v1620
        %v1622 = vpop.f32.mrb[0].mxu0
        %1623 = vmatprep.mubr.bf16.mxu0 %v1517
        %1624 = vmatmul.mubr.bf16.gmra.mrb[0].mxu0 %v759
        %v1625 = vpop.f32.mrb[0].mxu0
        %v1626 = vadd.f32 %v1356, %v1625
        %v1627 = vpop.f32.mrb[0].mxu0
        %v1628 = vpop.f32.mrb[0].mxu0
        %v1629 = vadd.f32 %v1359, %v1628
        %v1630 = vpop.f32.mrb[0].mxu0
        %1631 = vmatprep.mubr.bf16.mxu0 %v1520
        %1632 = vmatmul.mubr.bf16.gmra.mrb[0].mxu0 %v761
        %v1633 = vpop.f32.mrb[0].mxu0
        %v1634 = vadd.f32 %v1364, %v1633
        %v1635 = vpop.f32.mrb[0].mxu0
        %v1636 = vpop.f32.mrb[0].mxu0
        %v1637 = vadd.f32 %v1367, %v1636
        %v1638 = vpop.f32.mrb[0].mxu0
        %1639 = vmatprep.mubr.bf16.mxu0 %v1523
        %1640 = vmatmul.mubr.bf16.gmra.mrb[0].mxu0 %v763
        %v1641 = vpop.f32.mrb[0].mxu0
        %v1642 = vadd.f32 %v1372, %v1641
        %v1643 = vpop.f32.mrb[0].mxu0
        %v1644 = vpop.f32.mrb[0].mxu0
        %v1645 = vadd.f32 %v1375, %v1644
        %v1646 = vpop.f32.mrb[0].mxu0
        %1647 = vmatprep.mubr.bf16.mxu0 %v1526
        %1648 = vmatmul.mubr.bf16.gmra.mrb[0].mxu0 %v765
        %v1649 = vpop.f32.mrb[0].mxu0
        %v1650 = vadd.f32 %v1380, %v1649
        %v1651 = vpop.f32.mrb[0].mxu0
        %v1652 = vpop.f32.mrb[0].mxu0
        %v1653 = vadd.f32 %v1383, %v1652
        %v1654 = vpop.f32.mrb[0].mxu0
        %1655 = vmatprep.mubr.bf16.mxu0 %v1529
        %1656 = vmatmul.mubr.bf16.gmra.mrb[0].mxu0 %v767
        %v1657 = vpop.f32.mrb[0].mxu0
        %v1658 = vadd.f32 %v1388, %v1657
        %v1659 = vpop.f32.mrb[0].mxu0
        %v1660 = vpop.f32.mrb[0].mxu0
        %v1661 = vadd.f32 %v1391, %v1660
        %v1662 = vpop.f32.mrb[0].mxu0
        %1663 = vmatprep.mubr.bf16.mxu0 %v1532
        %1664 = vmatmul.mubr.bf16.gmra.mrb[0].mxu0 %v769
        %v1665 = vpop.f32.mrb[0].mxu0
        %v1666 = vadd.f32 %v1396, %v1665
        %v1667 = vpop.f32.mrb[0].mxu0
        %v1668 = vpop.f32.mrb[0].mxu0
        %v1669 = vadd.f32 %v1399, %v1668
        %v1670 = vpop.f32.mrb[0].mxu0
        %1671 = vmatprep.mubr.bf16.mxu0 %v1535
        %1672 = vmatmul.mubr.bf16.gmra.mrb[0].mxu0 %v771
        %v1673 = vpop.f32.mrb[0].mxu0
        %v1674 = vadd.f32 %v1404, %v1673
        %v1675 = vpop.f32.mrb[0].mxu0
        %v1676 = vpop.f32.mrb[0].mxu0
        %v1677 = vadd.f32 %v1407, %v1676
        %v1678 = vpop.f32.mrb[0].mxu0
        %1679 = vmatprep.mubr.bf16.mxu0 %v1538
        %1680 = vmatmul.mubr.bf16.gmra.mrb[0].mxu0 %v773
        %v1681 = vpop.f32.mrb[0].mxu0
        %v1682 = vadd.f32 %v1412, %v1681
        %v1683 = vpop.f32.mrb[0].mxu0
        %v1684 = vpop.f32.mrb[0].mxu0
        %v1685 = vadd.f32 %v1415, %v1684
        %v1686 = vpop.f32.mrb[0].mxu0
        %1687 = vmatprep.mubr.bf16.mxu0 %v1541
        %1688 = vmatmul.mubr.bf16.gmra.mrb[0].mxu0 %v775
        %v1689 = vpop.f32.mrb[0].mxu0
        %v1690 = vadd.f32 %v1420, %v1689
        %v1691 = vpop.f32.mrb[0].mxu0
        %v1692 = vpop.f32.mrb[0].mxu0
        %v1693 = vadd.f32 %v1423, %v1692
        %v1694 = vpop.f32.mrb[0].mxu0
        %1695 = vdwg.mxu0
        %v1696 = vld [vmem:[#allocation2 + $0x30] sm:$0xff]
        %v1697 = vld [vmem:[#allocation2 + $0x38] sm:$0xff]
        %v1698 = vld [vmem:[#allocation2 + $0x40] sm:$0xff]
        %v1699 = vld [vmem:[#allocation2 + $0x48] sm:$0xff]
        %v1700 = vld [vmem:[#allocation2 + $0x50] sm:$0xff]
        %v1701 = vld [vmem:[#allocation2 + $0x58] sm:$0xff]
        %v1702 = vld [vmem:[#allocation2 + $0x60] sm:$0xff]
        %v1703 = vld [vmem:[#allocation2 + $0x68] sm:$0xff]
        %v1704 = vld [vmem:[#allocation2 + $0x70] sm:$0xff]
        %v1705 = vld [vmem:[#allocation2 + $0x78] sm:$0xff]
        %v1706 = vld [vmem:[#allocation2 + $0x80] sm:$0xff]
        %v1707 = vld [vmem:[#allocation2 + $0x88] sm:$0xff]
        %v1708 = vld [vmem:[#allocation2 + $0x90] sm:$0xff]
        %v1709 = vld [vmem:[#allocation2 + $0x98] sm:$0xff]
        %v1710 = vld [vmem:[#allocation2 + $0xa0] sm:$0xff]
        %v1711 = vld [vmem:[#allocation2 + $0xa8] sm:$0xff]
        %v1712 = vld [vmem:[#allocation2 + $0xb0] sm:$0xff]
        %v1713 = vld [vmem:[#allocation2 + $0xb8] sm:$0xff]
        %v1714 = vld [vmem:[#allocation2 + $0xc0] sm:$0xff]
        %v1715 = vld [vmem:[#allocation2 + $0xc8] sm:$0xff]
        %v1716 = vld [vmem:[#allocation2 + $0xd0] sm:$0xff]
        %v1717 = vld [vmem:[#allocation2 + $0xd8] sm:$0xff]
        %v1718 = vld [vmem:[#allocation2 + $0xe0] sm:$0xff]
        %v1719 = vld [vmem:[#allocation2 + $0xe8] sm:$0xff]
        %v1720 = vld [vmem:[#allocation2 + $0xf0] sm:$0xff]
        %v1721 = vld [vmem:[#allocation2 + $0xf8] sm:$0xff]
        %v1722 = vld [vmem:[#allocation2 + $0x100] sm:$0xff]
        %v1723 = vld [vmem:[#allocation2 + $0x108] sm:$0xff]
        %v1724 = vld [vmem:[#allocation2 + $0x110] sm:$0xff]
        %v1725 = vld [vmem:[#allocation2 + $0x118] sm:$0xff]
        %v1726 = vrot.slane %v1696, 1
        %v1727 = vrot.slane %v1697, 1
        %v1728 = vrot.slane %v1698, 1
        %v1729 = vrot.slane %v1699, 1
        %v1730 = vrot.slane %v1700, 1
        %v1731 = vrot.slane %v1701, 1
        %v1732 = vrot.slane %v1702, 1
        %v1733 = vrot.slane %v1703, 1
        %v1734 = vrot.slane %v1704, 1
        %v1735 = vrot.slane %v1705, 1
        %v1736 = vrot.slane %v1706, 1
        %v1737 = vrot.slane %v1707, 1
        %v1738 = vrot.slane %v1708, 1
        %v1739 = vrot.slane %v1709, 1
        %v1740 = vrot.slane %v1710, 1
        %v1741 = vrot.slane %v1711, 1
        %v1742 = vrot.slane %v1712, 1
        %v1743 = vrot.slane %v1713, 1
        %v1744 = vrot.slane %v1714, 1
        %v1745 = vrot.slane %v1715, 1
        %v1746 = vrot.slane %v1716, 1
        %v1747 = vrot.slane %v1717, 1
        %v1748 = vrot.slane %v1718, 1
        %v1749 = vrot.slane %v1719, 1
        %v1750 = vrot.slane %v1720, 1
        %v1751 = vrot.slane %v1721, 1
        %v1752 = vrot.slane %v1722, 1
        %v1753 = vrot.slane %v1723, 1
        %v1754 = vrot.slane %v1724, 1
        %v1755 = vrot.slane %v1725, 1
        %v1756 = vsel %vm505, %v1754, %v1755
        %v1757 = vsel %vm505, %v1753, %v1754
        %v1758 = vsel %vm505, %v1752, %v1753
        %v1759 = vsel %vm505, %v1751, %v1752
        %v1760 = vsel %vm505, %v1750, %v1751
        %v1761 = vsel %vm505, %v1749, %v1750
        %v1762 = vsel %vm505, %v1748, %v1749
        %v1763 = vsel %vm505, %v1747, %v1748
        %v1764 = vsel %vm505, %v1746, %v1747
        %v1765 = vsel %vm505, %v1745, %v1746
        %v1766 = vsel %vm505, %v1744, %v1745
        %v1767 = vsel %vm505, %v1743, %v1744
        %v1768 = vsel %vm505, %v1742, %v1743
        %v1769 = vsel %vm505, %v1741, %v1742
        %v1770 = vsel %vm505, %v1740, %v1741
        %v1771 = vsel %vm505, %v1739, %v1740
        %v1772 = vsel %vm505, %v1738, %v1739
        %v1773 = vsel %vm505, %v1737, %v1738
        %v1774 = vsel %vm505, %v1736, %v1737
        %v1775 = vsel %vm505, %v1735, %v1736
        %v1776 = vsel %vm505, %v1734, %v1735
        %v1777 = vsel %vm505, %v1733, %v1734
        %v1778 = vsel %vm505, %v1732, %v1733
        %v1779 = vsel %vm505, %v1731, %v1732
        %v1780 = vsel %vm505, %v1730, %v1731
        %v1781 = vsel %vm505, %v1729, %v1730
        %v1782 = vsel %vm505, %v1728, %v1729
        %v1783 = vsel %vm505, %v1727, %v1728
        %v1784 = vsel %vm505, %v1726, %v1727
        %v1785 = vsel %vm505, %v1755, %v1726
        %v1786 = vrot.slane %v1696, 2
        %v1787 = vrot.slane %v1697, 2
        %v1788 = vrot.slane %v1698, 2
        %v1789 = vrot.slane %v1699, 2
        %v1790 = vrot.slane %v1700, 2
        %v1791 = vrot.slane %v1701, 2
        %v1792 = vrot.slane %v1702, 2
        %v1793 = vrot.slane %v1703, 2
        %v1794 = vrot.slane %v1704, 2
        %v1795 = vrot.slane %v1705, 2
        %v1796 = vrot.slane %v1706, 2
        %v1797 = vrot.slane %v1707, 2
        %v1798 = vrot.slane %v1708, 2
        %v1799 = vrot.slane %v1709, 2
        %v1800 = vrot.slane %v1710, 2
        %v1801 = vrot.slane %v1711, 2
        %v1802 = vrot.slane %v1712, 2
        %v1803 = vrot.slane %v1713, 2
        %v1804 = vrot.slane %v1714, 2
        %v1805 = vrot.slane %v1715, 2
        %v1806 = vrot.slane %v1716, 2
        %v1807 = vrot.slane %v1717, 2
        %v1808 = vrot.slane %v1718, 2
        %v1809 = vrot.slane %v1719, 2
        %v1810 = vrot.slane %v1720, 2
        %v1811 = vrot.slane %v1721, 2
        %v1812 = vrot.slane %v1722, 2
        %v1813 = vrot.slane %v1723, 2
        %v1814 = vrot.slane %v1724, 2
        %v1815 = vrot.slane %v1725, 2
        %v1816 = vsel %vm566, %v1814, %v1815
        %v1817 = vsel %vm566, %v1813, %v1814
        %v1818 = vsel %vm566, %v1812, %v1813
        %v1819 = vsel %vm566, %v1811, %v1812
        %v1820 = vsel %vm566, %v1810, %v1811
        %v1821 = vsel %vm566, %v1809, %v1810
        %v1822 = vsel %vm566, %v1808, %v1809
        %v1823 = vsel %vm566, %v1807, %v1808
        %v1824 = vsel %vm566, %v1806, %v1807
        %v1825 = vsel %vm566, %v1805, %v1806
        %v1826 = vsel %vm566, %v1804, %v1805
        %v1827 = vsel %vm566, %v1803, %v1804
        %v1828 = vsel %vm566, %v1802, %v1803
        %v1829 = vsel %vm566, %v1801, %v1802
        %v1830 = vsel %vm566, %v1800, %v1801
        %v1831 = vsel %vm566, %v1799, %v1800
        %v1832 = vsel %vm566, %v1798, %v1799
        %v1833 = vsel %vm566, %v1797, %v1798
        %v1834 = vsel %vm566, %v1796, %v1797
        %v1835 = vsel %vm566, %v1795, %v1796
        %v1836 = vsel %vm566, %v1794, %v1795
        %v1837 = vsel %vm566, %v1793, %v1794
        %v1838 = vsel %vm566, %v1792, %v1793
        %v1839 = vsel %vm566, %v1791, %v1792
        %v1840 = vsel %vm566, %v1790, %v1791
        %v1841 = vsel %vm566, %v1789, %v1790
        %v1842 = vsel %vm566, %v1788, %v1789
        %v1843 = vsel %vm566, %v1787, %v1788
        %v1844 = vsel %vm566, %v1786, %v1787
        %v1845 = vsel %vm566, %v1815, %v1786
        %1876 = vrot.lane.b32.xlu0 %v1784, 64
        %v1877 = vpop.permute.xlu0 %1876
        %1878 = vrot.lane.b32.xlu0 %v1783, 64
        %v1879 = vpop.permute.xlu0 %1878
        %1880 = vrot.lane.b32.xlu0 %v1782, 64
        %v1881 = vpop.permute.xlu0 %1880
        %1882 = vrot.lane.b32.xlu0 %v1781, 64
        %v1883 = vpop.permute.xlu0 %1882
        %1884 = vrot.lane.b32.xlu0 %v1780, 64
        %v1885 = vpop.permute.xlu0 %1884
        %1886 = vrot.lane.b32.xlu0 %v1779, 64
        %v1887 = vpop.permute.xlu0 %1886
        %1888 = vrot.lane.b32.xlu0 %v1778, 64
        %v1889 = vpop.permute.xlu0 %1888
        %1890 = vrot.lane.b32.xlu0 %v1777, 64
        %v1891 = vpop.permute.xlu0 %1890
        %1892 = vrot.lane.b32.xlu0 %v1776, 64
        %v1893 = vpop.permute.xlu0 %1892
        %1894 = vrot.lane.b32.xlu0 %v1775, 64
        %v1895 = vpop.permute.xlu0 %1894
        %1896 = vrot.lane.b32.xlu0 %v1774, 64
        %v1897 = vpop.permute.xlu0 %1896
        %1898 = vrot.lane.b32.xlu0 %v1773, 64
        %v1899 = vpop.permute.xlu0 %1898
        %1900 = vrot.lane.b32.xlu0 %v1772, 64
        %v1901 = vpop.permute.xlu0 %1900
        %1902 = vrot.lane.b32.xlu0 %v1771, 64
        %v1903 = vpop.permute.xlu0 %1902
        %1904 = vrot.lane.b32.xlu0 %v1770, 64
        %v1905 = vpop.permute.xlu0 %1904
        %1906 = vrot.lane.b32.xlu0 %v1769, 64
        %v1907 = vpop.permute.xlu0 %1906
        %1908 = vrot.lane.b32.xlu0 %v1768, 64
        %v1909 = vpop.permute.xlu0 %1908
        %1910 = vrot.lane.b32.xlu0 %v1767, 64
        %v1911 = vpop.permute.xlu0 %1910
        %1912 = vrot.lane.b32.xlu0 %v1766, 64
        %v1913 = vpop.permute.xlu0 %1912
        %1914 = vrot.lane.b32.xlu0 %v1765, 64
        %v1915 = vpop.permute.xlu0 %1914
        %1916 = vrot.lane.b32.xlu0 %v1764, 64
        %v1917 = vpop.permute.xlu0 %1916
        %1918 = vrot.lane.b32.xlu0 %v1763, 64
        %v1919 = vpop.permute.xlu0 %1918
        %1920 = vrot.lane.b32.xlu0 %v1762, 64
        %v1921 = vpop.permute.xlu0 %1920
        %1922 = vrot.lane.b32.xlu0 %v1761, 64
        %v1923 = vpop.permute.xlu0 %1922
        %1924 = vrot.lane.b32.xlu0 %v1760, 64
        %v1925 = vpop.permute.xlu0 %1924
        %1926 = vrot.lane.b32.xlu0 %v1759, 64
        %v1927 = vpop.permute.xlu0 %1926
        %1928 = vrot.lane.b32.xlu0 %v1758, 64
        %v1929 = vpop.permute.xlu0 %1928
        %1930 = vrot.lane.b32.xlu0 %v1757, 64
        %v1931 = vpop.permute.xlu0 %1930
        %1932 = vrot.lane.b32.xlu0 %v1756, 64
        %v1933 = vpop.permute.xlu0 %1932
        %1934 = vrot.lane.b32.xlu0 %v1785, 64
        %v1935 = vpop.permute.xlu0 %1934
        %v1966 = vsel %vm394, %v1696, %v1877
        %v1967 = vsel %vm394, %v1697, %v1879
        %v1968 = vsel %vm394, %v1698, %v1881
        %v1969 = vsel %vm394, %v1699, %v1883
        %v1970 = vsel %vm394, %v1700, %v1885
        %v1971 = vsel %vm394, %v1701, %v1887
        %v1972 = vsel %vm394, %v1702, %v1889
        %v1973 = vsel %vm394, %v1703, %v1891
        %v1974 = vsel %vm394, %v1704, %v1893
        %v1975 = vsel %vm394, %v1705, %v1895
        %v1976 = vsel %vm394, %v1706, %v1897
        %v1977 = vsel %vm394, %v1707, %v1899
        %v1978 = vsel %vm394, %v1708, %v1901
        %v1979 = vsel %vm394, %v1709, %v1903
        %v1980 = vsel %vm394, %v1710, %v1905
        %v1981 = vsel %vm394, %v1711, %v1907
        %v1982 = vsel %vm394, %v1712, %v1909
        %v1983 = vsel %vm394, %v1713, %v1911
        %v1984 = vsel %vm394, %v1714, %v1913
        %v1985 = vsel %vm394, %v1715, %v1915
        %v1986 = vsel %vm394, %v1716, %v1917
        %v1987 = vsel %vm394, %v1717, %v1919
        %v1988 = vsel %vm394, %v1718, %v1921
        %v1989 = vsel %vm394, %v1719, %v1923
        %v1990 = vsel %vm394, %v1720, %v1925
        %v1991 = vsel %vm394, %v1721, %v1927
        %v1992 = vsel %vm394, %v1722, %v1929
        %v1993 = vsel %vm394, %v1723, %v1931
        %v1994 = vsel %vm394, %v1724, %v1933
        %v1995 = vsel %vm394, %v1725, %v1935
        %v1996 = vpack.c.bf16 %v1967, %v1966
        %v1997 = vpack.c.bf16 %v1843, %v1844
        %v1998 = vpack.c.bf16 %v1969, %v1968
        %v1999 = vpack.c.bf16 %v1841, %v1842
        %v2000 = vpack.c.bf16 %v1971, %v1970
        %v2001 = vpack.c.bf16 %v1839, %v1840
        %v2002 = vpack.c.bf16 %v1973, %v1972
        %v2003 = vpack.c.bf16 %v1837, %v1838
        %v2004 = vpack.c.bf16 %v1975, %v1974
        %v2005 = vpack.c.bf16 %v1835, %v1836
        %v2006 = vpack.c.bf16 %v1977, %v1976
        %v2007 = vpack.c.bf16 %v1833, %v1834
        %v2008 = vpack.c.bf16 %v1979, %v1978
        %v2009 = vpack.c.bf16 %v1831, %v1832
        %v2010 = vpack.c.bf16 %v1981, %v1980
        %v2011 = vpack.c.bf16 %v1829, %v1830
        %v2012 = vpack.c.bf16 %v1983, %v1982
        %v2013 = vpack.c.bf16 %v1827, %v1828
        %v2014 = vpack.c.bf16 %v1985, %v1984
        %v2015 = vpack.c.bf16 %v1825, %v1826
        %v2016 = vpack.c.bf16 %v1987, %v1986
        %v2017 = vpack.c.bf16 %v1823, %v1824
        %v2018 = vpack.c.bf16 %v1989, %v1988
        %v2019 = vpack.c.bf16 %v1821, %v1822
        %v2020 = vpack.c.bf16 %v1991, %v1990
        %v2021 = vpack.c.bf16 %v1819, %v1820
        %v2022 = vpack.c.bf16 %v1993, %v1992
        %v2023 = vpack.c.bf16 %v1817, %v1818
        %v2024 = vpack.c.bf16 %v1995, %v1994
        %v2025 = vpack.c.bf16 %v1845, %v1816
        %s2026 = scalar_lea.vmem [#allocation10], 192
        %v2027 = vld [vmem:[%s2026] sm:$0xf]
        %v2028 = vld [vmem:[%s2026 + $0x4] sm:$0xf]
        %v2029 = vld [vmem:[%s2026 + $0x8] sm:$0xf]
        %v2030 = vld [vmem:[%s2026 + $0xc] sm:$0xf]
        %v2031 = vld [vmem:[%s2026 + $0x10] sm:$0xf]
        %v2032 = vld [vmem:[%s2026 + $0x14] sm:$0xf]
        %v2033 = vld [vmem:[%s2026 + $0x18] sm:$0xf]
        %v2034 = vld [vmem:[%s2026 + $0x1c] sm:$0xf]
        %v2035 = vld [vmem:[%s2026 + $0x20] sm:$0xf]
        %v2036 = vld [vmem:[%s2026 + $0x24] sm:$0xf]
        %v2037 = vld [vmem:[%s2026 + $0x28] sm:$0xf]
        %v2038 = vld [vmem:[%s2026 + $0x2c] sm:$0xf]
        %v2039 = vld [vmem:[%s2026 + $0x30] sm:$0xf]
        %v2040 = vld [vmem:[%s2026 + $0x34] sm:$0xf]
        %v2041 = vld [vmem:[%s2026 + $0x38] sm:$0xf]
        %v2042 = vld [vmem:[%s2026 + $0x3c] sm:$0xf]
        %v2043 = vld [vmem:[%s2026 + $0x40] sm:$0xf]
        %v2044 = vld [vmem:[%s2026 + $0x44] sm:$0xf]
        %v2045 = vld [vmem:[%s2026 + $0x48] sm:$0xf]
        %v2046 = vld [vmem:[%s2026 + $0x4c] sm:$0xf]
        %v2047 = vld [vmem:[%s2026 + $0x50] sm:$0xf]
        %v2048 = vld [vmem:[%s2026 + $0x54] sm:$0xf]
        %v2049 = vld [vmem:[%s2026 + $0x58] sm:$0xf]
        %v2050 = vld [vmem:[%s2026 + $0x5c] sm:$0xf]
        %v2075 = vunpack.c.l.b16 %v2027
        %v2076 = vunpack.c.l.b16 %v2028
        %v2077 = vunpack.c.l.b16 %v2029
        %v2078 = vunpack.c.l.b16 %v2030
        %v2079 = vunpack.c.l.b16 %v2031
        %v2080 = vunpack.c.l.b16 %v2032
        %v2081 = vunpack.c.l.b16 %v2033
        %v2082 = vunpack.c.l.b16 %v2034
        %v2083 = vunpack.c.l.b16 %v2035
        %v2084 = vunpack.c.l.b16 %v2036
        %v2085 = vunpack.c.l.b16 %v2037
        %v2086 = vunpack.c.l.b16 %v2038
        %v2087 = vunpack.c.l.b16 %v2039
        %v2088 = vunpack.c.l.b16 %v2040
        %v2089 = vunpack.c.l.b16 %v2041
        %v2090 = vunpack.c.l.b16 %v2042
        %v2091 = vunpack.c.l.b16 %v2043
        %v2092 = vunpack.c.l.b16 %v2044
        %v2093 = vunpack.c.l.b16 %v2045
        %v2094 = vunpack.c.l.b16 %v2046
        %v2095 = vunpack.c.l.b16 %v2047
        %v2096 = vunpack.c.l.b16 %v2048
        %v2097 = vunpack.c.l.b16 %v2049
        %v2098 = vunpack.c.l.b16 %v2050
        %v2099 = vpack.c.b16 %v2076, %v2075
        %v2100 = vpack.c.b16 %v2078, %v2077
        %v2101 = vpack.c.b16 %v2080, %v2079
        %v2102 = vpack.c.b16 %v2082, %v2081
        %v2103 = vpack.c.b16 %v2084, %v2083
        %v2104 = vpack.c.b16 %v2086, %v2085
        %v2105 = vpack.c.b16 %v2088, %v2087
        %v2106 = vpack.c.b16 %v2090, %v2089
        %v2107 = vpack.c.b16 %v2092, %v2091
        %v2108 = vpack.c.b16 %v2094, %v2093
        %v2109 = vpack.c.b16 %v2096, %v2095
        %v2110 = vpack.c.b16 %v2098, %v2097
        %v2124 = vsel %vm394, %v1997, 0
        %v2127 = vsel %vm394, %v1999, 0
        %v2130 = vsel %vm394, %v2001, 0
        %v2133 = vsel %vm394, %v2003, 0
        %v2136 = vsel %vm394, %v2005, 0
        %v2139 = vsel %vm394, %v2007, 0
        %v2142 = vsel %vm394, %v2009, 0
        %v2145 = vsel %vm394, %v2011, 0
        %v2148 = vsel %vm394, %v2013, 0
        %v2151 = vsel %vm394, %v2015, 0
        %v2154 = vsel %vm394, %v2017, 0
        %v2157 = vsel %vm394, %v2019, 0
        %v2160 = vsel %vm394, %v2021, 0
        %v2163 = vsel %vm394, %v2023, 0
        %v2166 = vsel %vm394, %v2025, 0
        %2168 = vmatprep.subr.bf16.mxu0 0
        %2169 = vmatpush1.bf16.msra.mxu0 %v2099
        %2170 = vmatprep.subr.bf16.mxu0 0
        %2171 = vmatpush1.bf16.msra.mxu0 %v2100
        %2172 = vmatprep.subr.bf16.mxu0 0
        %2173 = vmatpush1.bf16.msra.mxu0 %v2101
        %2174 = vmatprep.subr.bf16.mxu0 0
        %2175 = vmatpush1.bf16.msra.mxu0 %v2102
        %2176 = vmatprep.subr.bf16.mxu0 0
        %2177 = vmatpush1.bf16.msra.mxu0 %v2103
        %2178 = vmatprep.subr.bf16.mxu0 0
        %2179 = vmatpush1.bf16.msra.mxu0 %v2104
        %2180 = vmatprep.subr.bf16.mxu0 0
        %2181 = vmatpush1.bf16.msra.mxu0 %v2105
        %2182 = vmatprep.subr.bf16.mxu0 0
        %2183 = vmatpush1.bf16.msra.mxu0 %v2106
        %2184 = vmatprep.subr.bf16.mxu0 0
        %2185 = vmatpush1.bf16.msra.mxu0 %v2107
        %2186 = vmatprep.subr.bf16.mxu0 0
        %2187 = vmatpush1.bf16.msra.mxu0 %v2108
        %2188 = vmatprep.subr.bf16.mxu0 0
        %2189 = vmatpush1.bf16.msra.mxu0 %v2109
        %2190 = vmatprep.subr.bf16.mxu0 0
        %2191 = vmatpush1.bf16.msra.mxu0 %v2110
        %2192 = vmatprep.subr.bf16.mxu0 0
        %2193 = vmatpush1.bf16.msra.mxu0 0
        %2194 = vmatprep.subr.bf16.mxu0 0
        %2195 = vmatpush1.bf16.msra.mxu0 0
        %2196 = vmatprep.subr.bf16.mxu0 0
        %2197 = vmatpush1.bf16.msra.mxu0 0
        %2198 = vmatprep.subr.bf16.mxu0 0
        %2199 = vmatpush1.bf16.msra.mxu0 0
        %2200 = vmatprep.mubr.bf16.mxu0 %v2124
        %2201 = vmatmul.mubr.bf16.gmra.mrb[0].mxu0 %v1996
        %v2202 = vpop.f32.mrb[0].mxu0
        %v2203 = vadd.f32 0.0, %v2202
        %v2204 = vpop.f32.mrb[0].mxu0
        %v2205 = vpop.f32.mrb[0].mxu0
        %v2206 = vadd.f32 0.0, %v2205
        %v2207 = vpop.f32.mrb[0].mxu0
        %2208 = vmatprep.mubr.bf16.mxu0 %v2127
        %2209 = vmatmul.mubr.bf16.gmra.mrb[0].mxu0 %v1998
        %v2210 = vpop.f32.mrb[0].mxu0
        %v2211 = vadd.f32 0.0, %v2210
        %v2212 = vpop.f32.mrb[0].mxu0
        %v2213 = vpop.f32.mrb[0].mxu0
        %v2214 = vadd.f32 0.0, %v2213
        %v2215 = vpop.f32.mrb[0].mxu0
        %2216 = vmatprep.mubr.bf16.mxu0 %v2130
        %2217 = vmatmul.mubr.bf16.gmra.mrb[0].mxu0 %v2000
        %v2218 = vpop.f32.mrb[0].mxu0
        %v2219 = vadd.f32 0.0, %v2218
        %v2220 = vpop.f32.mrb[0].mxu0
        %v2221 = vpop.f32.mrb[0].mxu0
        %v2222 = vadd.f32 0.0, %v2221
        %v2223 = vpop.f32.mrb[0].mxu0
        %2224 = vmatprep.mubr.bf16.mxu0 %v2133
        %2225 = vmatmul.mubr.bf16.gmra.mrb[0].mxu0 %v2002
        %v2226 = vpop.f32.mrb[0].mxu0
        %v2227 = vadd.f32 0.0, %v2226
        %v2228 = vpop.f32.mrb[0].mxu0
        %v2229 = vpop.f32.mrb[0].mxu0
        %v2230 = vadd.f32 0.0, %v2229
        %v2231 = vpop.f32.mrb[0].mxu0
        %2232 = vmatprep.mubr.bf16.mxu0 %v2136
        %2233 = vmatmul.mubr.bf16.gmra.mrb[0].mxu0 %v2004
        %v2234 = vpop.f32.mrb[0].mxu0
        %v2235 = vadd.f32 0.0, %v2234
        %v2236 = vpop.f32.mrb[0].mxu0
        %v2237 = vpop.f32.mrb[0].mxu0
        %v2238 = vadd.f32 0.0, %v2237
        %v2239 = vpop.f32.mrb[0].mxu0
        %2240 = vmatprep.mubr.bf16.mxu0 %v2139
        %2241 = vmatmul.mubr.bf16.gmra.mrb[0].mxu0 %v2006
        %v2242 = vpop.f32.mrb[0].mxu0
        %v2243 = vadd.f32 0.0, %v2242
        %v2244 = vpop.f32.mrb[0].mxu0
        %v2245 = vpop.f32.mrb[0].mxu0
        %v2246 = vadd.f32 0.0, %v2245
        %v2247 = vpop.f32.mrb[0].mxu0
        %2248 = vmatprep.mubr.bf16.mxu0 %v2142
        %2249 = vmatmul.mubr.bf16.gmra.mrb[0].mxu0 %v2008
        %v2250 = vpop.f32.mrb[0].mxu0
        %v2251 = vadd.f32 0.0, %v2250
        %v2252 = vpop.f32.mrb[0].mxu0
        %v2253 = vpop.f32.mrb[0].mxu0
        %v2254 = vadd.f32 0.0, %v2253
        %v2255 = vpop.f32.mrb[0].mxu0
        %2256 = vmatprep.mubr.bf16.mxu0 %v2145
        %2257 = vmatmul.mubr.bf16.gmra.mrb[0].mxu0 %v2010
        %v2258 = vpop.f32.mrb[0].mxu0
        %v2259 = vadd.f32 0.0, %v2258
        %v2260 = vpop.f32.mrb[0].mxu0
        %v2261 = vpop.f32.mrb[0].mxu0
        %v2262 = vadd.f32 0.0, %v2261
        %v2263 = vpop.f32.mrb[0].mxu0
        %2264 = vmatprep.mubr.bf16.mxu0 %v2148
        %2265 = vmatmul.mubr.bf16.gmra.mrb[0].mxu0 %v2012
        %v2266 = vpop.f32.mrb[0].mxu0
        %v2267 = vadd.f32 0.0, %v2266
        %v2268 = vpop.f32.mrb[0].mxu0
        %v2269 = vpop.f32.mrb[0].mxu0
        %v2270 = vadd.f32 0.0, %v2269
        %v2271 = vpop.f32.mrb[0].mxu0
        %2272 = vmatprep.mubr.bf16.mxu0 %v2151
        %2273 = vmatmul.mubr.bf16.gmra.mrb[0].mxu0 %v2014
        %v2274 = vpop.f32.mrb[0].mxu0
        %v2275 = vadd.f32 0.0, %v2274
        %v2276 = vpop.f32.mrb[0].mxu0
        %v2277 = vpop.f32.mrb[0].mxu0
        %v2278 = vadd.f32 0.0, %v2277
        %v2279 = vpop.f32.mrb[0].mxu0
        %2280 = vmatprep.mubr.bf16.mxu0 %v2154
        %2281 = vmatmul.mubr.bf16.gmra.mrb[0].mxu0 %v2016
        %v2282 = vpop.f32.mrb[0].mxu0
        %v2283 = vadd.f32 0.0, %v2282
        %v2284 = vpop.f32.mrb[0].mxu0
        %v2285 = vpop.f32.mrb[0].mxu0
        %v2286 = vadd.f32 0.0, %v2285
        %v2287 = vpop.f32.mrb[0].mxu0
        %2288 = vmatprep.mubr.bf16.mxu0 %v2157
        %2289 = vmatmul.mubr.bf16.gmra.mrb[0].mxu0 %v2018
        %v2290 = vpop.f32.mrb[0].mxu0
        %v2291 = vadd.f32 0.0, %v2290
        %v2292 = vpop.f32.mrb[0].mxu0
        %v2293 = vpop.f32.mrb[0].mxu0
        %v2294 = vadd.f32 0.0, %v2293
        %v2295 = vpop.f32.mrb[0].mxu0
        %2296 = vmatprep.mubr.bf16.mxu0 %v2160
        %2297 = vmatmul.mubr.bf16.gmra.mrb[0].mxu0 %v2020
        %v2298 = vpop.f32.mrb[0].mxu0
        %v2299 = vadd.f32 0.0, %v2298
        %v2300 = vpop.f32.mrb[0].mxu0
        %v2301 = vpop.f32.mrb[0].mxu0
        %v2302 = vadd.f32 0.0, %v2301
        %v2303 = vpop.f32.mrb[0].mxu0
        %2304 = vmatprep.mubr.bf16.mxu0 %v2163
        %2305 = vmatmul.mubr.bf16.gmra.mrb[0].mxu0 %v2022
        %v2306 = vpop.f32.mrb[0].mxu0
        %v2307 = vadd.f32 0.0, %v2306
        %v2308 = vpop.f32.mrb[0].mxu0
        %v2309 = vpop.f32.mrb[0].mxu0
        %v2310 = vadd.f32 0.0, %v2309
        %v2311 = vpop.f32.mrb[0].mxu0
        %2312 = vmatprep.mubr.bf16.mxu0 %v2166
        %2313 = vmatmul.mubr.bf16.gmra.mrb[0].mxu0 %v2024
        %v2314 = vpop.f32.mrb[0].mxu0
        %v2315 = vadd.f32 0.0, %v2314
        %v2316 = vpop.f32.mrb[0].mxu0
        %v2317 = vpop.f32.mrb[0].mxu0
        %v2318 = vadd.f32 0.0, %v2317
        %v2319 = vpop.f32.mrb[0].mxu0
        %2320 = vdwg.mxu0
        %v2321 = vadd.f32 %v1578, %v2203
        %v2322 = vadd.f32 %v1581, %v2206
        %v2323 = vadd.f32 %v1586, %v2211
        %v2324 = vadd.f32 %v1589, %v2214
        %v2325 = vadd.f32 %v1594, %v2219
        %v2326 = vadd.f32 %v1597, %v2222
        %v2327 = vadd.f32 %v1602, %v2227
        %v2328 = vadd.f32 %v1605, %v2230
        %v2329 = vadd.f32 %v1610, %v2235
        %v2330 = vadd.f32 %v1613, %v2238
        %v2331 = vadd.f32 %v1618, %v2243
        %v2332 = vadd.f32 %v1621, %v2246
        %v2333 = vadd.f32 %v1626, %v2251
        %v2334 = vadd.f32 %v1629, %v2254
        %v2335 = vadd.f32 %v1634, %v2259
        %v2336 = vadd.f32 %v1637, %v2262
        %v2337 = vadd.f32 %v1642, %v2267
        %v2338 = vadd.f32 %v1645, %v2270
        %v2339 = vadd.f32 %v1650, %v2275
        %v2340 = vadd.f32 %v1653, %v2278
        %v2341 = vadd.f32 %v1658, %v2283
        %v2342 = vadd.f32 %v1661, %v2286
        %v2343 = vadd.f32 %v1666, %v2291
        %v2344 = vadd.f32 %v1669, %v2294
        %v2345 = vadd.f32 %v1674, %v2299
        %v2346 = vadd.f32 %v1677, %v2302
        %v2347 = vadd.f32 %v1682, %v2307
        %v2348 = vadd.f32 %v1685, %v2310
        %v2349 = vadd.f32 %v1690, %v2315
        %v2350 = vadd.f32 %v1693, %v2318
        %v2351 = vmax.f32 %v2321, 0.0
        %v2352 = vmax.f32 %v2322, 0.0
        %v2353 = vmax.f32 %v2323, 0.0
        %v2354 = vmax.f32 %v2324, 0.0
        %v2355 = vmax.f32 %v2325, 0.0
        %v2356 = vmax.f32 %v2326, 0.0
        %v2357 = vmax.f32 %v2327, 0.0
        %v2358 = vmax.f32 %v2328, 0.0
        %v2359 = vmax.f32 %v2329, 0.0
        %v2360 = vmax.f32 %v2330, 0.0
        %v2361 = vmax.f32 %v2331, 0.0
        %v2362 = vmax.f32 %v2332, 0.0
        %v2363 = vmax.f32 %v2333, 0.0
        %v2364 = vmax.f32 %v2334, 0.0
        %v2365 = vmax.f32 %v2335, 0.0
        %v2366 = vmax.f32 %v2336, 0.0
        %v2367 = vmax.f32 %v2337, 0.0
        %v2368 = vmax.f32 %v2338, 0.0
        %v2369 = vmax.f32 %v2339, 0.0
        %v2370 = vmax.f32 %v2340, 0.0
        %v2371 = vmax.f32 %v2341, 0.0
        %v2372 = vmax.f32 %v2342, 0.0
        %v2373 = vmax.f32 %v2343, 0.0
        %v2374 = vmax.f32 %v2344, 0.0
        %v2375 = vmax.f32 %v2345, 0.0
        %v2376 = vmax.f32 %v2346, 0.0
        %v2377 = vmax.f32 %v2347, 0.0
        %v2378 = vmax.f32 %v2348, 0.0
        %v2379 = vmax.f32 %v2349, 0.0
        %v2380 = vmax.f32 %v2350, 0.0
        %v2381 = vld [vmem:[#allocation9] sm:$0xff]
        %v2382 = vld [vmem:[#allocation9 + $0x8] sm:$0xff]
        %v2383 = vld [vmem:[#allocation9 + $0x10] sm:$0xff]
        %v2384 = vld [vmem:[#allocation9 + $0x18] sm:$0xff]
        %v2385 = vld [vmem:[#allocation9 + $0x20] sm:$0xff]
        %v2386 = vld [vmem:[#allocation9 + $0x28] sm:$0xff]
        %v2387 = vld [vmem:[#allocation9 + $0x30] sm:$0xff]
        %v2388 = vld [vmem:[#allocation9 + $0x38] sm:$0xff]
        %v2389 = vld [vmem:[#allocation9 + $0x40] sm:$0xff]
        %v2390 = vld [vmem:[#allocation9 + $0x48] sm:$0xff]
        %v2391 = vld [vmem:[#allocation9 + $0x50] sm:$0xff]
        %v2392 = vld [vmem:[#allocation9 + $0x58] sm:$0xff]
        %v2393 = vld [vmem:[#allocation9 + $0x60] sm:$0xff]
        %v2394 = vld [vmem:[#allocation9 + $0x68] sm:$0xff]
        %v2395 = vld [vmem:[#allocation9 + $0x70] sm:$0xff]
        %v2396 = vld [vmem:[#allocation9 + $0x78] sm:$0xff]
        %v2397 = vld [vmem:[#allocation9 + $0x80] sm:$0xff]
        %v2398 = vld [vmem:[#allocation9 + $0x88] sm:$0xff]
        %v2399 = vld [vmem:[#allocation9 + $0x90] sm:$0xff]
        %v2400 = vld [vmem:[#allocation9 + $0x98] sm:$0xff]
        %v2401 = vld [vmem:[#allocation9 + $0xa0] sm:$0xff]
        %v2402 = vld [vmem:[#allocation9 + $0xa8] sm:$0xff]
        %v2403 = vld [vmem:[#allocation9 + $0xb0] sm:$0xff]
        %v2404 = vld [vmem:[#allocation9 + $0xb8] sm:$0xff]
        %v2405 = vld [vmem:[#allocation9 + $0xc0] sm:$0xff]
        %v2406 = vld [vmem:[#allocation9 + $0xc8] sm:$0xff]
        %v2407 = vld [vmem:[#allocation9 + $0xd0] sm:$0xff]
        %v2408 = vld [vmem:[#allocation9 + $0xd8] sm:$0xff]
        %v2409 = vld [vmem:[#allocation9 + $0xe0] sm:$0xff]
        %v2410 = vld [vmem:[#allocation9 + $0xe8] sm:$0xff]
        %2412 = vset.pattern.permute.xlu0 0
        %2413 = vperm.xlu0 %2412, %v2381
        %v2414 = vpop.permute.xlu0 %2413
        %2417 = vset.pattern.permute.xlu0 0
        %2418 = vperm.xlu0 %2417, %v2382
        %v2419 = vpop.permute.xlu0 %2418
        %2422 = vset.pattern.permute.xlu0 0
        %2423 = vperm.xlu0 %2422, %v2383
        %v2424 = vpop.permute.xlu0 %2423
        %2427 = vset.pattern.permute.xlu0 0
        %2428 = vperm.xlu0 %2427, %v2384
        %v2429 = vpop.permute.xlu0 %2428
        %2432 = vset.pattern.permute.xlu0 0
        %2433 = vperm.xlu0 %2432, %v2385
        %v2434 = vpop.permute.xlu0 %2433
        %2437 = vset.pattern.permute.xlu0 0
        %2438 = vperm.xlu0 %2437, %v2386
        %v2439 = vpop.permute.xlu0 %2438
        %2442 = vset.pattern.permute.xlu0 0
        %2443 = vperm.xlu0 %2442, %v2387
        %v2444 = vpop.permute.xlu0 %2443
        %2447 = vset.pattern.permute.xlu0 0
        %2448 = vperm.xlu0 %2447, %v2388
        %v2449 = vpop.permute.xlu0 %2448
        %2452 = vset.pattern.permute.xlu0 0
        %2453 = vperm.xlu0 %2452, %v2389
        %v2454 = vpop.permute.xlu0 %2453
        %2457 = vset.pattern.permute.xlu0 0
        %2458 = vperm.xlu0 %2457, %v2390
        %v2459 = vpop.permute.xlu0 %2458
        %2462 = vset.pattern.permute.xlu0 0
        %2463 = vperm.xlu0 %2462, %v2391
        %v2464 = vpop.permute.xlu0 %2463
        %2467 = vset.pattern.permute.xlu0 0
        %2468 = vperm.xlu0 %2467, %v2392
        %v2469 = vpop.permute.xlu0 %2468
        %2472 = vset.pattern.permute.xlu0 0
        %2473 = vperm.xlu0 %2472, %v2393
        %v2474 = vpop.permute.xlu0 %2473
        %2477 = vset.pattern.permute.xlu0 0
        %2478 = vperm.xlu0 %2477, %v2394
        %v2479 = vpop.permute.xlu0 %2478
        %2482 = vset.pattern.permute.xlu0 0
        %2483 = vperm.xlu0 %2482, %v2395
        %v2484 = vpop.permute.xlu0 %2483
        %2487 = vset.pattern.permute.xlu0 0
        %2488 = vperm.xlu0 %2487, %v2396
        %v2489 = vpop.permute.xlu0 %2488
        %2492 = vset.pattern.permute.xlu0 0
        %2493 = vperm.xlu0 %2492, %v2397
        %v2494 = vpop.permute.xlu0 %2493
        %2497 = vset.pattern.permute.xlu0 0
        %2498 = vperm.xlu0 %2497, %v2398
        %v2499 = vpop.permute.xlu0 %2498
        %2502 = vset.pattern.permute.xlu0 0
        %2503 = vperm.xlu0 %2502, %v2399
        %v2504 = vpop.permute.xlu0 %2503
        %2507 = vset.pattern.permute.xlu0 0
        %2508 = vperm.xlu0 %2507, %v2400
        %v2509 = vpop.permute.xlu0 %2508
        %2512 = vset.pattern.permute.xlu0 0
        %2513 = vperm.xlu0 %2512, %v2401
        %v2514 = vpop.permute.xlu0 %2513
        %2517 = vset.pattern.permute.xlu0 0
        %2518 = vperm.xlu0 %2517, %v2402
        %v2519 = vpop.permute.xlu0 %2518
        %2522 = vset.pattern.permute.xlu0 0
        %2523 = vperm.xlu0 %2522, %v2403
        %v2524 = vpop.permute.xlu0 %2523
        %2527 = vset.pattern.permute.xlu0 0
        %2528 = vperm.xlu0 %2527, %v2404
        %v2529 = vpop.permute.xlu0 %2528
        %2532 = vset.pattern.permute.xlu0 0
        %2533 = vperm.xlu0 %2532, %v2405
        %v2534 = vpop.permute.xlu0 %2533
        %2537 = vset.pattern.permute.xlu0 0
        %2538 = vperm.xlu0 %2537, %v2406
        %v2539 = vpop.permute.xlu0 %2538
        %2542 = vset.pattern.permute.xlu0 0
        %2543 = vperm.xlu0 %2542, %v2407
        %v2544 = vpop.permute.xlu0 %2543
        %2547 = vset.pattern.permute.xlu0 0
        %2548 = vperm.xlu0 %2547, %v2408
        %v2549 = vpop.permute.xlu0 %2548
        %2552 = vset.pattern.permute.xlu0 0
        %2553 = vperm.xlu0 %2552, %v2409
        %v2554 = vpop.permute.xlu0 %2553
        %2557 = vset.pattern.permute.xlu0 0
        %2558 = vperm.xlu0 %2557, %v2410
        %v2559 = vpop.permute.xlu0 %2558
        %v2561 = vmul.f32 %v2351, %v2414
        %v2562 = vmul.f32 %v2352, %v2419
        %v2563 = vmul.f32 %v2353, %v2424
        %v2564 = vmul.f32 %v2354, %v2429
        %v2565 = vmul.f32 %v2355, %v2434
        %v2566 = vmul.f32 %v2356, %v2439
        %v2567 = vmul.f32 %v2357, %v2444
        %v2568 = vmul.f32 %v2358, %v2449
        %v2569 = vmul.f32 %v2359, %v2454
        %v2570 = vmul.f32 %v2360, %v2459
        %v2571 = vmul.f32 %v2361, %v2464
        %v2572 = vmul.f32 %v2362, %v2469
        %v2573 = vmul.f32 %v2363, %v2474
        %v2574 = vmul.f32 %v2364, %v2479
        %v2575 = vmul.f32 %v2365, %v2484
        %v2576 = vmul.f32 %v2366, %v2489
        %v2577 = vmul.f32 %v2367, %v2494
        %v2578 = vmul.f32 %v2368, %v2499
        %v2579 = vmul.f32 %v2369, %v2504
        %v2580 = vmul.f32 %v2370, %v2509
        %v2581 = vmul.f32 %v2371, %v2514
        %v2582 = vmul.f32 %v2372, %v2519
        %v2583 = vmul.f32 %v2373, %v2524
        %v2584 = vmul.f32 %v2374, %v2529
        %v2585 = vmul.f32 %v2375, %v2534
        %v2586 = vmul.f32 %v2376, %v2539
        %v2587 = vmul.f32 %v2377, %v2544
        %v2588 = vmul.f32 %v2378, %v2549
        %v2589 = vmul.f32 %v2379, %v2554
        %v2590 = vmul.f32 %v2380, %v2559
        %v2591 = vrot.slane %v2561, 7
        %v2592 = vrot.slane %v2562, 7
        %v2593 = vrot.slane %v2563, 7
        %v2594 = vrot.slane %v2564, 7
        %v2595 = vrot.slane %v2565, 7
        %v2596 = vrot.slane %v2566, 7
        %v2597 = vrot.slane %v2567, 7
        %v2598 = vrot.slane %v2568, 7
        %v2599 = vrot.slane %v2569, 7
        %v2600 = vrot.slane %v2570, 7
        %v2601 = vrot.slane %v2571, 7
        %v2602 = vrot.slane %v2572, 7
        %v2603 = vrot.slane %v2573, 7
        %v2604 = vrot.slane %v2574, 7
        %v2605 = vrot.slane %v2575, 7
        %v2606 = vrot.slane %v2576, 7
        %v2607 = vrot.slane %v2577, 7
        %v2608 = vrot.slane %v2578, 7
        %v2609 = vrot.slane %v2579, 7
        %v2610 = vrot.slane %v2580, 7
        %v2611 = vrot.slane %v2581, 7
        %v2612 = vrot.slane %v2582, 7
        %v2613 = vrot.slane %v2583, 7
        %v2614 = vrot.slane %v2584, 7
        %v2615 = vrot.slane %v2585, 7
        %v2616 = vrot.slane %v2586, 7
        %v2617 = vrot.slane %v2587, 7
        %v2618 = vrot.slane %v2588, 7
        %v2619 = vrot.slane %v2589, 7
        %v2620 = vrot.slane %v2590, 7
        %vm2621 = vcmp.lt.s32.totalorder %v504, 1
        %v2622 = vsel %vm2621, %v2619, %v2620
        %v2623 = vsel %vm2621, %v2618, %v2619
        %v2624 = vsel %vm2621, %v2617, %v2618
        %v2625 = vsel %vm2621, %v2616, %v2617
        %v2626 = vsel %vm2621, %v2615, %v2616
        %v2627 = vsel %vm2621, %v2614, %v2615
        %v2628 = vsel %vm2621, %v2613, %v2614
        %v2629 = vsel %vm2621, %v2612, %v2613
        %v2630 = vsel %vm2621, %v2611, %v2612
        %v2631 = vsel %vm2621, %v2610, %v2611
        %v2632 = vsel %vm2621, %v2609, %v2610
        %v2633 = vsel %vm2621, %v2608, %v2609
        %v2634 = vsel %vm2621, %v2607, %v2608
        %v2635 = vsel %vm2621, %v2606, %v2607
        %v2636 = vsel %vm2621, %v2605, %v2606
        %v2637 = vsel %vm2621, %v2604, %v2605
        %v2638 = vsel %vm2621, %v2603, %v2604
        %v2639 = vsel %vm2621, %v2602, %v2603
        %v2640 = vsel %vm2621, %v2601, %v2602
        %v2641 = vsel %vm2621, %v2600, %v2601
        %v2642 = vsel %vm2621, %v2599, %v2600
        %v2643 = vsel %vm2621, %v2598, %v2599
        %v2644 = vsel %vm2621, %v2597, %v2598
        %v2645 = vsel %vm2621, %v2596, %v2597
        %v2646 = vsel %vm2621, %v2595, %v2596
        %v2647 = vsel %vm2621, %v2594, %v2595
        %v2648 = vsel %vm2621, %v2593, %v2594
        %v2649 = vsel %vm2621, %v2592, %v2593
        %v2650 = vsel %vm2621, %v2591, %v2592
        %v2651 = vsel %vm2621, %v2620, %v2591
        %2652 = vst.msk [vmem:[#allocation3] sm:$0xff] %vm394, %v2651
        %2653 = vst.msk [vmem:[#allocation3 + $0x8] sm:$0xff] %vm394, %v2650
        %2654 = vst.msk [vmem:[#allocation3 + $0x10] sm:$0xff] %vm394, %v2649
        %2655 = vst.msk [vmem:[#allocation3 + $0x18] sm:$0xff] %vm394, %v2648
        %2656 = vst.msk [vmem:[#allocation3 + $0x20] sm:$0xff] %vm394, %v2647
        %2657 = vst.msk [vmem:[#allocation3 + $0x28] sm:$0xff] %vm394, %v2646
        %2658 = vst.msk [vmem:[#allocation3 + $0x30] sm:$0xff] %vm394, %v2645
        %2659 = vst.msk [vmem:[#allocation3 + $0x38] sm:$0xff] %vm394, %v2644
        %2660 = vst.msk [vmem:[#allocation3 + $0x40] sm:$0xff] %vm394, %v2643
        %2661 = vst.msk [vmem:[#allocation3 + $0x48] sm:$0xff] %vm394, %v2642
        %2662 = vst.msk [vmem:[#allocation3 + $0x50] sm:$0xff] %vm394, %v2641
        %2663 = vst.msk [vmem:[#allocation3 + $0x58] sm:$0xff] %vm394, %v2640
        %2664 = vst.msk [vmem:[#allocation3 + $0x60] sm:$0xff] %vm394, %v2639
        %2665 = vst.msk [vmem:[#allocation3 + $0x68] sm:$0xff] %vm394, %v2638
        %2666 = vst.msk [vmem:[#allocation3 + $0x70] sm:$0xff] %vm394, %v2637
        %2667 = vst.msk [vmem:[#allocation3 + $0x78] sm:$0xff] %vm394, %v2636
        %2668 = vst.msk [vmem:[#allocation3 + $0x80] sm:$0xff] %vm394, %v2635
        %2669 = vst.msk [vmem:[#allocation3 + $0x88] sm:$0xff] %vm394, %v2634
        %2670 = vst.msk [vmem:[#allocation3 + $0x90] sm:$0xff] %vm394, %v2633
        %2671 = vst.msk [vmem:[#allocation3 + $0x98] sm:$0xff] %vm394, %v2632
        %2672 = vst.msk [vmem:[#allocation3 + $0xa0] sm:$0xff] %vm394, %v2631
        %2673 = vst.msk [vmem:[#allocation3 + $0xa8] sm:$0xff] %vm394, %v2630
        %2674 = vst.msk [vmem:[#allocation3 + $0xb0] sm:$0xff] %vm394, %v2629
        %2675 = vst.msk [vmem:[#allocation3 + $0xb8] sm:$0xff] %vm394, %v2628
        %2676 = vst.msk [vmem:[#allocation3 + $0xc0] sm:$0xff] %vm394, %v2627
        %2677 = vst.msk [vmem:[#allocation3 + $0xc8] sm:$0xff] %vm394, %v2626
        %2678 = vst.msk [vmem:[#allocation3 + $0xd0] sm:$0xff] %vm394, %v2625
        %2679 = vst.msk [vmem:[#allocation3 + $0xd8] sm:$0xff] %vm394, %v2624
        %2680 = vst.msk [vmem:[#allocation3 + $0xe0] sm:$0xff] %vm394, %v2623
        %2681 = vst.msk [vmem:[#allocation3 + $0xe8] sm:$0xff] %vm394, %v2622
        %p2682 = scmp.eq.s32.totalorder %s31, 0
        // Predicated region
        $region61: #{tpu_custom_call.1} parent=39 // pred_check
          %p2683 = pneg %p2682
        $region62: #{tpu_custom_call.1} parent=39 // pred_check_branch
          %2685 = sbr.rel (%p2683) target = $region64
        $region63: #{tpu_custom_call.1} parent=39 // pred_region
          %2686 = vst.msk [vmem:[#allocation3] sm:$0xff] %vm394, 0.0
          %2687 = vst.msk [vmem:[#allocation3 + $0x8] sm:$0xff] %vm394, 0.0
          %2688 = vst.msk [vmem:[#allocation3 + $0x10] sm:$0xff] %vm394, 0.0
        $region64: #{tpu_custom_call.1} parent=39 // pred_fallthru
          _
        %p2689 = scmp.eq.s32.totalorder %s31, 1
        // Predicated region
        $region65: #{tpu_custom_call.1} parent=39 // pred_check
          %p2690 = pneg %p2689
        $region66: #{tpu_custom_call.1} parent=39 // pred_check_branch
          %2692 = sbr.rel (%p2690) target = $region68
        $region67: #{tpu_custom_call.1} parent=39 // pred_region
          %2693 = vst.msk [vmem:[#allocation3 + $0xd8] sm:$0xff] %vm394, 0.0
          %2694 = vst.msk [vmem:[#allocation3 + $0xe0] sm:$0xff] %vm394, 0.0
          %2695 = vst.msk [vmem:[#allocation3 + $0xe8] sm:$0xff] %vm394, 0.0
        $region68: #{tpu_custom_call.1} parent=39 // pred_fallthru
          _
        %v2696 = vld [vmem:[#allocation3] sm:$0xff]
        %v2697 = vld [vmem:[#allocation3 + $0x8] sm:$0xff]
        %v2698 = vld [vmem:[#allocation3 + $0x10] sm:$0xff]
        %v2699 = vld [vmem:[#allocation3 + $0x18] sm:$0xff]
        %v2700 = vld [vmem:[#allocation3 + $0x20] sm:$0xff]
        %v2701 = vld [vmem:[#allocation3 + $0x28] sm:$0xff]
        %v2702 = vld [vmem:[#allocation3 + $0x30] sm:$0xff]
        %v2703 = vld [vmem:[#allocation3 + $0x38] sm:$0xff]
        %v2704 = vld [vmem:[#allocation3 + $0x40] sm:$0xff]
        %v2705 = vld [vmem:[#allocation3 + $0x48] sm:$0xff]
        %v2706 = vld [vmem:[#allocation3 + $0x50] sm:$0xff]
        %v2707 = vld [vmem:[#allocation3 + $0x58] sm:$0xff]
        %v2708 = vld [vmem:[#allocation3 + $0x60] sm:$0xff]
        %v2709 = vld [vmem:[#allocation3 + $0x68] sm:$0xff]
        %v2710 = vld [vmem:[#allocation3 + $0x70] sm:$0xff]
        %v2711 = vld [vmem:[#allocation3 + $0x78] sm:$0xff]
        %v2712 = vld [vmem:[#allocation3 + $0x80] sm:$0xff]
        %v2713 = vld [vmem:[#allocation3 + $0x88] sm:$0xff]
        %v2714 = vld [vmem:[#allocation3 + $0x90] sm:$0xff]
        %v2715 = vld [vmem:[#allocation3 + $0x98] sm:$0xff]
        %v2716 = vld [vmem:[#allocation3 + $0xa0] sm:$0xff]
        %v2717 = vld [vmem:[#allocation3 + $0xa8] sm:$0xff]
        %v2718 = vld [vmem:[#allocation3 + $0xb0] sm:$0xff]
        %v2719 = vld [vmem:[#allocation3 + $0xb8] sm:$0xff]
        %v2720 = vrot.slane %v2696, 1
        %v2721 = vrot.slane %v2697, 1
        %v2722 = vrot.slane %v2698, 1
        %v2723 = vrot.slane %v2699, 1
        %v2724 = vrot.slane %v2700, 1
        %v2725 = vrot.slane %v2701, 1
        %v2726 = vrot.slane %v2702, 1
        %v2727 = vrot.slane %v2703, 1
        %v2728 = vrot.slane %v2704, 1
        %v2729 = vrot.slane %v2705, 1
        %v2730 = vrot.slane %v2706, 1
        %v2731 = vrot.slane %v2707, 1
        %v2732 = vrot.slane %v2708, 1
        %v2733 = vrot.slane %v2709, 1
        %v2734 = vrot.slane %v2710, 1
        %v2735 = vrot.slane %v2711, 1
        %v2736 = vrot.slane %v2712, 1
        %v2737 = vrot.slane %v2713, 1
        %v2738 = vrot.slane %v2714, 1
        %v2739 = vrot.slane %v2715, 1
        %v2740 = vrot.slane %v2716, 1
        %v2741 = vrot.slane %v2717, 1
        %v2742 = vrot.slane %v2718, 1
        %v2743 = vrot.slane %v2719, 1
        %v2744 = vsel %vm505, %v2742, %v2743
        %v2745 = vsel %vm505, %v2741, %v2742
        %v2746 = vsel %vm505, %v2740, %v2741
        %v2747 = vsel %vm505, %v2739, %v2740
        %v2748 = vsel %vm505, %v2738, %v2739
        %v2749 = vsel %vm505, %v2737, %v2738
        %v2750 = vsel %vm505, %v2736, %v2737
        %v2751 = vsel %vm505, %v2735, %v2736
        %v2752 = vsel %vm505, %v2734, %v2735
        %v2753 = vsel %vm505, %v2733, %v2734
        %v2754 = vsel %vm505, %v2732, %v2733
        %v2755 = vsel %vm505, %v2731, %v2732
        %v2756 = vsel %vm505, %v2730, %v2731
        %v2757 = vsel %vm505, %v2729, %v2730
        %v2758 = vsel %vm505, %v2728, %v2729
        %v2759 = vsel %vm505, %v2727, %v2728
        %v2760 = vsel %vm505, %v2726, %v2727
        %v2761 = vsel %vm505, %v2725, %v2726
        %v2762 = vsel %vm505, %v2724, %v2725
        %v2763 = vsel %vm505, %v2723, %v2724
        %v2764 = vsel %vm505, %v2722, %v2723
        %v2765 = vsel %vm505, %v2721, %v2722
        %v2766 = vsel %vm505, %v2720, %v2721
        %v2767 = vsel %vm505, %v2743, %v2720
        %v2768 = vrot.slane %v2696, 2
        %v2769 = vrot.slane %v2697, 2
        %v2770 = vrot.slane %v2698, 2
        %v2771 = vrot.slane %v2699, 2
        %v2772 = vrot.slane %v2700, 2
        %v2773 = vrot.slane %v2701, 2
        %v2774 = vrot.slane %v2702, 2
        %v2775 = vrot.slane %v2703, 2
        %v2776 = vrot.slane %v2704, 2
        %v2777 = vrot.slane %v2705, 2
        %v2778 = vrot.slane %v2706, 2
        %v2779 = vrot.slane %v2707, 2
        %v2780 = vrot.slane %v2708, 2
        %v2781 = vrot.slane %v2709, 2
        %v2782 = vrot.slane %v2710, 2
        %v2783 = vrot.slane %v2711, 2
        %v2784 = vrot.slane %v2712, 2
        %v2785 = vrot.slane %v2713, 2
        %v2786 = vrot.slane %v2714, 2
        %v2787 = vrot.slane %v2715, 2
        %v2788 = vrot.slane %v2716, 2
        %v2789 = vrot.slane %v2717, 2
        %v2790 = vrot.slane %v2718, 2
        %v2791 = vrot.slane %v2719, 2
        %v2792 = vsel %vm566, %v2790, %v2791
        %v2793 = vsel %vm566, %v2789, %v2790
        %v2794 = vsel %vm566, %v2788, %v2789
        %v2795 = vsel %vm566, %v2787, %v2788
        %v2796 = vsel %vm566, %v2786, %v2787
        %v2797 = vsel %vm566, %v2785, %v2786
        %v2798 = vsel %vm566, %v2784, %v2785
        %v2799 = vsel %vm566, %v2783, %v2784
        %v2800 = vsel %vm566, %v2782, %v2783
        %v2801 = vsel %vm566, %v2781, %v2782
        %v2802 = vsel %vm566, %v2780, %v2781
        %v2803 = vsel %vm566, %v2779, %v2780
        %v2804 = vsel %vm566, %v2778, %v2779
        %v2805 = vsel %vm566, %v2777, %v2778
        %v2806 = vsel %vm566, %v2776, %v2777
        %v2807 = vsel %vm566, %v2775, %v2776
        %v2808 = vsel %vm566, %v2774, %v2775
        %v2809 = vsel %vm566, %v2773, %v2774
        %v2810 = vsel %vm566, %v2772, %v2773
        %v2811 = vsel %vm566, %v2771, %v2772
        %v2812 = vsel %vm566, %v2770, %v2771
        %v2813 = vsel %vm566, %v2769, %v2770
        %v2814 = vsel %vm566, %v2768, %v2769
        %v2815 = vsel %vm566, %v2791, %v2768
        %2840 = vrot.lane.b32.xlu0 %v2766, 64
        %v2841 = vpop.permute.xlu0 %2840
        %2842 = vrot.lane.b32.xlu0 %v2765, 64
        %v2843 = vpop.permute.xlu0 %2842
        %2844 = vrot.lane.b32.xlu0 %v2764, 64
        %v2845 = vpop.permute.xlu0 %2844
        %2846 = vrot.lane.b32.xlu0 %v2763, 64
        %v2847 = vpop.permute.xlu0 %2846
        %2848 = vrot.lane.b32.xlu0 %v2762, 64
        %v2849 = vpop.permute.xlu0 %2848
        %2850 = vrot.lane.b32.xlu0 %v2761, 64
        %v2851 = vpop.permute.xlu0 %2850
        %2852 = vrot.lane.b32.xlu0 %v2760, 64
        %v2853 = vpop.permute.xlu0 %2852
        %2854 = vrot.lane.b32.xlu0 %v2759, 64
        %v2855 = vpop.permute.xlu0 %2854
        %2856 = vrot.lane.b32.xlu0 %v2758, 64
        %v2857 = vpop.permute.xlu0 %2856
        %2858 = vrot.lane.b32.xlu0 %v2757, 64
        %v2859 = vpop.permute.xlu0 %2858
        %2860 = vrot.lane.b32.xlu0 %v2756, 64
        %v2861 = vpop.permute.xlu0 %2860
        %2862 = vrot.lane.b32.xlu0 %v2755, 64
        %v2863 = vpop.permute.xlu0 %2862
        %2864 = vrot.lane.b32.xlu0 %v2754, 64
        %v2865 = vpop.permute.xlu0 %2864
        %2866 = vrot.lane.b32.xlu0 %v2753, 64
        %v2867 = vpop.permute.xlu0 %2866
        %2868 = vrot.lane.b32.xlu0 %v2752, 64
        %v2869 = vpop.permute.xlu0 %2868
        %2870 = vrot.lane.b32.xlu0 %v2751, 64
        %v2871 = vpop.permute.xlu0 %2870
        %2872 = vrot.lane.b32.xlu0 %v2750, 64
        %v2873 = vpop.permute.xlu0 %2872
        %2874 = vrot.lane.b32.xlu0 %v2749, 64
        %v2875 = vpop.permute.xlu0 %2874
        %2876 = vrot.lane.b32.xlu0 %v2748, 64
        %v2877 = vpop.permute.xlu0 %2876
        %2878 = vrot.lane.b32.xlu0 %v2747, 64
        %v2879 = vpop.permute.xlu0 %2878
        %2880 = vrot.lane.b32.xlu0 %v2746, 64
        %v2881 = vpop.permute.xlu0 %2880
        %2882 = vrot.lane.b32.xlu0 %v2745, 64
        %v2883 = vpop.permute.xlu0 %2882
        %2884 = vrot.lane.b32.xlu0 %v2744, 64
        %v2885 = vpop.permute.xlu0 %2884
        %2886 = vrot.lane.b32.xlu0 %v2767, 64
        %v2887 = vpop.permute.xlu0 %2886
        %v2912 = vsel %vm394, %v2696, %v2841
        %v2913 = vsel %vm394, %v2697, %v2843
        %v2914 = vsel %vm394, %v2698, %v2845
        %v2915 = vsel %vm394, %v2699, %v2847
        %v2916 = vsel %vm394, %v2700, %v2849
        %v2917 = vsel %vm394, %v2701, %v2851
        %v2918 = vsel %vm394, %v2702, %v2853
        %v2919 = vsel %vm394, %v2703, %v2855
        %v2920 = vsel %vm394, %v2704, %v2857
        %v2921 = vsel %vm394, %v2705, %v2859
        %v2922 = vsel %vm394, %v2706, %v2861
        %v2923 = vsel %vm394, %v2707, %v2863
        %v2924 = vsel %vm394, %v2708, %v2865
        %v2925 = vsel %vm394, %v2709, %v2867
        %v2926 = vsel %vm394, %v2710, %v2869
        %v2927 = vsel %vm394, %v2711, %v2871
        %v2928 = vsel %vm394, %v2712, %v2873
        %v2929 = vsel %vm394, %v2713, %v2875
        %v2930 = vsel %vm394, %v2714, %v2877
        %v2931 = vsel %vm394, %v2715, %v2879
        %v2932 = vsel %vm394, %v2716, %v2881
        %v2933 = vsel %vm394, %v2717, %v2883
        %v2934 = vsel %vm394, %v2718, %v2885
        %v2935 = vsel %vm394, %v2719, %v2887
        %v2936 = vpack.c.bf16 %v2913, %v2912
        %v2937 = vpack.c.bf16 %v2813, %v2814
        %v2938 = vpack.c.bf16 %v2915, %v2914
        %v2939 = vpack.c.bf16 %v2811, %v2812
        %v2940 = vpack.c.bf16 %v2917, %v2916
        %v2941 = vpack.c.bf16 %v2809, %v2810
        %v2942 = vpack.c.bf16 %v2919, %v2918
        %v2943 = vpack.c.bf16 %v2807, %v2808
        %v2944 = vpack.c.bf16 %v2921, %v2920
        %v2945 = vpack.c.bf16 %v2805, %v2806
        %v2946 = vpack.c.bf16 %v2923, %v2922
        %v2947 = vpack.c.bf16 %v2803, %v2804
        %v2948 = vpack.c.bf16 %v2925, %v2924
        %v2949 = vpack.c.bf16 %v2801, %v2802
        %v2950 = vpack.c.bf16 %v2927, %v2926
        %v2951 = vpack.c.bf16 %v2799, %v2800
        %v2952 = vpack.c.bf16 %v2929, %v2928
        %v2953 = vpack.c.bf16 %v2797, %v2798
        %v2954 = vpack.c.bf16 %v2931, %v2930
        %v2955 = vpack.c.bf16 %v2795, %v2796
        %v2956 = vpack.c.bf16 %v2933, %v2932
        %v2957 = vpack.c.bf16 %v2793, %v2794
        %v2958 = vpack.c.bf16 %v2935, %v2934
        %v2959 = vpack.c.bf16 %v2815, %v2792
        %v2960 = vld [vmem:[#allocation12] sm:$0xf]
        %v2961 = vld [vmem:[#allocation12 + $0x4] sm:$0xf]
        %v2962 = vld [vmem:[#allocation12 + $0x8] sm:$0xf]
        %v2963 = vld [vmem:[#allocation12 + $0xc] sm:$0xf]
        %v2964 = vld [vmem:[#allocation12 + $0x10] sm:$0xf]
        %v2965 = vld [vmem:[#allocation12 + $0x14] sm:$0xf]
        %v2966 = vld [vmem:[#allocation12 + $0x18] sm:$0xf]
        %v2967 = vld [vmem:[#allocation12 + $0x1c] sm:$0xf]
        %v2968 = vld [vmem:[#allocation12 + $0x20] sm:$0xf]
        %v2969 = vld [vmem:[#allocation12 + $0x24] sm:$0xf]
        %v2970 = vld [vmem:[#allocation12 + $0x28] sm:$0xf]
        %v2971 = vld [vmem:[#allocation12 + $0x2c] sm:$0xf]
        %v2972 = vld [vmem:[#allocation12 + $0x30] sm:$0xf]
        %v2973 = vld [vmem:[#allocation12 + $0x34] sm:$0xf]
        %v2974 = vld [vmem:[#allocation12 + $0x38] sm:$0xf]
        %v2975 = vld [vmem:[#allocation12 + $0x3c] sm:$0xf]
        %v2976 = vld [vmem:[#allocation12 + $0x40] sm:$0xf]
        %v2977 = vld [vmem:[#allocation12 + $0x44] sm:$0xf]
        %v2978 = vld [vmem:[#allocation12 + $0x48] sm:$0xf]
        %v2979 = vld [vmem:[#allocation12 + $0x4c] sm:$0xf]
        %v2980 = vld [vmem:[#allocation12 + $0x50] sm:$0xf]
        %v2981 = vld [vmem:[#allocation12 + $0x54] sm:$0xf]
        %v2982 = vld [vmem:[#allocation12 + $0x58] sm:$0xf]
        %v2983 = vld [vmem:[#allocation12 + $0x5c] sm:$0xf]
        %v2984 = vld [vmem:[#allocation3 + $0xc0] sm:$0xff]
        %v2985 = vld [vmem:[#allocation3 + $0xc8] sm:$0xff]
        %v2986 = vld [vmem:[#allocation3 + $0xd0] sm:$0xff]
        %v2987 = vrot.slane %v2984, 1
        %v2988 = vrot.slane %v2985, 1
        %v2989 = vrot.slane %v2986, 1
        %v2990 = vsel %vm505, %v2988, %v2989
        %v2991 = vsel %vm505, %v2987, %v2988
        %v2992 = vsel %vm505, %v2743, %v2987
        %v2993 = vsel %vm505, %v2989, %v2723
        %v2994 = vrot.slane %v2984, 2
        %v2995 = vrot.slane %v2985, 2
        %v2996 = vrot.slane %v2986, 2
        %v2997 = vsel %vm566, %v2995, %v2996
        %v2998 = vsel %vm566, %v2994, %v2995
        %v2999 = vsel %vm566, %v2791, %v2994
        %v3000 = vsel %vm566, %v2996, %v2771
        %3005 = vrot.lane.b32.xlu0 %v2992, 64
        %v3006 = vpop.permute.xlu0 %3005
        %3007 = vrot.lane.b32.xlu0 %v2991, 64
        %v3008 = vpop.permute.xlu0 %3007
        %3009 = vrot.lane.b32.xlu0 %v2990, 64
        %v3010 = vpop.permute.xlu0 %3009
        %3011 = vrot.lane.b32.xlu0 %v2993, 64
        %v3012 = vpop.permute.xlu0 %3011
        %v3017 = vsel %vm394, %v2719, %v3006
        %v3018 = vsel %vm394, %v2984, %v3008
        %v3019 = vsel %vm394, %v2985, %v3010
        %v3020 = vsel %vm394, %v2986, %v3012
        %v3021 = vpack.c.bf16 %v2916, %v2915
        %v3022 = vpack.c.bf16 %v2810, %v2811
        %v3023 = vpack.c.bf16 %v2918, %v2917
        %v3024 = vpack.c.bf16 %v2808, %v2809
        %v3025 = vpack.c.bf16 %v2920, %v2919
        %v3026 = vpack.c.bf16 %v2806, %v2807
        %v3027 = vpack.c.bf16 %v2922, %v2921
        %v3028 = vpack.c.bf16 %v2804, %v2805
        %v3029 = vpack.c.bf16 %v2924, %v2923
        %v3030 = vpack.c.bf16 %v2802, %v2803
        %v3031 = vpack.c.bf16 %v2926, %v2925
        %v3032 = vpack.c.bf16 %v2800, %v2801
        %v3033 = vpack.c.bf16 %v2928, %v2927
        %v3034 = vpack.c.bf16 %v2798, %v2799
        %v3035 = vpack.c.bf16 %v2930, %v2929
        %v3036 = vpack.c.bf16 %v2796, %v2797
        %v3037 = vpack.c.bf16 %v2932, %v2931
        %v3038 = vpack.c.bf16 %v2794, %v2795
        %v3039 = vpack.c.bf16 %v2934, %v2933
        %v3040 = vpack.c.bf16 %v2792, %v2793
        %v3041 = vpack.c.bf16 %v3018, %v3017
        %v3042 = vpack.c.bf16 %v2998, %v2999
        %v3043 = vpack.c.bf16 %v3020, %v3019
        %v3044 = vpack.c.bf16 %v3000, %v2997
        %s3045 = scalar_lea.vmem [#allocation12], 96
        %v3046 = vld [vmem:[%s3045] sm:$0xf]
        %v3047 = vld [vmem:[%s3045 + $0x4] sm:$0xf]
        %v3048 = vld [vmem:[%s3045 + $0x8] sm:$0xf]
        %v3049 = vld [vmem:[%s3045 + $0xc] sm:$0xf]
        %v3050 = vld [vmem:[%s3045 + $0x10] sm:$0xf]
        %v3051 = vld [vmem:[%s3045 + $0x14] sm:$0xf]
        %v3052 = vld [vmem:[%s3045 + $0x18] sm:$0xf]
        %v3053 = vld [vmem:[%s3045 + $0x1c] sm:$0xf]
        %v3054 = vld [vmem:[%s3045 + $0x20] sm:$0xf]
        %v3055 = vld [vmem:[%s3045 + $0x24] sm:$0xf]
        %v3056 = vld [vmem:[%s3045 + $0x28] sm:$0xf]
        %v3057 = vld [vmem:[%s3045 + $0x2c] sm:$0xf]
        %v3058 = vld [vmem:[%s3045 + $0x30] sm:$0xf]
        %v3059 = vld [vmem:[%s3045 + $0x34] sm:$0xf]
        %v3060 = vld [vmem:[%s3045 + $0x38] sm:$0xf]
        %v3061 = vld [vmem:[%s3045 + $0x3c] sm:$0xf]
        %v3062 = vld [vmem:[%s3045 + $0x40] sm:$0xf]
        %v3063 = vld [vmem:[%s3045 + $0x44] sm:$0xf]
        %v3064 = vld [vmem:[%s3045 + $0x48] sm:$0xf]
        %v3065 = vld [vmem:[%s3045 + $0x4c] sm:$0xf]
        %v3066 = vld [vmem:[%s3045 + $0x50] sm:$0xf]
        %v3067 = vld [vmem:[%s3045 + $0x54] sm:$0xf]
        %v3068 = vld [vmem:[%s3045 + $0x58] sm:$0xf]
        %v3069 = vld [vmem:[%s3045 + $0x5c] sm:$0xf]
        %v3094 = vunpack.c.l.b16 %v3046
        %v3095 = vunpack.c.l.b16 %v3047
        %v3096 = vunpack.c.l.b16 %v3048
        %v3097 = vunpack.c.l.b16 %v3049
        %v3098 = vunpack.c.l.b16 %v3050
        %v3099 = vunpack.c.l.b16 %v3051
        %v3100 = vunpack.c.l.b16 %v3052
        %v3101 = vunpack.c.l.b16 %v3053
        %v3102 = vunpack.c.l.b16 %v3054
        %v3103 = vunpack.c.l.b16 %v3055
        %v3104 = vunpack.c.l.b16 %v3056
        %v3105 = vunpack.c.l.b16 %v3057
        %v3106 = vunpack.c.l.b16 %v3058
        %v3107 = vunpack.c.l.b16 %v3059
        %v3108 = vunpack.c.l.b16 %v3060
        %v3109 = vunpack.c.l.b16 %v3061
        %v3110 = vunpack.c.l.b16 %v3062
        %v3111 = vunpack.c.l.b16 %v3063
        %v3112 = vunpack.c.l.b16 %v3064
        %v3113 = vunpack.c.l.b16 %v3065
        %v3114 = vunpack.c.l.b16 %v3066
        %v3115 = vunpack.c.l.b16 %v3067
        %v3116 = vunpack.c.l.b16 %v3068
        %v3117 = vunpack.c.l.b16 %v3069
        %v3118 = vpack.c.b16 %v3095, %v3094
        %v3119 = vpack.c.b16 %v3097, %v3096
        %v3120 = vpack.c.b16 %v3099, %v3098
        %v3121 = vpack.c.b16 %v3101, %v3100
        %v3122 = vpack.c.b16 %v3103, %v3102
        %v3123 = vpack.c.b16 %v3105, %v3104
        %v3124 = vpack.c.b16 %v3107, %v3106
        %v3125 = vpack.c.b16 %v3109, %v3108
        %v3126 = vpack.c.b16 %v3111, %v3110
        %v3127 = vpack.c.b16 %v3113, %v3112
        %v3128 = vpack.c.b16 %v3115, %v3114
        %v3129 = vpack.c.b16 %v3117, %v3116
        %v3143 = vsel %vm394, %v3022, 0
        %v3146 = vsel %vm394, %v3024, 0
        %v3149 = vsel %vm394, %v3026, 0
        %v3152 = vsel %vm394, %v3028, 0
        %v3155 = vsel %vm394, %v3030, 0
        %v3158 = vsel %vm394, %v3032, 0
        %v3161 = vsel %vm394, %v3034, 0
        %v3164 = vsel %vm394, %v3036, 0
        %v3167 = vsel %vm394, %v3038, 0
        %v3170 = vsel %vm394, %v3040, 0
        %v3173 = vsel %vm394, %v3042, 0
        %v3176 = vsel %vm394, %v3044, 0
        %3178 = vmatprep.subr.bf16.mxu0 0
        %3179 = vmatpush1.bf16.msra.mxu0 %v3118
        %3180 = vmatprep.subr.bf16.mxu0 0
        %3181 = vmatpush1.bf16.msra.mxu0 %v3119
        %3182 = vmatprep.subr.bf16.mxu0 0
        %3183 = vmatpush1.bf16.msra.mxu0 %v3120
        %3184 = vmatprep.subr.bf16.mxu0 0
        %3185 = vmatpush1.bf16.msra.mxu0 %v3121
        %3186 = vmatprep.subr.bf16.mxu0 0
        %3187 = vmatpush1.bf16.msra.mxu0 %v3122
        %3188 = vmatprep.subr.bf16.mxu0 0
        %3189 = vmatpush1.bf16.msra.mxu0 %v3123
        %3190 = vmatprep.subr.bf16.mxu0 0
        %3191 = vmatpush1.bf16.msra.mxu0 %v3124
        %3192 = vmatprep.subr.bf16.mxu0 0
        %3193 = vmatpush1.bf16.msra.mxu0 %v3125
        %3194 = vmatprep.subr.bf16.mxu0 0
        %3195 = vmatpush1.bf16.msra.mxu0 %v3126
        %3196 = vmatprep.subr.bf16.mxu0 0
        %3197 = vmatpush1.bf16.msra.mxu0 %v3127
        %3198 = vmatprep.subr.bf16.mxu0 0
        %3199 = vmatpush1.bf16.msra.mxu0 %v3128
        %3200 = vmatprep.subr.bf16.mxu0 0
        %3201 = vmatpush1.bf16.msra.mxu0 %v3129
        %3202 = vmatprep.subr.bf16.mxu0 0
        %3203 = vmatpush1.bf16.msra.mxu0 0
        %3204 = vmatprep.subr.bf16.mxu0 0
        %3205 = vmatpush1.bf16.msra.mxu0 0
        %3206 = vmatprep.subr.bf16.mxu0 0
        %3207 = vmatpush1.bf16.msra.mxu0 0
        %3208 = vmatprep.subr.bf16.mxu0 0
        %3209 = vmatpush1.bf16.msra.mxu0 0
        %3210 = vmatprep.mubr.bf16.mxu0 %v3143
        %3211 = vmatmul.mubr.bf16.gmra.mrb[0].mxu0 %v3021
        %v3212 = vpop.f32.mrb[0].mxu0
        %v3213 = vadd.f32 0.0, %v3212
        %v3214 = vpop.f32.mrb[0].mxu0
        %v3215 = vpop.f32.mrb[0].mxu0
        %v3216 = vadd.f32 0.0, %v3215
        %v3217 = vpop.f32.mrb[0].mxu0
        %3218 = vmatprep.mubr.bf16.mxu0 %v3146
        %3219 = vmatmul.mubr.bf16.gmra.mrb[0].mxu0 %v3023
        %v3220 = vpop.f32.mrb[0].mxu0
        %v3221 = vadd.f32 0.0, %v3220
        %v3222 = vpop.f32.mrb[0].mxu0
        %v3223 = vpop.f32.mrb[0].mxu0
        %v3224 = vadd.f32 0.0, %v3223
        %v3225 = vpop.f32.mrb[0].mxu0
        %3226 = vmatprep.mubr.bf16.mxu0 %v3149
        %3227 = vmatmul.mubr.bf16.gmra.mrb[0].mxu0 %v3025
        %v3228 = vpop.f32.mrb[0].mxu0
        %v3229 = vadd.f32 0.0, %v3228
        %v3230 = vpop.f32.mrb[0].mxu0
        %v3231 = vpop.f32.mrb[0].mxu0
        %v3232 = vadd.f32 0.0, %v3231
        %v3233 = vpop.f32.mrb[0].mxu0
        %3234 = vmatprep.mubr.bf16.mxu0 %v3152
        %3235 = vmatmul.mubr.bf16.gmra.mrb[0].mxu0 %v3027
        %v3236 = vpop.f32.mrb[0].mxu0
        %v3237 = vadd.f32 0.0, %v3236
        %v3238 = vpop.f32.mrb[0].mxu0
        %v3239 = vpop.f32.mrb[0].mxu0
        %v3240 = vadd.f32 0.0, %v3239
        %v3241 = vpop.f32.mrb[0].mxu0
        %3242 = vmatprep.mubr.bf16.mxu0 %v3155
        %3243 = vmatmul.mubr.bf16.gmra.mrb[0].mxu0 %v3029
        %v3244 = vpop.f32.mrb[0].mxu0
        %v3245 = vadd.f32 0.0, %v3244
        %v3246 = vpop.f32.mrb[0].mxu0
        %v3247 = vpop.f32.mrb[0].mxu0
        %v3248 = vadd.f32 0.0, %v3247
        %v3249 = vpop.f32.mrb[0].mxu0
        %3250 = vmatprep.mubr.bf16.mxu0 %v3158
        %3251 = vmatmul.mubr.bf16.gmra.mrb[0].mxu0 %v3031
        %v3252 = vpop.f32.mrb[0].mxu0
        %v3253 = vadd.f32 0.0, %v3252
        %v3254 = vpop.f32.mrb[0].mxu0
        %v3255 = vpop.f32.mrb[0].mxu0
        %v3256 = vadd.f32 0.0, %v3255
        %v3257 = vpop.f32.mrb[0].mxu0
        %3258 = vmatprep.mubr.bf16.mxu0 %v3161
        %3259 = vmatmul.mubr.bf16.gmra.mrb[0].mxu0 %v3033
        %v3260 = vpop.f32.mrb[0].mxu0
        %v3261 = vadd.f32 0.0, %v3260
        %v3262 = vpop.f32.mrb[0].mxu0
        %v3263 = vpop.f32.mrb[0].mxu0
        %v3264 = vadd.f32 0.0, %v3263
        %v3265 = vpop.f32.mrb[0].mxu0
        %3266 = vmatprep.mubr.bf16.mxu0 %v3164
        %3267 = vmatmul.mubr.bf16.gmra.mrb[0].mxu0 %v3035
        %v3268 = vpop.f32.mrb[0].mxu0
        %v3269 = vadd.f32 0.0, %v3268
        %v3270 = vpop.f32.mrb[0].mxu0
        %v3271 = vpop.f32.mrb[0].mxu0
        %v3272 = vadd.f32 0.0, %v3271
        %v3273 = vpop.f32.mrb[0].mxu0
        %3274 = vmatprep.mubr.bf16.mxu0 %v3167
        %3275 = vmatmul.mubr.bf16.gmra.mrb[0].mxu0 %v3037
        %v3276 = vpop.f32.mrb[0].mxu0
        %v3277 = vadd.f32 0.0, %v3276
        %v3278 = vpop.f32.mrb[0].mxu0
        %v3279 = vpop.f32.mrb[0].mxu0
        %v3280 = vadd.f32 0.0, %v3279
        %v3281 = vpop.f32.mrb[0].mxu0
        %3282 = vmatprep.mubr.bf16.mxu0 %v3170
        %3283 = vmatmul.mubr.bf16.gmra.mrb[0].mxu0 %v3039
        %v3284 = vpop.f32.mrb[0].mxu0
        %v3285 = vadd.f32 0.0, %v3284
        %v3286 = vpop.f32.mrb[0].mxu0
        %v3287 = vpop.f32.mrb[0].mxu0
        %v3288 = vadd.f32 0.0, %v3287
        %v3289 = vpop.f32.mrb[0].mxu0
        %3290 = vmatprep.mubr.bf16.mxu0 %v3173
        %3291 = vmatmul.mubr.bf16.gmra.mrb[0].mxu0 %v3041
        %v3292 = vpop.f32.mrb[0].mxu0
        %v3293 = vadd.f32 0.0, %v3292
        %v3294 = vpop.f32.mrb[0].mxu0
        %v3295 = vpop.f32.mrb[0].mxu0
        %v3296 = vadd.f32 0.0, %v3295
        %v3297 = vpop.f32.mrb[0].mxu0
        %3298 = vmatprep.mubr.bf16.mxu0 %v3176
        %3299 = vmatmul.mubr.bf16.gmra.mrb[0].mxu0 %v3043
        %v3300 = vpop.f32.mrb[0].mxu0
        %v3301 = vadd.f32 0.0, %v3300
        %v3302 = vpop.f32.mrb[0].mxu0
        %v3303 = vpop.f32.mrb[0].mxu0
        %v3304 = vadd.f32 0.0, %v3303
        %v3305 = vpop.f32.mrb[0].mxu0
        %3306 = vdwg.mxu0
        %v3331 = vunpack.c.l.b16 %v2960
        %v3332 = vunpack.c.l.b16 %v2961
        %v3333 = vunpack.c.l.b16 %v2962
        %v3334 = vunpack.c.l.b16 %v2963
        %v3335 = vunpack.c.l.b16 %v2964
        %v3336 = vunpack.c.l.b16 %v2965
        %v3337 = vunpack.c.l.b16 %v2966
        %v3338 = vunpack.c.l.b16 %v2967
        %v3339 = vunpack.c.l.b16 %v2968
        %v3340 = vunpack.c.l.b16 %v2969
        %v3341 = vunpack.c.l.b16 %v2970
        %v3342 = vunpack.c.l.b16 %v2971
        %v3343 = vunpack.c.l.b16 %v2972
        %v3344 = vunpack.c.l.b16 %v2973
        %v3345 = vunpack.c.l.b16 %v2974
        %v3346 = vunpack.c.l.b16 %v2975
        %v3347 = vunpack.c.l.b16 %v2976
        %v3348 = vunpack.c.l.b16 %v2977
        %v3349 = vunpack.c.l.b16 %v2978
        %v3350 = vunpack.c.l.b16 %v2979
        %v3351 = vunpack.c.l.b16 %v2980
        %v3352 = vunpack.c.l.b16 %v2981
        %v3353 = vunpack.c.l.b16 %v2982
        %v3354 = vunpack.c.l.b16 %v2983
        %v3355 = vpack.c.b16 %v3332, %v3331
        %v3356 = vpack.c.b16 %v3334, %v3333
        %v3357 = vpack.c.b16 %v3336, %v3335
        %v3358 = vpack.c.b16 %v3338, %v3337
        %v3359 = vpack.c.b16 %v3340, %v3339
        %v3360 = vpack.c.b16 %v3342, %v3341
        %v3361 = vpack.c.b16 %v3344, %v3343
        %v3362 = vpack.c.b16 %v3346, %v3345
        %v3363 = vpack.c.b16 %v3348, %v3347
        %v3364 = vpack.c.b16 %v3350, %v3349
        %v3365 = vpack.c.b16 %v3352, %v3351
        %v3366 = vpack.c.b16 %v3354, %v3353
        %v3380 = vsel %vm394, %v2937, 0
        %v3383 = vsel %vm394, %v2939, 0
        %v3386 = vsel %vm394, %v2941, 0
        %v3389 = vsel %vm394, %v2943, 0
        %v3392 = vsel %vm394, %v2945, 0
        %v3395 = vsel %vm394, %v2947, 0
        %v3398 = vsel %vm394, %v2949, 0
        %v3401 = vsel %vm394, %v2951, 0
        %v3404 = vsel %vm394, %v2953, 0
        %v3407 = vsel %vm394, %v2955, 0
        %v3410 = vsel %vm394, %v2957, 0
        %v3413 = vsel %vm394, %v2959, 0
        %3415 = vmatprep.subr.bf16.mxu0 0
        %3416 = vmatpush1.bf16.msra.mxu0 %v3355
        %3417 = vmatprep.subr.bf16.mxu0 0
        %3418 = vmatpush1.bf16.msra.mxu0 %v3356
        %3419 = vmatprep.subr.bf16.mxu0 0
        %3420 = vmatpush1.bf16.msra.mxu0 %v3357
        %3421 = vmatprep.subr.bf16.mxu0 0
        %3422 = vmatpush1.bf16.msra.mxu0 %v3358
        %3423 = vmatprep.subr.bf16.mxu0 0
        %3424 = vmatpush1.bf16.msra.mxu0 %v3359
        %3425 = vmatprep.subr.bf16.mxu0 0
        %3426 = vmatpush1.bf16.msra.mxu0 %v3360
        %3427 = vmatprep.subr.bf16.mxu0 0
        %3428 = vmatpush1.bf16.msra.mxu0 %v3361
        %3429 = vmatprep.subr.bf16.mxu0 0
        %3430 = vmatpush1.bf16.msra.mxu0 %v3362
        %3431 = vmatprep.subr.bf16.mxu0 0
        %3432 = vmatpush1.bf16.msra.mxu0 %v3363
        %3433 = vmatprep.subr.bf16.mxu0 0
        %3434 = vmatpush1.bf16.msra.mxu0 %v3364
        %3435 = vmatprep.subr.bf16.mxu0 0
        %3436 = vmatpush1.bf16.msra.mxu0 %v3365
        %3437 = vmatprep.subr.bf16.mxu0 0
        %3438 = vmatpush1.bf16.msra.mxu0 %v3366
        %3439 = vmatprep.subr.bf16.mxu0 0
        %3440 = vmatpush1.bf16.msra.mxu0 0
        %3441 = vmatprep.subr.bf16.mxu0 0
        %3442 = vmatpush1.bf16.msra.mxu0 0
        %3443 = vmatprep.subr.bf16.mxu0 0
        %3444 = vmatpush1.bf16.msra.mxu0 0
        %3445 = vmatprep.subr.bf16.mxu0 0
        %3446 = vmatpush1.bf16.msra.mxu0 0
        %3447 = vmatprep.mubr.bf16.mxu0 %v3380
        %3448 = vmatmul.mubr.bf16.gmra.mrb[0].mxu0 %v2936
        %v3449 = vpop.f32.mrb[0].mxu0
        %v3450 = vadd.f32 %v3213, %v3449
        %v3451 = vpop.f32.mrb[0].mxu0
        %v3452 = vpop.f32.mrb[0].mxu0
        %v3453 = vadd.f32 %v3216, %v3452
        %v3454 = vpop.f32.mrb[0].mxu0
        %3455 = vmatprep.mubr.bf16.mxu0 %v3383
        %3456 = vmatmul.mubr.bf16.gmra.mrb[0].mxu0 %v2938
        %v3457 = vpop.f32.mrb[0].mxu0
        %v3458 = vadd.f32 %v3221, %v3457
        %v3459 = vpop.f32.mrb[0].mxu0
        %v3460 = vpop.f32.mrb[0].mxu0
        %v3461 = vadd.f32 %v3224, %v3460
        %v3462 = vpop.f32.mrb[0].mxu0
        %3463 = vmatprep.mubr.bf16.mxu0 %v3386
        %3464 = vmatmul.mubr.bf16.gmra.mrb[0].mxu0 %v2940
        %v3465 = vpop.f32.mrb[0].mxu0
        %v3466 = vadd.f32 %v3229, %v3465
        %v3467 = vpop.f32.mrb[0].mxu0
        %v3468 = vpop.f32.mrb[0].mxu0
        %v3469 = vadd.f32 %v3232, %v3468
        %v3470 = vpop.f32.mrb[0].mxu0
        %3471 = vmatprep.mubr.bf16.mxu0 %v3389
        %3472 = vmatmul.mubr.bf16.gmra.mrb[0].mxu0 %v2942
        %v3473 = vpop.f32.mrb[0].mxu0
        %v3474 = vadd.f32 %v3237, %v3473
        %v3475 = vpop.f32.mrb[0].mxu0
        %v3476 = vpop.f32.mrb[0].mxu0
        %v3477 = vadd.f32 %v3240, %v3476
        %v3478 = vpop.f32.mrb[0].mxu0
        %3479 = vmatprep.mubr.bf16.mxu0 %v3392
        %3480 = vmatmul.mubr.bf16.gmra.mrb[0].mxu0 %v2944
        %v3481 = vpop.f32.mrb[0].mxu0
        %v3482 = vadd.f32 %v3245, %v3481
        %v3483 = vpop.f32.mrb[0].mxu0
        %v3484 = vpop.f32.mrb[0].mxu0
        %v3485 = vadd.f32 %v3248, %v3484
        %v3486 = vpop.f32.mrb[0].mxu0
        %3487 = vmatprep.mubr.bf16.mxu0 %v3395
        %3488 = vmatmul.mubr.bf16.gmra.mrb[0].mxu0 %v2946
        %v3489 = vpop.f32.mrb[0].mxu0
        %v3490 = vadd.f32 %v3253, %v3489
        %v3491 = vpop.f32.mrb[0].mxu0
        %v3492 = vpop.f32.mrb[0].mxu0
        %v3493 = vadd.f32 %v3256, %v3492
        %v3494 = vpop.f32.mrb[0].mxu0
        %3495 = vmatprep.mubr.bf16.mxu0 %v3398
        %3496 = vmatmul.mubr.bf16.gmra.mrb[0].mxu0 %v2948
        %v3497 = vpop.f32.mrb[0].mxu0
        %v3498 = vadd.f32 %v3261, %v3497
        %v3499 = vpop.f32.mrb[0].mxu0
        %v3500 = vpop.f32.mrb[0].mxu0
        %v3501 = vadd.f32 %v3264, %v3500
        %v3502 = vpop.f32.mrb[0].mxu0
        %3503 = vmatprep.mubr.bf16.mxu0 %v3401
        %3504 = vmatmul.mubr.bf16.gmra.mrb[0].mxu0 %v2950
        %v3505 = vpop.f32.mrb[0].mxu0
        %v3506 = vadd.f32 %v3269, %v3505
        %v3507 = vpop.f32.mrb[0].mxu0
        %v3508 = vpop.f32.mrb[0].mxu0
        %v3509 = vadd.f32 %v3272, %v3508
        %v3510 = vpop.f32.mrb[0].mxu0
        %3511 = vmatprep.mubr.bf16.mxu0 %v3404
        %3512 = vmatmul.mubr.bf16.gmra.mrb[0].mxu0 %v2952
        %v3513 = vpop.f32.mrb[0].mxu0
        %v3514 = vadd.f32 %v3277, %v3513
        %v3515 = vpop.f32.mrb[0].mxu0
        %v3516 = vpop.f32.mrb[0].mxu0
        %v3517 = vadd.f32 %v3280, %v3516
        %v3518 = vpop.f32.mrb[0].mxu0
        %3519 = vmatprep.mubr.bf16.mxu0 %v3407
        %3520 = vmatmul.mubr.bf16.gmra.mrb[0].mxu0 %v2954
        %v3521 = vpop.f32.mrb[0].mxu0
        %v3522 = vadd.f32 %v3285, %v3521
        %v3523 = vpop.f32.mrb[0].mxu0
        %v3524 = vpop.f32.mrb[0].mxu0
        %v3525 = vadd.f32 %v3288, %v3524
        %v3526 = vpop.f32.mrb[0].mxu0
        %3527 = vmatprep.mubr.bf16.mxu0 %v3410
        %3528 = vmatmul.mubr.bf16.gmra.mrb[0].mxu0 %v2956
        %v3529 = vpop.f32.mrb[0].mxu0
        %v3530 = vadd.f32 %v3293, %v3529
        %v3531 = vpop.f32.mrb[0].mxu0
        %v3532 = vpop.f32.mrb[0].mxu0
        %v3533 = vadd.f32 %v3296, %v3532
        %v3534 = vpop.f32.mrb[0].mxu0
        %3535 = vmatprep.mubr.bf16.mxu0 %v3413
        %3536 = vmatmul.mubr.bf16.gmra.mrb[0].mxu0 %v2958
        %v3537 = vpop.f32.mrb[0].mxu0
        %v3538 = vadd.f32 %v3301, %v3537
        %v3539 = vpop.f32.mrb[0].mxu0
        %v3540 = vpop.f32.mrb[0].mxu0
        %v3541 = vadd.f32 %v3304, %v3540
        %v3542 = vpop.f32.mrb[0].mxu0
        %3543 = vdwg.mxu0
        %v3544 = vld [vmem:[#allocation3 + $0x30] sm:$0xff]
        %v3545 = vld [vmem:[#allocation3 + $0x38] sm:$0xff]
        %v3546 = vld [vmem:[#allocation3 + $0x40] sm:$0xff]
        %v3547 = vld [vmem:[#allocation3 + $0x48] sm:$0xff]
        %v3548 = vld [vmem:[#allocation3 + $0x50] sm:$0xff]
        %v3549 = vld [vmem:[#allocation3 + $0x58] sm:$0xff]
        %v3550 = vld [vmem:[#allocation3 + $0x60] sm:$0xff]
        %v3551 = vld [vmem:[#allocation3 + $0x68] sm:$0xff]
        %v3552 = vld [vmem:[#allocation3 + $0x70] sm:$0xff]
        %v3553 = vld [vmem:[#allocation3 + $0x78] sm:$0xff]
        %v3554 = vld [vmem:[#allocation3 + $0x80] sm:$0xff]
        %v3555 = vld [vmem:[#allocation3 + $0x88] sm:$0xff]
        %v3556 = vld [vmem:[#allocation3 + $0x90] sm:$0xff]
        %v3557 = vld [vmem:[#allocation3 + $0x98] sm:$0xff]
        %v3558 = vld [vmem:[#allocation3 + $0xa0] sm:$0xff]
        %v3559 = vld [vmem:[#allocation3 + $0xa8] sm:$0xff]
        %v3560 = vld [vmem:[#allocation3 + $0xb0] sm:$0xff]
        %v3561 = vld [vmem:[#allocation3 + $0xb8] sm:$0xff]
        %v3562 = vld [vmem:[#allocation3 + $0xc0] sm:$0xff]
        %v3563 = vld [vmem:[#allocation3 + $0xc8] sm:$0xff]
        %v3564 = vld [vmem:[#allocation3 + $0xd0] sm:$0xff]
        %v3565 = vld [vmem:[#allocation3 + $0xd8] sm:$0xff]
        %v3566 = vld [vmem:[#allocation3 + $0xe0] sm:$0xff]
        %v3567 = vld [vmem:[#allocation3 + $0xe8] sm:$0xff]
        %v3568 = vrot.slane %v3544, 1
        %v3569 = vrot.slane %v3545, 1
        %v3570 = vrot.slane %v3546, 1
        %v3571 = vrot.slane %v3547, 1
        %v3572 = vrot.slane %v3548, 1
        %v3573 = vrot.slane %v3549, 1
        %v3574 = vrot.slane %v3550, 1
        %v3575 = vrot.slane %v3551, 1
        %v3576 = vrot.slane %v3552, 1
        %v3577 = vrot.slane %v3553, 1
        %v3578 = vrot.slane %v3554, 1
        %v3579 = vrot.slane %v3555, 1
        %v3580 = vrot.slane %v3556, 1
        %v3581 = vrot.slane %v3557, 1
        %v3582 = vrot.slane %v3558, 1
        %v3583 = vrot.slane %v3559, 1
        %v3584 = vrot.slane %v3560, 1
        %v3585 = vrot.slane %v3561, 1
        %v3586 = vrot.slane %v3562, 1
        %v3587 = vrot.slane %v3563, 1
        %v3588 = vrot.slane %v3564, 1
        %v3589 = vrot.slane %v3565, 1
        %v3590 = vrot.slane %v3566, 1
        %v3591 = vrot.slane %v3567, 1
        %v3592 = vsel %vm505, %v3590, %v3591
        %v3593 = vsel %vm505, %v3589, %v3590
        %v3594 = vsel %vm505, %v3588, %v3589
        %v3595 = vsel %vm505, %v3587, %v3588
        %v3596 = vsel %vm505, %v3586, %v3587
        %v3597 = vsel %vm505, %v3585, %v3586
        %v3598 = vsel %vm505, %v3584, %v3585
        %v3599 = vsel %vm505, %v3583, %v3584
        %v3600 = vsel %vm505, %v3582, %v3583
        %v3601 = vsel %vm505, %v3581, %v3582
        %v3602 = vsel %vm505, %v3580, %v3581
        %v3603 = vsel %vm505, %v3579, %v3580
        %v3604 = vsel %vm505, %v3578, %v3579
        %v3605 = vsel %vm505, %v3577, %v3578
        %v3606 = vsel %vm505, %v3576, %v3577
        %v3607 = vsel %vm505, %v3575, %v3576
        %v3608 = vsel %vm505, %v3574, %v3575
        %v3609 = vsel %vm505, %v3573, %v3574
        %v3610 = vsel %vm505, %v3572, %v3573
        %v3611 = vsel %vm505, %v3571, %v3572
        %v3612 = vsel %vm505, %v3570, %v3571
        %v3613 = vsel %vm505, %v3569, %v3570
        %v3614 = vsel %vm505, %v3568, %v3569
        %v3615 = vsel %vm505, %v3591, %v3568
        %v3616 = vrot.slane %v3544, 2
        %v3617 = vrot.slane %v3545, 2
        %v3618 = vrot.slane %v3546, 2
        %v3619 = vrot.slane %v3547, 2
        %v3620 = vrot.slane %v3548, 2
        %v3621 = vrot.slane %v3549, 2
        %v3622 = vrot.slane %v3550, 2
        %v3623 = vrot.slane %v3551, 2
        %v3624 = vrot.slane %v3552, 2
        %v3625 = vrot.slane %v3553, 2
        %v3626 = vrot.slane %v3554, 2
        %v3627 = vrot.slane %v3555, 2
        %v3628 = vrot.slane %v3556, 2
        %v3629 = vrot.slane %v3557, 2
        %v3630 = vrot.slane %v3558, 2
        %v3631 = vrot.slane %v3559, 2
        %v3632 = vrot.slane %v3560, 2
        %v3633 = vrot.slane %v3561, 2
        %v3634 = vrot.slane %v3562, 2
        %v3635 = vrot.slane %v3563, 2
        %v3636 = vrot.slane %v3564, 2
        %v3637 = vrot.slane %v3565, 2
        %v3638 = vrot.slane %v3566, 2
        %v3639 = vrot.slane %v3567, 2
        %v3640 = vsel %vm566, %v3638, %v3639
        %v3641 = vsel %vm566, %v3637, %v3638
        %v3642 = vsel %vm566, %v3636, %v3637
        %v3643 = vsel %vm566, %v3635, %v3636
        %v3644 = vsel %vm566, %v3634, %v3635
        %v3645 = vsel %vm566, %v3633, %v3634
        %v3646 = vsel %vm566, %v3632, %v3633
        %v3647 = vsel %vm566, %v3631, %v3632
        %v3648 = vsel %vm566, %v3630, %v3631
        %v3649 = vsel %vm566, %v3629, %v3630
        %v3650 = vsel %vm566, %v3628, %v3629
        %v3651 = vsel %vm566, %v3627, %v3628
        %v3652 = vsel %vm566, %v3626, %v3627
        %v3653 = vsel %vm566, %v3625, %v3626
        %v3654 = vsel %vm566, %v3624, %v3625
        %v3655 = vsel %vm566, %v3623, %v3624
        %v3656 = vsel %vm566, %v3622, %v3623
        %v3657 = vsel %vm566, %v3621, %v3622
        %v3658 = vsel %vm566, %v3620, %v3621
        %v3659 = vsel %vm566, %v3619, %v3620
        %v3660 = vsel %vm566, %v3618, %v3619
        %v3661 = vsel %vm566, %v3617, %v3618
        %v3662 = vsel %vm566, %v3616, %v3617
        %v3663 = vsel %vm566, %v3639, %v3616
        %3688 = vrot.lane.b32.xlu0 %v3614, 64
        %v3689 = vpop.permute.xlu0 %3688
        %3690 = vrot.lane.b32.xlu0 %v3613, 64
        %v3691 = vpop.permute.xlu0 %3690
        %3692 = vrot.lane.b32.xlu0 %v3612, 64
        %v3693 = vpop.permute.xlu0 %3692
        %3694 = vrot.lane.b32.xlu0 %v3611, 64
        %v3695 = vpop.permute.xlu0 %3694
        %3696 = vrot.lane.b32.xlu0 %v3610, 64
        %v3697 = vpop.permute.xlu0 %3696
        %3698 = vrot.lane.b32.xlu0 %v3609, 64
        %v3699 = vpop.permute.xlu0 %3698
        %3700 = vrot.lane.b32.xlu0 %v3608, 64
        %v3701 = vpop.permute.xlu0 %3700
        %3702 = vrot.lane.b32.xlu0 %v3607, 64
        %v3703 = vpop.permute.xlu0 %3702
        %3704 = vrot.lane.b32.xlu0 %v3606, 64
        %v3705 = vpop.permute.xlu0 %3704
        %3706 = vrot.lane.b32.xlu0 %v3605, 64
        %v3707 = vpop.permute.xlu0 %3706
        %3708 = vrot.lane.b32.xlu0 %v3604, 64
        %v3709 = vpop.permute.xlu0 %3708
        %3710 = vrot.lane.b32.xlu0 %v3603, 64
        %v3711 = vpop.permute.xlu0 %3710
        %3712 = vrot.lane.b32.xlu0 %v3602, 64
        %v3713 = vpop.permute.xlu0 %3712
        %3714 = vrot.lane.b32.xlu0 %v3601, 64
        %v3715 = vpop.permute.xlu0 %3714
        %3716 = vrot.lane.b32.xlu0 %v3600, 64
        %v3717 = vpop.permute.xlu0 %3716
        %3718 = vrot.lane.b32.xlu0 %v3599, 64
        %v3719 = vpop.permute.xlu0 %3718
        %3720 = vrot.lane.b32.xlu0 %v3598, 64
        %v3721 = vpop.permute.xlu0 %3720
        %3722 = vrot.lane.b32.xlu0 %v3597, 64
        %v3723 = vpop.permute.xlu0 %3722
        %3724 = vrot.lane.b32.xlu0 %v3596, 64
        %v3725 = vpop.permute.xlu0 %3724
        %3726 = vrot.lane.b32.xlu0 %v3595, 64
        %v3727 = vpop.permute.xlu0 %3726
        %3728 = vrot.lane.b32.xlu0 %v3594, 64
        %v3729 = vpop.permute.xlu0 %3728
        %3730 = vrot.lane.b32.xlu0 %v3593, 64
        %v3731 = vpop.permute.xlu0 %3730
        %3732 = vrot.lane.b32.xlu0 %v3592, 64
        %v3733 = vpop.permute.xlu0 %3732
        %3734 = vrot.lane.b32.xlu0 %v3615, 64
        %v3735 = vpop.permute.xlu0 %3734
        %v3760 = vsel %vm394, %v3544, %v3689
        %v3761 = vsel %vm394, %v3545, %v3691
        %v3762 = vsel %vm394, %v3546, %v3693
        %v3763 = vsel %vm394, %v3547, %v3695
        %v3764 = vsel %vm394, %v3548, %v3697
        %v3765 = vsel %vm394, %v3549, %v3699
        %v3766 = vsel %vm394, %v3550, %v3701
        %v3767 = vsel %vm394, %v3551, %v3703
        %v3768 = vsel %vm394, %v3552, %v3705
        %v3769 = vsel %vm394, %v3553, %v3707
        %v3770 = vsel %vm394, %v3554, %v3709
        %v3771 = vsel %vm394, %v3555, %v3711
        %v3772 = vsel %vm394, %v3556, %v3713
        %v3773 = vsel %vm394, %v3557, %v3715
        %v3774 = vsel %vm394, %v3558, %v3717
        %v3775 = vsel %vm394, %v3559, %v3719
        %v3776 = vsel %vm394, %v3560, %v3721
        %v3777 = vsel %vm394, %v3561, %v3723
        %v3778 = vsel %vm394, %v3562, %v3725
        %v3779 = vsel %vm394, %v3563, %v3727
        %v3780 = vsel %vm394, %v3564, %v3729
        %v3781 = vsel %vm394, %v3565, %v3731
        %v3782 = vsel %vm394, %v3566, %v3733
        %v3783 = vsel %vm394, %v3567, %v3735
        %v3784 = vpack.c.bf16 %v3761, %v3760
        %v3785 = vpack.c.bf16 %v3661, %v3662
        %v3786 = vpack.c.bf16 %v3763, %v3762
        %v3787 = vpack.c.bf16 %v3659, %v3660
        %v3788 = vpack.c.bf16 %v3765, %v3764
        %v3789 = vpack.c.bf16 %v3657, %v3658
        %v3790 = vpack.c.bf16 %v3767, %v3766
        %v3791 = vpack.c.bf16 %v3655, %v3656
        %v3792 = vpack.c.bf16 %v3769, %v3768
        %v3793 = vpack.c.bf16 %v3653, %v3654
        %v3794 = vpack.c.bf16 %v3771, %v3770
        %v3795 = vpack.c.bf16 %v3651, %v3652
        %v3796 = vpack.c.bf16 %v3773, %v3772
        %v3797 = vpack.c.bf16 %v3649, %v3650
        %v3798 = vpack.c.bf16 %v3775, %v3774
        %v3799 = vpack.c.bf16 %v3647, %v3648
        %v3800 = vpack.c.bf16 %v3777, %v3776
        %v3801 = vpack.c.bf16 %v3645, %v3646
        %v3802 = vpack.c.bf16 %v3779, %v3778
        %v3803 = vpack.c.bf16 %v3643, %v3644
        %v3804 = vpack.c.bf16 %v3781, %v3780
        %v3805 = vpack.c.bf16 %v3641, %v3642
        %v3806 = vpack.c.bf16 %v3783, %v3782
        %v3807 = vpack.c.bf16 %v3663, %v3640
        %s3808 = scalar_lea.vmem [#allocation12], 192
        %v3809 = vld [vmem:[%s3808] sm:$0xf]
        %v3810 = vld [vmem:[%s3808 + $0x4] sm:$0xf]
        %v3811 = vld [vmem:[%s3808 + $0x8] sm:$0xf]
        %v3812 = vld [vmem:[%s3808 + $0xc] sm:$0xf]
        %v3813 = vld [vmem:[%s3808 + $0x10] sm:$0xf]
        %v3814 = vld [vmem:[%s3808 + $0x14] sm:$0xf]
        %v3815 = vld [vmem:[%s3808 + $0x18] sm:$0xf]
        %v3816 = vld [vmem:[%s3808 + $0x1c] sm:$0xf]
        %v3817 = vld [vmem:[%s3808 + $0x20] sm:$0xf]
        %v3818 = vld [vmem:[%s3808 + $0x24] sm:$0xf]
        %v3819 = vld [vmem:[%s3808 + $0x28] sm:$0xf]
        %v3820 = vld [vmem:[%s3808 + $0x2c] sm:$0xf]
        %v3821 = vld [vmem:[%s3808 + $0x30] sm:$0xf]
        %v3822 = vld [vmem:[%s3808 + $0x34] sm:$0xf]
        %v3823 = vld [vmem:[%s3808 + $0x38] sm:$0xf]
        %v3824 = vld [vmem:[%s3808 + $0x3c] sm:$0xf]
        %v3825 = vld [vmem:[%s3808 + $0x40] sm:$0xf]
        %v3826 = vld [vmem:[%s3808 + $0x44] sm:$0xf]
        %v3827 = vld [vmem:[%s3808 + $0x48] sm:$0xf]
        %v3828 = vld [vmem:[%s3808 + $0x4c] sm:$0xf]
        %v3829 = vld [vmem:[%s3808 + $0x50] sm:$0xf]
        %v3830 = vld [vmem:[%s3808 + $0x54] sm:$0xf]
        %v3831 = vld [vmem:[%s3808 + $0x58] sm:$0xf]
        %v3832 = vld [vmem:[%s3808 + $0x5c] sm:$0xf]
        %v3857 = vunpack.c.l.b16 %v3809
        %v3858 = vunpack.c.l.b16 %v3810
        %v3859 = vunpack.c.l.b16 %v3811
        %v3860 = vunpack.c.l.b16 %v3812
        %v3861 = vunpack.c.l.b16 %v3813
        %v3862 = vunpack.c.l.b16 %v3814
        %v3863 = vunpack.c.l.b16 %v3815
        %v3864 = vunpack.c.l.b16 %v3816
        %v3865 = vunpack.c.l.b16 %v3817
        %v3866 = vunpack.c.l.b16 %v3818
        %v3867 = vunpack.c.l.b16 %v3819
        %v3868 = vunpack.c.l.b16 %v3820
        %v3869 = vunpack.c.l.b16 %v3821
        %v3870 = vunpack.c.l.b16 %v3822
        %v3871 = vunpack.c.l.b16 %v3823
        %v3872 = vunpack.c.l.b16 %v3824
        %v3873 = vunpack.c.l.b16 %v3825
        %v3874 = vunpack.c.l.b16 %v3826
        %v3875 = vunpack.c.l.b16 %v3827
        %v3876 = vunpack.c.l.b16 %v3828
        %v3877 = vunpack.c.l.b16 %v3829
        %v3878 = vunpack.c.l.b16 %v3830
        %v3879 = vunpack.c.l.b16 %v3831
        %v3880 = vunpack.c.l.b16 %v3832
        %v3881 = vpack.c.b16 %v3858, %v3857
        %v3882 = vpack.c.b16 %v3860, %v3859
        %v3883 = vpack.c.b16 %v3862, %v3861
        %v3884 = vpack.c.b16 %v3864, %v3863
        %v3885 = vpack.c.b16 %v3866, %v3865
        %v3886 = vpack.c.b16 %v3868, %v3867
        %v3887 = vpack.c.b16 %v3870, %v3869
        %v3888 = vpack.c.b16 %v3872, %v3871
        %v3889 = vpack.c.b16 %v3874, %v3873
        %v3890 = vpack.c.b16 %v3876, %v3875
        %v3891 = vpack.c.b16 %v3878, %v3877
        %v3892 = vpack.c.b16 %v3880, %v3879
        %v3906 = vsel %vm394, %v3785, 0
        %v3909 = vsel %vm394, %v3787, 0
        %v3912 = vsel %vm394, %v3789, 0
        %v3915 = vsel %vm394, %v3791, 0
        %v3918 = vsel %vm394, %v3793, 0
        %v3921 = vsel %vm394, %v3795, 0
        %v3924 = vsel %vm394, %v3797, 0
        %v3927 = vsel %vm394, %v3799, 0
        %v3930 = vsel %vm394, %v3801, 0
        %v3933 = vsel %vm394, %v3803, 0
        %v3936 = vsel %vm394, %v3805, 0
        %v3939 = vsel %vm394, %v3807, 0
        %3941 = vmatprep.subr.bf16.mxu0 0
        %3942 = vmatpush1.bf16.msra.mxu0 %v3881
        %3943 = vmatprep.subr.bf16.mxu0 0
        %3944 = vmatpush1.bf16.msra.mxu0 %v3882
        %3945 = vmatprep.subr.bf16.mxu0 0
        %3946 = vmatpush1.bf16.msra.mxu0 %v3883
        %3947 = vmatprep.subr.bf16.mxu0 0
        %3948 = vmatpush1.bf16.msra.mxu0 %v3884
        %3949 = vmatprep.subr.bf16.mxu0 0
        %3950 = vmatpush1.bf16.msra.mxu0 %v3885
        %3951 = vmatprep.subr.bf16.mxu0 0
        %3952 = vmatpush1.bf16.msra.mxu0 %v3886
        %3953 = vmatprep.subr.bf16.mxu0 0
        %3954 = vmatpush1.bf16.msra.mxu0 %v3887
        %3955 = vmatprep.subr.bf16.mxu0 0
        %3956 = vmatpush1.bf16.msra.mxu0 %v3888
        %3957 = vmatprep.subr.bf16.mxu0 0
        %3958 = vmatpush1.bf16.msra.mxu0 %v3889
        %3959 = vmatprep.subr.bf16.mxu0 0
        %3960 = vmatpush1.bf16.msra.mxu0 %v3890
        %3961 = vmatprep.subr.bf16.mxu0 0
        %3962 = vmatpush1.bf16.msra.mxu0 %v3891
        %3963 = vmatprep.subr.bf16.mxu0 0
        %3964 = vmatpush1.bf16.msra.mxu0 %v3892
        %3965 = vmatprep.subr.bf16.mxu0 0
        %3966 = vmatpush1.bf16.msra.mxu0 0
        %3967 = vmatprep.subr.bf16.mxu0 0
        %3968 = vmatpush1.bf16.msra.mxu0 0
        %3969 = vmatprep.subr.bf16.mxu0 0
        %3970 = vmatpush1.bf16.msra.mxu0 0
        %3971 = vmatprep.subr.bf16.mxu0 0
        %3972 = vmatpush1.bf16.msra.mxu0 0
        %3973 = vmatprep.mubr.bf16.mxu0 %v3906
        %3974 = vmatmul.mubr.bf16.gmra.mrb[0].mxu0 %v3784
        %v3975 = vpop.f32.mrb[0].mxu0
        %v3976 = vadd.f32 0.0, %v3975
        %v3977 = vpop.f32.mrb[0].mxu0
        %v3978 = vpop.f32.mrb[0].mxu0
        %v3979 = vadd.f32 0.0, %v3978
        %v3980 = vpop.f32.mrb[0].mxu0
        %3981 = vmatprep.mubr.bf16.mxu0 %v3909
        %3982 = vmatmul.mubr.bf16.gmra.mrb[0].mxu0 %v3786
        %v3983 = vpop.f32.mrb[0].mxu0
        %v3984 = vadd.f32 0.0, %v3983
        %v3985 = vpop.f32.mrb[0].mxu0
        %v3986 = vpop.f32.mrb[0].mxu0
        %v3987 = vadd.f32 0.0, %v3986
        %v3988 = vpop.f32.mrb[0].mxu0
        %3989 = vmatprep.mubr.bf16.mxu0 %v3912
        %3990 = vmatmul.mubr.bf16.gmra.mrb[0].mxu0 %v3788
        %v3991 = vpop.f32.mrb[0].mxu0
        %v3992 = vadd.f32 0.0, %v3991
        %v3993 = vpop.f32.mrb[0].mxu0
        %v3994 = vpop.f32.mrb[0].mxu0
        %v3995 = vadd.f32 0.0, %v3994
        %v3996 = vpop.f32.mrb[0].mxu0
        %3997 = vmatprep.mubr.bf16.mxu0 %v3915
        %3998 = vmatmul.mubr.bf16.gmra.mrb[0].mxu0 %v3790
        %v3999 = vpop.f32.mrb[0].mxu0
        %v4000 = vadd.f32 0.0, %v3999
        %v4001 = vpop.f32.mrb[0].mxu0
        %v4002 = vpop.f32.mrb[0].mxu0
        %v4003 = vadd.f32 0.0, %v4002
        %v4004 = vpop.f32.mrb[0].mxu0
        %4005 = vmatprep.mubr.bf16.mxu0 %v3918
        %4006 = vmatmul.mubr.bf16.gmra.mrb[0].mxu0 %v3792
        %v4007 = vpop.f32.mrb[0].mxu0
        %v4008 = vadd.f32 0.0, %v4007
        %v4009 = vpop.f32.mrb[0].mxu0
        %v4010 = vpop.f32.mrb[0].mxu0
        %v4011 = vadd.f32 0.0, %v4010
        %v4012 = vpop.f32.mrb[0].mxu0
        %4013 = vmatprep.mubr.bf16.mxu0 %v3921
        %4014 = vmatmul.mubr.bf16.gmra.mrb[0].mxu0 %v3794
        %v4015 = vpop.f32.mrb[0].mxu0
        %v4016 = vadd.f32 0.0, %v4015
        %v4017 = vpop.f32.mrb[0].mxu0
        %v4018 = vpop.f32.mrb[0].mxu0
        %v4019 = vadd.f32 0.0, %v4018
        %v4020 = vpop.f32.mrb[0].mxu0
        %4021 = vmatprep.mubr.bf16.mxu0 %v3924
        %4022 = vmatmul.mubr.bf16.gmra.mrb[0].mxu0 %v3796
        %v4023 = vpop.f32.mrb[0].mxu0
        %v4024 = vadd.f32 0.0, %v4023
        %v4025 = vpop.f32.mrb[0].mxu0
        %v4026 = vpop.f32.mrb[0].mxu0
        %v4027 = vadd.f32 0.0, %v4026
        %v4028 = vpop.f32.mrb[0].mxu0
        %4029 = vmatprep.mubr.bf16.mxu0 %v3927
        %4030 = vmatmul.mubr.bf16.gmra.mrb[0].mxu0 %v3798
        %v4031 = vpop.f32.mrb[0].mxu0
        %v4032 = vadd.f32 0.0, %v4031
        %v4033 = vpop.f32.mrb[0].mxu0
        %v4034 = vpop.f32.mrb[0].mxu0
        %v4035 = vadd.f32 0.0, %v4034
        %v4036 = vpop.f32.mrb[0].mxu0
        %4037 = vmatprep.mubr.bf16.mxu0 %v3930
        %4038 = vmatmul.mubr.bf16.gmra.mrb[0].mxu0 %v3800
        %v4039 = vpop.f32.mrb[0].mxu0
        %v4040 = vadd.f32 0.0, %v4039
        %v4041 = vpop.f32.mrb[0].mxu0
        %v4042 = vpop.f32.mrb[0].mxu0
        %v4043 = vadd.f32 0.0, %v4042
        %v4044 = vpop.f32.mrb[0].mxu0
        %4045 = vmatprep.mubr.bf16.mxu0 %v3933
        %4046 = vmatmul.mubr.bf16.gmra.mrb[0].mxu0 %v3802
        %v4047 = vpop.f32.mrb[0].mxu0
        %v4048 = vadd.f32 0.0, %v4047
        %v4049 = vpop.f32.mrb[0].mxu0
        %v4050 = vpop.f32.mrb[0].mxu0
        %v4051 = vadd.f32 0.0, %v4050
        %v4052 = vpop.f32.mrb[0].mxu0
        %4053 = vmatprep.mubr.bf16.mxu0 %v3936
        %4054 = vmatmul.mubr.bf16.gmra.mrb[0].mxu0 %v3804
        %v4055 = vpop.f32.mrb[0].mxu0
        %v4056 = vadd.f32 0.0, %v4055
        %v4057 = vpop.f32.mrb[0].mxu0
        %v4058 = vpop.f32.mrb[0].mxu0
        %v4059 = vadd.f32 0.0, %v4058
        %v4060 = vpop.f32.mrb[0].mxu0
        %4061 = vmatprep.mubr.bf16.mxu0 %v3939
        %4062 = vmatmul.mubr.bf16.gmra.mrb[0].mxu0 %v3806
        %v4063 = vpop.f32.mrb[0].mxu0
        %v4064 = vadd.f32 0.0, %v4063
        %v4065 = vpop.f32.mrb[0].mxu0
        %v4066 = vpop.f32.mrb[0].mxu0
        %v4067 = vadd.f32 0.0, %v4066
        %v4068 = vpop.f32.mrb[0].mxu0
        %4069 = vdwg.mxu0
        %v4070 = vadd.f32 %v3450, %v3976
        %v4071 = vadd.f32 %v3453, %v3979
        %v4072 = vadd.f32 %v3458, %v3984
        %v4073 = vadd.f32 %v3461, %v3987
        %v4074 = vadd.f32 %v3466, %v3992
        %v4075 = vadd.f32 %v3469, %v3995
        %v4076 = vadd.f32 %v3474, %v4000
        %v4077 = vadd.f32 %v3477, %v4003
        %v4078 = vadd.f32 %v3482, %v4008
        %v4079 = vadd.f32 %v3485, %v4011
        %v4080 = vadd.f32 %v3490, %v4016
        %v4081 = vadd.f32 %v3493, %v4019
        %v4082 = vadd.f32 %v3498, %v4024
        %v4083 = vadd.f32 %v3501, %v4027
        %v4084 = vadd.f32 %v3506, %v4032
        %v4085 = vadd.f32 %v3509, %v4035
        %v4086 = vadd.f32 %v3514, %v4040
        %v4087 = vadd.f32 %v3517, %v4043
        %v4088 = vadd.f32 %v3522, %v4048
        %v4089 = vadd.f32 %v3525, %v4051
        %v4090 = vadd.f32 %v3530, %v4056
        %v4091 = vadd.f32 %v3533, %v4059
        %v4092 = vadd.f32 %v3538, %v4064
        %v4093 = vadd.f32 %v3541, %v4067
        %v4094 = vld [vmem:[#allocation2 + $0x30] sm:$0xff]
        %v4095 = vld [vmem:[#allocation2 + $0x38] sm:$0xff]
        %v4096 = vld [vmem:[#allocation2 + $0x40] sm:$0xff]
        %v4097 = vld [vmem:[#allocation2 + $0x48] sm:$0xff]
        %v4098 = vld [vmem:[#allocation2 + $0x50] sm:$0xff]
        %v4099 = vld [vmem:[#allocation2 + $0x58] sm:$0xff]
        %v4100 = vld [vmem:[#allocation2 + $0x60] sm:$0xff]
        %v4101 = vld [vmem:[#allocation2 + $0x68] sm:$0xff]
        %v4102 = vld [vmem:[#allocation2 + $0x70] sm:$0xff]
        %v4103 = vld [vmem:[#allocation2 + $0x78] sm:$0xff]
        %v4104 = vld [vmem:[#allocation2 + $0x80] sm:$0xff]
        %v4105 = vld [vmem:[#allocation2 + $0x88] sm:$0xff]
        %v4106 = vld [vmem:[#allocation2 + $0x90] sm:$0xff]
        %v4107 = vld [vmem:[#allocation2 + $0x98] sm:$0xff]
        %v4108 = vld [vmem:[#allocation2 + $0xa0] sm:$0xff]
        %v4109 = vld [vmem:[#allocation2 + $0xa8] sm:$0xff]
        %v4110 = vld [vmem:[#allocation2 + $0xb0] sm:$0xff]
        %v4111 = vld [vmem:[#allocation2 + $0xb8] sm:$0xff]
        %v4112 = vld [vmem:[#allocation2 + $0xc0] sm:$0xff]
        %v4113 = vld [vmem:[#allocation2 + $0xc8] sm:$0xff]
        %v4114 = vld [vmem:[#allocation2 + $0xd0] sm:$0xff]
        %v4115 = vld [vmem:[#allocation2 + $0xd8] sm:$0xff]
        %v4116 = vld [vmem:[#allocation2 + $0xe0] sm:$0xff]
        %v4117 = vld [vmem:[#allocation2 + $0xe8] sm:$0xff]
        %v4118 = vrot.slane %v4094, 1
        %v4119 = vrot.slane %v4095, 1
        %v4120 = vrot.slane %v4096, 1
        %v4121 = vrot.slane %v4097, 1
        %v4122 = vrot.slane %v4098, 1
        %v4123 = vrot.slane %v4099, 1
        %v4124 = vrot.slane %v4100, 1
        %v4125 = vrot.slane %v4101, 1
        %v4126 = vrot.slane %v4102, 1
        %v4127 = vrot.slane %v4103, 1
        %v4128 = vrot.slane %v4104, 1
        %v4129 = vrot.slane %v4105, 1
        %v4130 = vrot.slane %v4106, 1
        %v4131 = vrot.slane %v4107, 1
        %v4132 = vrot.slane %v4108, 1
        %v4133 = vrot.slane %v4109, 1
        %v4134 = vrot.slane %v4110, 1
        %v4135 = vrot.slane %v4111, 1
        %v4136 = vrot.slane %v4112, 1
        %v4137 = vrot.slane %v4113, 1
        %v4138 = vrot.slane %v4114, 1
        %v4139 = vrot.slane %v4115, 1
        %v4140 = vrot.slane %v4116, 1
        %v4141 = vrot.slane %v4117, 1
        %v4142 = vsel %vm505, %v4140, %v4141
        %v4143 = vsel %vm505, %v4139, %v4140
        %v4144 = vsel %vm505, %v4138, %v4139
        %v4145 = vsel %vm505, %v4137, %v4138
        %v4146 = vsel %vm505, %v4136, %v4137
        %v4147 = vsel %vm505, %v4135, %v4136
        %v4148 = vsel %vm505, %v4134, %v4135
        %v4149 = vsel %vm505, %v4133, %v4134
        %v4150 = vsel %vm505, %v4132, %v4133
        %v4151 = vsel %vm505, %v4131, %v4132
        %v4152 = vsel %vm505, %v4130, %v4131
        %v4153 = vsel %vm505, %v4129, %v4130
        %v4154 = vsel %vm505, %v4128, %v4129
        %v4155 = vsel %vm505, %v4127, %v4128
        %v4156 = vsel %vm505, %v4126, %v4127
        %v4157 = vsel %vm505, %v4125, %v4126
        %v4158 = vsel %vm505, %v4124, %v4125
        %v4159 = vsel %vm505, %v4123, %v4124
        %v4160 = vsel %vm505, %v4122, %v4123
        %v4161 = vsel %vm505, %v4121, %v4122
        %v4162 = vsel %vm505, %v4120, %v4121
        %v4163 = vsel %vm505, %v4119, %v4120
        %v4164 = vsel %vm505, %v4118, %v4119
        %v4165 = vsel %vm505, %v4141, %v4118
        %v4166 = vmul.f32 %v4070, 0.1
        %v4167 = vmul.f32 %v4071, 0.1
        %v4168 = vmul.f32 %v4072, 0.1
        %v4169 = vmul.f32 %v4073, 0.1
        %v4170 = vmul.f32 %v4074, 0.1
        %v4171 = vmul.f32 %v4075, 0.1
        %v4172 = vmul.f32 %v4076, 0.1
        %v4173 = vmul.f32 %v4077, 0.1
        %v4174 = vmul.f32 %v4078, 0.1
        %v4175 = vmul.f32 %v4079, 0.1
        %v4176 = vmul.f32 %v4080, 0.1
        %v4177 = vmul.f32 %v4081, 0.1
        %v4178 = vmul.f32 %v4082, 0.1
        %v4179 = vmul.f32 %v4083, 0.1
        %v4180 = vmul.f32 %v4084, 0.1
        %v4181 = vmul.f32 %v4085, 0.1
        %v4182 = vmul.f32 %v4086, 0.1
        %v4183 = vmul.f32 %v4087, 0.1
        %v4184 = vmul.f32 %v4088, 0.1
        %v4185 = vmul.f32 %v4089, 0.1
        %v4186 = vmul.f32 %v4090, 0.1
        %v4187 = vmul.f32 %v4091, 0.1
        %v4188 = vmul.f32 %v4092, 0.1
        %v4189 = vmul.f32 %v4093, 0.1
        %v4190 = vadd.f32 %v4164, %v4166
        %v4191 = vadd.f32 %v4163, %v4167
        %v4192 = vadd.f32 %v4162, %v4168
        %v4193 = vadd.f32 %v4161, %v4169
        %v4194 = vadd.f32 %v4160, %v4170
        %v4195 = vadd.f32 %v4159, %v4171
        %v4196 = vadd.f32 %v4158, %v4172
        %v4197 = vadd.f32 %v4157, %v4173
        %v4198 = vadd.f32 %v4156, %v4174
        %v4199 = vadd.f32 %v4155, %v4175
        %v4200 = vadd.f32 %v4154, %v4176
        %v4201 = vadd.f32 %v4153, %v4177
        %v4202 = vadd.f32 %v4152, %v4178
        %v4203 = vadd.f32 %v4151, %v4179
        %v4204 = vadd.f32 %v4150, %v4180
        %v4205 = vadd.f32 %v4149, %v4181
        %v4206 = vadd.f32 %v4148, %v4182
        %v4207 = vadd.f32 %v4147, %v4183
        %v4208 = vadd.f32 %v4146, %v4184
        %v4209 = vadd.f32 %v4145, %v4185
        %v4210 = vadd.f32 %v4144, %v4186
        %v4211 = vadd.f32 %v4143, %v4187
        %v4212 = vadd.f32 %v4142, %v4188
        %v4213 = vadd.f32 %v4165, %v4189
        %4214 = vst.msk [vmem:[%s359] sm:$0xff] %vm394, %v4190
        %4215 = vst.msk [vmem:[%s359 + $0x8] sm:$0xff] %vm394, %v4191
        %4216 = vst.msk [vmem:[%s359 + $0x10] sm:$0xff] %vm394, %v4192
        %4217 = vst.msk [vmem:[%s359 + $0x18] sm:$0xff] %vm394, %v4193
        %4218 = vst.msk [vmem:[%s359 + $0x20] sm:$0xff] %vm394, %v4194
        %4219 = vst.msk [vmem:[%s359 + $0x28] sm:$0xff] %vm394, %v4195
        %4220 = vst.msk [vmem:[%s359 + $0x30] sm:$0xff] %vm394, %v4196
        %4221 = vst.msk [vmem:[%s359 + $0x38] sm:$0xff] %vm394, %v4197
        %4222 = vst.msk [vmem:[%s359 + $0x40] sm:$0xff] %vm394, %v4198
        %4223 = vst.msk [vmem:[%s359 + $0x48] sm:$0xff] %vm394, %v4199
        %4224 = vst.msk [vmem:[%s359 + $0x50] sm:$0xff] %vm394, %v4200
        %4225 = vst.msk [vmem:[%s359 + $0x58] sm:$0xff] %vm394, %v4201
        %4226 = vst.msk [vmem:[%s359 + $0x60] sm:$0xff] %vm394, %v4202
        %4227 = vst.msk [vmem:[%s359 + $0x68] sm:$0xff] %vm394, %v4203
        %4228 = vst.msk [vmem:[%s359 + $0x70] sm:$0xff] %vm394, %v4204
        %4229 = vst.msk [vmem:[%s359 + $0x78] sm:$0xff] %vm394, %v4205
        %4230 = vst.msk [vmem:[%s359 + $0x80] sm:$0xff] %vm394, %v4206
        %4231 = vst.msk [vmem:[%s359 + $0x88] sm:$0xff] %vm394, %v4207
        %4232 = vst.msk [vmem:[%s359 + $0x90] sm:$0xff] %vm394, %v4208
        %4233 = vst.msk [vmem:[%s359 + $0x98] sm:$0xff] %vm394, %v4209
        %4234 = vst.msk [vmem:[%s359 + $0xa0] sm:$0xff] %vm394, %v4210
        %4235 = vst.msk [vmem:[%s359 + $0xa8] sm:$0xff] %vm394, %v4211
        %4236 = vst.msk [vmem:[%s359 + $0xb0] sm:$0xff] %vm394, %v4212
        %4237 = vst.msk [vmem:[%s359 + $0xb8] sm:$0xff] %vm394, %v4213
        %s4238 = sand.u32 %s171, 1
        %s4239 = scalar_lea.sflag [#allocation6], %s4238
        %s4240 = sand.u32 %s171, 1
        %s4241 = smul.addr %s4240, 192
        %s4242 = scalar_lea.vmem [#allocation13], %s4241
        // Predicated region
        $region69: #{tpu_custom_call.1} parent=39 // pred_check
          %p4243 = pneg %p181
        $region70: #{tpu_custom_call.1} parent=39 // pred_check_branch
          %4245 = sbr.rel (%p4243) target = $region72
        $region71: #{tpu_custom_call.1} parent=39 // pred_region
          %s4246 = smul.u32 24, %s31
          %s4248 = ssub.s32 3072, 3072
          %4249 = vsyncadd %s4239, %s4248
          %s4250 = smul.addr %s30, 48
          %s4251 = sadd.s32 %s4246, %s4250
          %s4252 = smul.addr %s4251, 128
          %s4253 = scalar_lea.hbm %s5, %s4252
          %s4254 = sshll.u32 %s4242, 4
          %s4255 = int_to_ptr.vmem [resolvable:$true] %s4254
          %4260 = dma.vmem_to_hbm [thread:$0]  %s4255, 3072, %s4253, %s4239, 128, 128, 8
        $region72: #{tpu_custom_call.1} parent=39 // pred_fallthru
          _
      $region40: #{tpu_custom_call.1} parent=5 // pred_fallthru
        _
      %p4261 = scmp.le.s32.totalorder 2, %s21
      // Predicated region
      $region73: #{tpu_custom_call.1} parent=5 // pred_check
        %p4262 = pneg %p4261
      $region74: #{tpu_custom_call.1} parent=5 // pred_check_branch
        %4264 = sbr.rel (%p4262) target = $region76
      $region75: #{tpu_custom_call.1} parent=5 // pred_region
        %s4265 = ssub.s32 %s21, 2
        // Predicated region
        $region77: #{tpu_custom_call.1} parent=75 // pred_check
          %p4266 = pneg %p187
        $region78: #{tpu_custom_call.1} parent=75 // pred_check_branch
          %4268 = sbr.rel (%p4266) target = $region80
        $region79: #{tpu_custom_call.1} parent=75 // pred_region
          %s4269 = sand.u32 %s172, 1
          %s4270 = scalar_lea.sflag [#allocation6], %s4269
          %s4271 = sand.u32 %s172, 1
          %s4272 = smul.addr %s4271, 192
          %s4273 = scalar_lea.vmem [#allocation13], %s4272
          %4274 = dma.done %s4270, 3072
        $region80: #{tpu_custom_call.1} parent=75 // pred_fallthru
          _
      $region76: #{tpu_custom_call.1} parent=5 // pred_fallthru
        _
    $region6: #{tpu_custom_call.1} parent=1 // loop_footer
      %s25 = sadd.s32 1, %s21
    $region7: #{tpu_custom_call.1} parent=1 // loop_footer_branch
      %20 = sbr.rel target = $region3
    $region8: #{tpu_custom_call.1} parent=1 // loop_exit
      _
    %4275 = vsyncpa [#allocation5], 1
    %s4276 = scalar_lea.sflag [#allocation5], 1
    %4277 = vsyncpa %s4276, 1
    %4278 = vsyncpa [#allocation8], 1
    %s4279 = scalar_lea.sflag [#allocation8], 1
    %4280 = vsyncpa %s4279, 1
    %4281 = vsyncpa [#allocation11], 1
    %4282 = vsyncpa [#allocation6], 1
    %s4283 = scalar_lea.sflag [#allocation6], 1
    %4284 = vsyncpa %s4283, 1

</llo_original>
